<compile_context>
chip_gen: v7x
topology: tpu7x:2x2x1
jax: 0.10.0
libtpu: 0.0.40
codegen_flags: <defaults>
</compile_context>

<pallas_src>
import random
from functools import partial

import jax
import jax.numpy as jnp
from jax.experimental import pallas as pl
from jax.experimental.pallas import tpu as pltpu


def _round_up(x, m):
    return (x + m - 1) // m * m


def _lstm_activations(gates, c, H):
    """One full-vreg sigmoid (i,f,o slices reused) + tanh on the g slice."""
    sg = jax.nn.sigmoid(gates)                    # (Bp, 4H) single EUP pass
    g_g = jnp.tanh(gates[:, 2 * H:3 * H])
    c_new = sg[:, H:2 * H] * c + sg[:, 0:H] * g_g
    h_new = sg[:, 3 * H:4 * H] * jnp.tanh(c_new)
    return h_new, c_new


# ----------------------------------------------------------------------------
# Single fused kernel: encoder recurrence, then the whole greedy /
# teacher-forced decode loop. No grid -> no per-step pipeline overhead.
# ----------------------------------------------------------------------------
def _seq2seq_kernel(tf_ref, enc_gx_ref, w_hh_enc_ref, dec_tgx_ref,
                    w_embih_ref, w_hh_dec_ref, b_dec_ref, wfc_ref, bfc_ref,
                    out_ref, *, T, H, V, Bp, Vp):
    # Weights resident in VMEM for the whole kernel.
    w_hh_enc = w_hh_enc_ref[...]
    w_hh_dec = w_hh_dec_ref[...]
    w_embih = w_embih_ref[...]
    wfc = wfc_ref[...]
    b_dec = b_dec_ref[...]
    bfc = bfc_ref[...]

    # --------------- encoder: h/c live in vregs across all T steps ----------
    h = jnp.zeros((Bp, H), jnp.float32)
    c = jnp.zeros((Bp, H), jnp.float32)
    for t in range(T):                           # fully unrolled recurrence
        gates = enc_gx_ref[t] + jnp.dot(h, w_hh_enc,
                                        preferred_element_type=jnp.float32)
        h, c = _lstm_activations(gates, c, H)

    # --------------- decoder -------------------------------------------------
    out_ref[0] = jnp.zeros((Bp, Vp), jnp.float32)    # outputs[0] stays zero

    # loop-invariant argmax helpers (hoisted)
    col = jax.lax.broadcasted_iota(jnp.int32, (Bp, Vp), 1)
    colf = col.astype(jnp.float32)
    lane_valid = col < V                          # mask padded vocab lanes
    neg_big = jnp.float32(-1e30)
    sentinel = jnp.float32(Vp)

    greedy_gx = jnp.zeros((Bp, 4 * H), jnp.float32)   # unused at k=0 (tf[0]==1)
    for k in range(T - 1):                       # PyTorch loop iteration t=k+1
        tf = tf_ref[k].astype(jnp.float32)       # SMEM scalar read
        gx = tf * dec_tgx_ref[k] + (1.0 - tf) * greedy_gx
        gates = (gx + jnp.dot(h, w_hh_dec, preferred_element_type=jnp.float32)
                 + b_dec)
        h, c = _lstm_activations(gates, c, H)

        logits = jnp.dot(h, wfc, preferred_element_type=jnp.float32) + bfc
        out_ref[k + 1] = logits                  # lane-dense (Bp, Vp) store

        if k + 1 < T - 1:                        # last step's argmax never used
            masked = jnp.where(lane_valid, logits, neg_big)
            m = jnp.max(masked, axis=1, keepdims=True)
            idx = jnp.min(jnp.where(masked == m, colf, sentinel),
                          axis=1, keepdims=True)          # first-max tiebreak
            goh = (colf == idx).astype(jnp.float32)        # greedy one-hot
            greedy_gx = jnp.dot(goh, w_embih,
                                preferred_element_type=jnp.float32)


# ----------------------------------------------------------------------------
# Full Seq2Seq forward (mirrors the PyTorch module's forward semantics)
# ----------------------------------------------------------------------------
@jax.jit
def _seq2seq_jit(src, tf_arr, params):
    T, B = src.shape
    V, E = params["dec_emb"].shape
    H = params["enc_whh"].shape[0]
    Bp = max(8, _round_up(B, 8))                 # pad batch to full sublanes
    Vp = _round_up(V, 128)                       # pad vocab to full lanes

    # --- input projections hoisted out of the recurrence (one matmul each) --
    enc_gx = (jnp.einsum("tbe,eg->tbg",
                         jnp.take(params["enc_emb"], src, axis=0),
                         params["enc_wih"]) + params["enc_b"])        # (T,B,4H)
    enc_gx = jnp.pad(enc_gx, ((0, 0), (0, Bp - B), (0, 0)))

    dec_tgx = jnp.einsum("tbe,eg->tbg",
                         jnp.take(params["dec_emb"], src[:T - 1], axis=0),
                         params["dec_wih"])                           # (T-1,B,4H)
    dec_tgx = jnp.pad(dec_tgx, ((0, 0), (0, Bp - B), (0, 0)))

    # decoder embedding folded into input weights for the greedy path
    demb_p = jnp.zeros((Vp, E), jnp.float32).at[:V].set(params["dec_emb"])
    w_embih = jnp.dot(demb_p, params["dec_wih"])                      # (Vp,4H)

    wfc = jnp.zeros((H, Vp), jnp.float32).at[:, :V].set(params["dec_fc_w"])
    bfc = jnp.zeros((1, Vp), jnp.float32).at[:, :V].set(params["dec_fc_b"])

    kernel = partial(_seq2seq_kernel, T=T, H=H, V=V, Bp=Bp, Vp=Vp)
    out = pl.pallas_call(
        kernel,
        out_shape=jax.ShapeDtypeStruct((T, Bp, Vp), jnp.float32),
        in_specs=[pl.BlockSpec(memory_space=pltpu.MemorySpace.SMEM)]   # tf mask
                + [pl.BlockSpec(memory_space=pltpu.MemorySpace.VMEM)] * 8,
        out_specs=pl.BlockSpec(memory_space=pltpu.MemorySpace.VMEM),
    )(tf_arr, enc_gx, params["enc_whh"], dec_tgx, w_embih,
      params["dec_whh"], params["dec_b"], wfc, bfc)

    return out[:, :B, :V]                                             # (T,B,V)


def seq2seq_forward(src, params, teacher_forcing_ratio):
    T = src.shape[0]
    # Same host random.random() call sequence as the PyTorch loop (t=1..T-1):
    # the draw at iteration t decides the input used at iteration t+1, so
    # decode step k (= t-1) uses draws[k-1]; step 0 always takes src[0].
    draws = [1 if random.random() <= teacher_forcing_ratio else 0
             for _ in range(T - 1)]
    tf_arr = jnp.asarray([1] + draws[:T - 2], dtype=jnp.int32)        # (T-1,)
    return _seq2seq_jit(src, tf_arr, params)


# ----------------------------------------------------------------------------
# Deterministic parameter construction
# (single LSTM bias per layer == PyTorch's b_ih + b_hh folded together)
# ----------------------------------------------------------------------------
def make_params(key, vocab, emb, hid):
    ks = jax.random.split(key, 10)
    s = 0.1
    return {
        # encoder
        "enc_emb": (jax.random.normal(ks[0], (vocab, emb)) * s).astype(jnp.float32),
        "enc_wih": (jax.random.normal(ks[1], (emb, 4 * hid)) * s).astype(jnp.float32),
        "enc_whh": (jax.random.normal(ks[2], (hid, 4 * hid)) * s).astype(jnp.float32),
        "enc_b":   (jax.random.normal(ks[3], (1, 4 * hid)) * s).astype(jnp.float32),
        # decoder
        "dec_emb": (jax.random.normal(ks[4], (vocab, emb)) * s).astype(jnp.float32),
        "dec_wih": (jax.random.normal(ks[5], (emb, 4 * hid)) * s).astype(jnp.float32),
        "dec_whh": (jax.random.normal(ks[6], (hid, 4 * hid)) * s).astype(jnp.float32),
        "dec_b":   (jax.random.normal(ks[7], (1, 4 * hid)) * s).astype(jnp.float32),
        "dec_fc_w": (jax.random.normal(ks[8], (hid, vocab)) * s).astype(jnp.float32),
        "dec_fc_b": (jax.random.normal(ks[9], (1, vocab)) * s).astype(jnp.float32),
    }


if __name__ == "__main__":
    T, B = 8, 2            # max_len, batch_size  (src is [T, B])
    VOCAB, EMB, HID = 16, 32, 32

    key = jax.random.PRNGKey(0)
    pkey, skey = jax.random.split(key)
    params = make_params(pkey, VOCAB, EMB, HID)
    src = jax.random.randint(skey, (T, B), 0, VOCAB, dtype=jnp.int32)

    random.seed(0)                       # deterministic teacher forcing draws
    teacher_forcing_ratio = 0.5

    outputs = seq2seq_forward(src, params, teacher_forcing_ratio)
    jax.block_until_ready(outputs)
    assert outputs.shape == (T, B, VOCAB)
    assert bool(jnp.all(jnp.isfinite(outputs)))
    print("KERNEL_OK")
</pallas_src>

<mosaic_0001>
module attributes {stable_mosaic.version = 11 : i64} {
  func.func @_seq2seq_kernel(%arg0: memref<7xi32, #tpu.memory_space<smem>>, %arg1: memref<8x8x128xf32, #tpu.memory_space<vmem>>, %arg2: memref<32x128xf32, #tpu.memory_space<vmem>>, %arg3: memref<7x8x128xf32, #tpu.memory_space<vmem>>, %arg4: memref<128x128xf32, #tpu.memory_space<vmem>>, %arg5: memref<32x128xf32, #tpu.memory_space<vmem>>, %arg6: memref<1x128xf32, #tpu.memory_space<vmem>>, %arg7: memref<32x128xf32, #tpu.memory_space<vmem>>, %arg8: memref<1x128xf32, #tpu.memory_space<vmem>>, %arg9: memref<8x8x128xf32, #tpu.memory_space<vmem>>) attributes {dimension_semantics = [], scalar_prefetch = 0 : i64, scratch_operands = 0 : i64, tpu.core_type = #tpu.core_type<tc>} {
    %c0 = arith.constant 0 : index
    %c0_0 = arith.constant 0 : index
    %0 = vector.load %arg2[%c0, %c0_0] : memref<32x128xf32, #tpu.memory_space<vmem>>, vector<32x128xf32>
    %c0_1 = arith.constant 0 : index
    %c0_2 = arith.constant 0 : index
    %1 = vector.load %arg5[%c0_1, %c0_2] : memref<32x128xf32, #tpu.memory_space<vmem>>, vector<32x128xf32>
    %c0_3 = arith.constant 0 : index
    %c0_4 = arith.constant 0 : index
    %2 = vector.load %arg4[%c0_3, %c0_4] : memref<128x128xf32, #tpu.memory_space<vmem>>, vector<128x128xf32>
    %c0_5 = arith.constant 0 : index
    %c0_6 = arith.constant 0 : index
    %3 = vector.load %arg7[%c0_5, %c0_6] : memref<32x128xf32, #tpu.memory_space<vmem>>, vector<32x128xf32>
    %c0_7 = arith.constant 0 : index
    %c0_8 = arith.constant 0 : index
    %4 = vector.load %arg6[%c0_7, %c0_8] : memref<1x128xf32, #tpu.memory_space<vmem>>, vector<1x128xf32>
    %c0_9 = arith.constant 0 : index
    %c0_10 = arith.constant 0 : index
    %5 = vector.load %arg8[%c0_9, %c0_10] : memref<1x128xf32, #tpu.memory_space<vmem>>, vector<1x128xf32>
    %cst = arith.constant 0.000000e+00 : f32
    %6 = vector.broadcast %cst : f32 to vector<8x32xf32>
    %cst_11 = arith.constant 0.000000e+00 : f32
    %7 = vector.broadcast %cst_11 : f32 to vector<8x32xf32>
    %c0_12 = arith.constant 0 : index
    %c0_13 = arith.constant 0 : index
    %c0_14 = arith.constant 0 : index
    %8 = vector.load %arg1[%c0_12, %c0_13, %c0_14] : memref<8x8x128xf32, #tpu.memory_space<vmem>>, vector<1x8x128xf32>
    %9 = vector.shape_cast %8 : vector<1x8x128xf32> to vector<8x128xf32>
    %cst_15 = arith.constant dense<0.000000e+00> : vector<8x128xf32>
    %10 = tpu.matmul %6, %0, %cst_15 {dimension_numbers = #tpu.dot_dimension_numbers<[1], [0], [0], [1], [0, 0, 1, 1], [], []>} : vector<8x32xf32>, vector<32x128xf32>, vector<8x128xf32> -> vector<8x128xf32>
    %11 = arith.addf %9, %10 : vector<8x128xf32>
    %12 = arith.negf %11 : vector<8x128xf32>
    %13 = math.exp %12 : vector<8x128xf32>
    %cst_16 = arith.constant 1.000000e+00 : f32
    %14 = vector.broadcast %cst_16 : f32 to vector<8x128xf32>
    %15 = arith.addf %14, %13 : vector<8x128xf32>
    %16 = arith.divf %14, %15 : vector<8x128xf32>
    %17 = vector.extract_strided_slice %11 {offsets = [0, 64], sizes = [8, 32], strides = [1, 1]} : vector<8x128xf32> to vector<8x32xf32>
    %18 = math.tanh %17 : vector<8x32xf32>
    %19 = vector.extract_strided_slice %16 {offsets = [0, 32], sizes = [8, 32], strides = [1, 1]} : vector<8x128xf32> to vector<8x32xf32>
    %20 = arith.mulf %19, %7 : vector<8x32xf32>
    %21 = vector.extract_strided_slice %16 {offsets = [0, 0], sizes = [8, 32], strides = [1, 1]} : vector<8x128xf32> to vector<8x32xf32>
    %22 = arith.mulf %21, %18 : vector<8x32xf32>
    %23 = arith.addf %20, %22 : vector<8x32xf32>
    %24 = vector.extract_strided_slice %16 {offsets = [0, 96], sizes = [8, 32], strides = [1, 1]} : vector<8x128xf32> to vector<8x32xf32>
    %25 = math.tanh %23 : vector<8x32xf32>
    %26 = arith.mulf %24, %25 : vector<8x32xf32>
    %c1 = arith.constant 1 : index
    %c0_17 = arith.constant 0 : index
    %c0_18 = arith.constant 0 : index
    %27 = vector.load %arg1[%c1, %c0_17, %c0_18] : memref<8x8x128xf32, #tpu.memory_space<vmem>>, vector<1x8x128xf32>
    %28 = vector.shape_cast %27 : vector<1x8x128xf32> to vector<8x128xf32>
    %cst_19 = arith.constant dense<0.000000e+00> : vector<8x128xf32>
    %29 = tpu.matmul %26, %0, %cst_19 {dimension_numbers = #tpu.dot_dimension_numbers<[1], [0], [0], [1], [0, 0, 1, 1], [], []>} : vector<8x32xf32>, vector<32x128xf32>, vector<8x128xf32> -> vector<8x128xf32>
    %30 = arith.addf %28, %29 : vector<8x128xf32>
    %31 = arith.negf %30 : vector<8x128xf32>
    %32 = math.exp %31 : vector<8x128xf32>
    %cst_20 = arith.constant 1.000000e+00 : f32
    %33 = vector.broadcast %cst_20 : f32 to vector<8x128xf32>
    %34 = arith.addf %33, %32 : vector<8x128xf32>
    %35 = arith.divf %33, %34 : vector<8x128xf32>
    %36 = vector.extract_strided_slice %30 {offsets = [0, 64], sizes = [8, 32], strides = [1, 1]} : vector<8x128xf32> to vector<8x32xf32>
    %37 = math.tanh %36 : vector<8x32xf32>
    %38 = vector.extract_strided_slice %35 {offsets = [0, 32], sizes = [8, 32], strides = [1, 1]} : vector<8x128xf32> to vector<8x32xf32>
    %39 = arith.mulf %38, %23 : vector<8x32xf32>
    %40 = vector.extract_strided_slice %35 {offsets = [0, 0], sizes = [8, 32], strides = [1, 1]} : vector<8x128xf32> to vector<8x32xf32>
    %41 = arith.mulf %40, %37 : vector<8x32xf32>
    %42 = arith.addf %39, %41 : vector<8x32xf32>
    %43 = vector.extract_strided_slice %35 {offsets = [0, 96], sizes = [8, 32], strides = [1, 1]} : vector<8x128xf32> to vector<8x32xf32>
    %44 = math.tanh %42 : vector<8x32xf32>
    %45 = arith.mulf %43, %44 : vector<8x32xf32>
    %c2 = arith.constant 2 : index
    %c0_21 = arith.constant 0 : index
    %c0_22 = arith.constant 0 : index
    %46 = vector.load %arg1[%c2, %c0_21, %c0_22] : memref<8x8x128xf32, #tpu.memory_space<vmem>>, vector<1x8x128xf32>
    %47 = vector.shape_cast %46 : vector<1x8x128xf32> to vector<8x128xf32>
    %cst_23 = arith.constant dense<0.000000e+00> : vector<8x128xf32>
    %48 = tpu.matmul %45, %0, %cst_23 {dimension_numbers = #tpu.dot_dimension_numbers<[1], [0], [0], [1], [0, 0, 1, 1], [], []>} : vector<8x32xf32>, vector<32x128xf32>, vector<8x128xf32> -> vector<8x128xf32>
    %49 = arith.addf %47, %48 : vector<8x128xf32>
    %50 = arith.negf %49 : vector<8x128xf32>
    %51 = math.exp %50 : vector<8x128xf32>
    %cst_24 = arith.constant 1.000000e+00 : f32
    %52 = vector.broadcast %cst_24 : f32 to vector<8x128xf32>
    %53 = arith.addf %52, %51 : vector<8x128xf32>
    %54 = arith.divf %52, %53 : vector<8x128xf32>
    %55 = vector.extract_strided_slice %49 {offsets = [0, 64], sizes = [8, 32], strides = [1, 1]} : vector<8x128xf32> to vector<8x32xf32>
    %56 = math.tanh %55 : vector<8x32xf32>
    %57 = vector.extract_strided_slice %54 {offsets = [0, 32], sizes = [8, 32], strides = [1, 1]} : vector<8x128xf32> to vector<8x32xf32>
    %58 = arith.mulf %57, %42 : vector<8x32xf32>
    %59 = vector.extract_strided_slice %54 {offsets = [0, 0], sizes = [8, 32], strides = [1, 1]} : vector<8x128xf32> to vector<8x32xf32>
    %60 = arith.mulf %59, %56 : vector<8x32xf32>
    %61 = arith.addf %58, %60 : vector<8x32xf32>
    %62 = vector.extract_strided_slice %54 {offsets = [0, 96], sizes = [8, 32], strides = [1, 1]} : vector<8x128xf32> to vector<8x32xf32>
    %63 = math.tanh %61 : vector<8x32xf32>
    %64 = arith.mulf %62, %63 : vector<8x32xf32>
    %c3 = arith.constant 3 : index
    %c0_25 = arith.constant 0 : index
    %c0_26 = arith.constant 0 : index
    %65 = vector.load %arg1[%c3, %c0_25, %c0_26] : memref<8x8x128xf32, #tpu.memory_space<vmem>>, vector<1x8x128xf32>
    %66 = vector.shape_cast %65 : vector<1x8x128xf32> to vector<8x128xf32>
    %cst_27 = arith.constant dense<0.000000e+00> : vector<8x128xf32>
    %67 = tpu.matmul %64, %0, %cst_27 {dimension_numbers = #tpu.dot_dimension_numbers<[1], [0], [0], [1], [0, 0, 1, 1], [], []>} : vector<8x32xf32>, vector<32x128xf32>, vector<8x128xf32> -> vector<8x128xf32>
    %68 = arith.addf %66, %67 : vector<8x128xf32>
    %69 = arith.negf %68 : vector<8x128xf32>
    %70 = math.exp %69 : vector<8x128xf32>
    %cst_28 = arith.constant 1.000000e+00 : f32
    %71 = vector.broadcast %cst_28 : f32 to vector<8x128xf32>
    %72 = arith.addf %71, %70 : vector<8x128xf32>
    %73 = arith.divf %71, %72 : vector<8x128xf32>
    %74 = vector.extract_strided_slice %68 {offsets = [0, 64], sizes = [8, 32], strides = [1, 1]} : vector<8x128xf32> to vector<8x32xf32>
    %75 = math.tanh %74 : vector<8x32xf32>
    %76 = vector.extract_strided_slice %73 {offsets = [0, 32], sizes = [8, 32], strides = [1, 1]} : vector<8x128xf32> to vector<8x32xf32>
    %77 = arith.mulf %76, %61 : vector<8x32xf32>
    %78 = vector.extract_strided_slice %73 {offsets = [0, 0], sizes = [8, 32], strides = [1, 1]} : vector<8x128xf32> to vector<8x32xf32>
    %79 = arith.mulf %78, %75 : vector<8x32xf32>
    %80 = arith.addf %77, %79 : vector<8x32xf32>
    %81 = vector.extract_strided_slice %73 {offsets = [0, 96], sizes = [8, 32], strides = [1, 1]} : vector<8x128xf32> to vector<8x32xf32>
    %82 = math.tanh %80 : vector<8x32xf32>
    %83 = arith.mulf %81, %82 : vector<8x32xf32>
    %c4 = arith.constant 4 : index
    %c0_29 = arith.constant 0 : index
    %c0_30 = arith.constant 0 : index
    %84 = vector.load %arg1[%c4, %c0_29, %c0_30] : memref<8x8x128xf32, #tpu.memory_space<vmem>>, vector<1x8x128xf32>
    %85 = vector.shape_cast %84 : vector<1x8x128xf32> to vector<8x128xf32>
    %cst_31 = arith.constant dense<0.000000e+00> : vector<8x128xf32>
    %86 = tpu.matmul %83, %0, %cst_31 {dimension_numbers = #tpu.dot_dimension_numbers<[1], [0], [0], [1], [0, 0, 1, 1], [], []>} : vector<8x32xf32>, vector<32x128xf32>, vector<8x128xf32> -> vector<8x128xf32>
    %87 = arith.addf %85, %86 : vector<8x128xf32>
    %88 = arith.negf %87 : vector<8x128xf32>
    %89 = math.exp %88 : vector<8x128xf32>
    %cst_32 = arith.constant 1.000000e+00 : f32
    %90 = vector.broadcast %cst_32 : f32 to vector<8x128xf32>
    %91 = arith.addf %90, %89 : vector<8x128xf32>
    %92 = arith.divf %90, %91 : vector<8x128xf32>
    %93 = vector.extract_strided_slice %87 {offsets = [0, 64], sizes = [8, 32], strides = [1, 1]} : vector<8x128xf32> to vector<8x32xf32>
    %94 = math.tanh %93 : vector<8x32xf32>
    %95 = vector.extract_strided_slice %92 {offsets = [0, 32], sizes = [8, 32], strides = [1, 1]} : vector<8x128xf32> to vector<8x32xf32>
    %96 = arith.mulf %95, %80 : vector<8x32xf32>
    %97 = vector.extract_strided_slice %92 {offsets = [0, 0], sizes = [8, 32], strides = [1, 1]} : vector<8x128xf32> to vector<8x32xf32>
    %98 = arith.mulf %97, %94 : vector<8x32xf32>
    %99 = arith.addf %96, %98 : vector<8x32xf32>
    %100 = vector.extract_strided_slice %92 {offsets = [0, 96], sizes = [8, 32], strides = [1, 1]} : vector<8x128xf32> to vector<8x32xf32>
    %101 = math.tanh %99 : vector<8x32xf32>
    %102 = arith.mulf %100, %101 : vector<8x32xf32>
    %c5 = arith.constant 5 : index
    %c0_33 = arith.constant 0 : index
    %c0_34 = arith.constant 0 : index
    %103 = vector.load %arg1[%c5, %c0_33, %c0_34] : memref<8x8x128xf32, #tpu.memory_space<vmem>>, vector<1x8x128xf32>
    %104 = vector.shape_cast %103 : vector<1x8x128xf32> to vector<8x128xf32>
    %cst_35 = arith.constant dense<0.000000e+00> : vector<8x128xf32>
    %105 = tpu.matmul %102, %0, %cst_35 {dimension_numbers = #tpu.dot_dimension_numbers<[1], [0], [0], [1], [0, 0, 1, 1], [], []>} : vector<8x32xf32>, vector<32x128xf32>, vector<8x128xf32> -> vector<8x128xf32>
    %106 = arith.addf %104, %105 : vector<8x128xf32>
    %107 = arith.negf %106 : vector<8x128xf32>
    %108 = math.exp %107 : vector<8x128xf32>
    %cst_36 = arith.constant 1.000000e+00 : f32
    %109 = vector.broadcast %cst_36 : f32 to vector<8x128xf32>
    %110 = arith.addf %109, %108 : vector<8x128xf32>
    %111 = arith.divf %109, %110 : vector<8x128xf32>
    %112 = vector.extract_strided_slice %106 {offsets = [0, 64], sizes = [8, 32], strides = [1, 1]} : vector<8x128xf32> to vector<8x32xf32>
    %113 = math.tanh %112 : vector<8x32xf32>
    %114 = vector.extract_strided_slice %111 {offsets = [0, 32], sizes = [8, 32], strides = [1, 1]} : vector<8x128xf32> to vector<8x32xf32>
    %115 = arith.mulf %114, %99 : vector<8x32xf32>
    %116 = vector.extract_strided_slice %111 {offsets = [0, 0], sizes = [8, 32], strides = [1, 1]} : vector<8x128xf32> to vector<8x32xf32>
    %117 = arith.mulf %116, %113 : vector<8x32xf32>
    %118 = arith.addf %115, %117 : vector<8x32xf32>
    %119 = vector.extract_strided_slice %111 {offsets = [0, 96], sizes = [8, 32], strides = [1, 1]} : vector<8x128xf32> to vector<8x32xf32>
    %120 = math.tanh %118 : vector<8x32xf32>
    %121 = arith.mulf %119, %120 : vector<8x32xf32>
    %c6 = arith.constant 6 : index
    %c0_37 = arith.constant 0 : index
    %c0_38 = arith.constant 0 : index
    %122 = vector.load %arg1[%c6, %c0_37, %c0_38] : memref<8x8x128xf32, #tpu.memory_space<vmem>>, vector<1x8x128xf32>
    %123 = vector.shape_cast %122 : vector<1x8x128xf32> to vector<8x128xf32>
    %cst_39 = arith.constant dense<0.000000e+00> : vector<8x128xf32>
    %124 = tpu.matmul %121, %0, %cst_39 {dimension_numbers = #tpu.dot_dimension_numbers<[1], [0], [0], [1], [0, 0, 1, 1], [], []>} : vector<8x32xf32>, vector<32x128xf32>, vector<8x128xf32> -> vector<8x128xf32>
    %125 = arith.addf %123, %124 : vector<8x128xf32>
    %126 = arith.negf %125 : vector<8x128xf32>
    %127 = math.exp %126 : vector<8x128xf32>
    %cst_40 = arith.constant 1.000000e+00 : f32
    %128 = vector.broadcast %cst_40 : f32 to vector<8x128xf32>
    %129 = arith.addf %128, %127 : vector<8x128xf32>
    %130 = arith.divf %128, %129 : vector<8x128xf32>
    %131 = vector.extract_strided_slice %125 {offsets = [0, 64], sizes = [8, 32], strides = [1, 1]} : vector<8x128xf32> to vector<8x32xf32>
    %132 = math.tanh %131 : vector<8x32xf32>
    %133 = vector.extract_strided_slice %130 {offsets = [0, 32], sizes = [8, 32], strides = [1, 1]} : vector<8x128xf32> to vector<8x32xf32>
    %134 = arith.mulf %133, %118 : vector<8x32xf32>
    %135 = vector.extract_strided_slice %130 {offsets = [0, 0], sizes = [8, 32], strides = [1, 1]} : vector<8x128xf32> to vector<8x32xf32>
    %136 = arith.mulf %135, %132 : vector<8x32xf32>
    %137 = arith.addf %134, %136 : vector<8x32xf32>
    %138 = vector.extract_strided_slice %130 {offsets = [0, 96], sizes = [8, 32], strides = [1, 1]} : vector<8x128xf32> to vector<8x32xf32>
    %139 = math.tanh %137 : vector<8x32xf32>
    %140 = arith.mulf %138, %139 : vector<8x32xf32>
    %c7 = arith.constant 7 : index
    %c0_41 = arith.constant 0 : index
    %c0_42 = arith.constant 0 : index
    %141 = vector.load %arg1[%c7, %c0_41, %c0_42] : memref<8x8x128xf32, #tpu.memory_space<vmem>>, vector<1x8x128xf32>
    %142 = vector.shape_cast %141 : vector<1x8x128xf32> to vector<8x128xf32>
    %cst_43 = arith.constant dense<0.000000e+00> : vector<8x128xf32>
    %143 = tpu.matmul %140, %0, %cst_43 {dimension_numbers = #tpu.dot_dimension_numbers<[1], [0], [0], [1], [0, 0, 1, 1], [], []>} : vector<8x32xf32>, vector<32x128xf32>, vector<8x128xf32> -> vector<8x128xf32>
    %144 = arith.addf %142, %143 : vector<8x128xf32>
    %145 = arith.negf %144 : vector<8x128xf32>
    %146 = math.exp %145 : vector<8x128xf32>
    %cst_44 = arith.constant 1.000000e+00 : f32
    %147 = vector.broadcast %cst_44 : f32 to vector<8x128xf32>
    %148 = arith.addf %147, %146 : vector<8x128xf32>
    %149 = arith.divf %147, %148 : vector<8x128xf32>
    %150 = vector.extract_strided_slice %144 {offsets = [0, 64], sizes = [8, 32], strides = [1, 1]} : vector<8x128xf32> to vector<8x32xf32>
    %151 = math.tanh %150 : vector<8x32xf32>
    %152 = vector.extract_strided_slice %149 {offsets = [0, 32], sizes = [8, 32], strides = [1, 1]} : vector<8x128xf32> to vector<8x32xf32>
    %153 = arith.mulf %152, %137 : vector<8x32xf32>
    %154 = vector.extract_strided_slice %149 {offsets = [0, 0], sizes = [8, 32], strides = [1, 1]} : vector<8x128xf32> to vector<8x32xf32>
    %155 = arith.mulf %154, %151 : vector<8x32xf32>
    %156 = arith.addf %153, %155 : vector<8x32xf32>
    %157 = vector.extract_strided_slice %149 {offsets = [0, 96], sizes = [8, 32], strides = [1, 1]} : vector<8x128xf32> to vector<8x32xf32>
    %158 = math.tanh %156 : vector<8x32xf32>
    %159 = arith.mulf %157, %158 : vector<8x32xf32>
    %cst_45 = arith.constant 0.000000e+00 : f32
    %160 = vector.broadcast %cst_45 : f32 to vector<8x128xf32>
    %c0_46 = arith.constant 0 : index
    %c0_47 = arith.constant 0 : index
    %c0_48 = arith.constant 0 : index
    %161 = vector.load %arg9[%c0_46, %c0_47, %c0_48] : memref<8x8x128xf32, #tpu.memory_space<vmem>>, vector<1x8x128xf32>
    %162 = vector.shape_cast %161 : vector<1x8x128xf32> to vector<8x128xf32>
    %163 = vector.shape_cast %160 : vector<8x128xf32> to vector<1x8x128xf32>
    tpu.vector_store %arg9[%c0_46, %c0_47, %c0_48], %163 {strides = array<i32>} : memref<8x8x128xf32, #tpu.memory_space<vmem>>, vector<1x8x128xf32>,
    %164 = tpu.iota {dimensions = array<i32: 1>} : vector<8x128xi32>
    %165 = arith.sitofp %164 : vector<8x128xi32> to vector<8x128xf32>
    %c16_i32 = arith.constant 16 : i32
    %166 = vector.broadcast %c16_i32 : i32 to vector<8x128xi32>
    %167 = arith.cmpi slt, %164, %166 : vector<8x128xi32>
    %cst_49 = arith.constant 0.000000e+00 : f32
    %168 = vector.broadcast %cst_49 : f32 to vector<8x128xf32>
    %c0_50 = arith.constant 0 : index
    %169 = memref.load %arg0[%c0_50] : memref<7xi32, #tpu.memory_space<smem>>
    %170 = arith.sitofp %169 : i32 to f32
    %c0_51 = arith.constant 0 : index
    %c0_52 = arith.constant 0 : index
    %c0_53 = arith.constant 0 : index
    %171 = vector.load %arg3[%c0_51, %c0_52, %c0_53] : memref<7x8x128xf32, #tpu.memory_space<vmem>>, vector<1x8x128xf32>
    %172 = vector.shape_cast %171 : vector<1x8x128xf32> to vector<8x128xf32>
    %173 = vector.broadcast %170 : f32 to vector<8x128xf32>
    %174 = arith.mulf %173, %172 : vector<8x128xf32>
    %cst_54 = arith.constant 1.000000e+00 : f32
    %175 = arith.subf %cst_54, %170 : f32
    %176 = vector.broadcast %175 : f32 to vector<8x128xf32>
    %177 = arith.mulf %176, %168 : vector<8x128xf32>
    %178 = arith.addf %174, %177 : vector<8x128xf32>
    %cst_55 = arith.constant dense<0.000000e+00> : vector<8x128xf32>
    %179 = tpu.matmul %159, %1, %cst_55 {dimension_numbers = #tpu.dot_dimension_numbers<[1], [0], [0], [1], [0, 0, 1, 1], [], []>} : vector<8x32xf32>, vector<32x128xf32>, vector<8x128xf32> -> vector<8x128xf32>
    %180 = arith.addf %178, %179 : vector<8x128xf32>
    %181 = vector.broadcast %4 : vector<1x128xf32> to vector<8x128xf32>
    %182 = arith.addf %180, %181 : vector<8x128xf32>
    %183 = arith.negf %182 : vector<8x128xf32>
    %184 = math.exp %183 : vector<8x128xf32>
    %cst_56 = arith.constant 1.000000e+00 : f32
    %185 = vector.broadcast %cst_56 : f32 to vector<8x128xf32>
    %186 = arith.addf %185, %184 : vector<8x128xf32>
    %187 = arith.divf %185, %186 : vector<8x128xf32>
    %188 = vector.extract_strided_slice %182 {offsets = [0, 64], sizes = [8, 32], strides = [1, 1]} : vector<8x128xf32> to vector<8x32xf32>
    %189 = math.tanh %188 : vector<8x32xf32>
    %190 = vector.extract_strided_slice %187 {offsets = [0, 32], sizes = [8, 32], strides = [1, 1]} : vector<8x128xf32> to vector<8x32xf32>
    %191 = arith.mulf %190, %156 : vector<8x32xf32>
    %192 = vector.extract_strided_slice %187 {offsets = [0, 0], sizes = [8, 32], strides = [1, 1]} : vector<8x128xf32> to vector<8x32xf32>
    %193 = arith.mulf %192, %189 : vector<8x32xf32>
    %194 = arith.addf %191, %193 : vector<8x32xf32>
    %195 = vector.extract_strided_slice %187 {offsets = [0, 96], sizes = [8, 32], strides = [1, 1]} : vector<8x128xf32> to vector<8x32xf32>
    %196 = math.tanh %194 : vector<8x32xf32>
    %197 = arith.mulf %195, %196 : vector<8x32xf32>
    %cst_57 = arith.constant dense<0.000000e+00> : vector<8x128xf32>
    %198 = tpu.matmul %197, %3, %cst_57 {dimension_numbers = #tpu.dot_dimension_numbers<[1], [0], [0], [1], [0, 0, 1, 1], [], []>} : vector<8x32xf32>, vector<32x128xf32>, vector<8x128xf32> -> vector<8x128xf32>
    %199 = vector.broadcast %5 : vector<1x128xf32> to vector<8x128xf32>
    %200 = arith.addf %198, %199 : vector<8x128xf32>
    %c1_58 = arith.constant 1 : index
    %c0_59 = arith.constant 0 : index
    %c0_60 = arith.constant 0 : index
    %201 = vector.load %arg9[%c1_58, %c0_59, %c0_60] : memref<8x8x128xf32, #tpu.memory_space<vmem>>, vector<1x8x128xf32>
    %202 = vector.shape_cast %201 : vector<1x8x128xf32> to vector<8x128xf32>
    %203 = vector.shape_cast %200 : vector<8x128xf32> to vector<1x8x128xf32>
    tpu.vector_store %arg9[%c1_58, %c0_59, %c0_60], %203 {strides = array<i32>} : memref<8x8x128xf32, #tpu.memory_space<vmem>>, vector<1x8x128xf32>,
    %cst_61 = arith.constant -1.000000e+30 : f32
    %204 = vector.broadcast %cst_61 : f32 to vector<8x128xf32>
    %205 = arith.select %167, %200, %204 : vector<8x128xi1>, vector<8x128xf32>
    %cst_62 = arith.constant dense<0xFF800000> : vector<8xf32>
    %206 = vector.multi_reduction <maximumf>, %205, %cst_62 [1] : vector<8x128xf32> to vector<8xf32>
    %207 = vector.shape_cast %206 : vector<8xf32> to vector<8x1xf32>
    %208 = vector.broadcast %207 : vector<8x1xf32> to vector<8x128xf32>
    %209 = arith.cmpf oeq, %205, %208 : vector<8x128xf32>
    %cst_63 = arith.constant 1.280000e+02 : f32
    %210 = vector.broadcast %cst_63 : f32 to vector<8x128xf32>
    %211 = arith.select %209, %165, %210 : vector<8x128xi1>, vector<8x128xf32>
    %cst_64 = arith.constant dense<0x7F800000> : vector<8xf32>
    %212 = vector.multi_reduction <minimumf>, %211, %cst_64 [1] : vector<8x128xf32> to vector<8xf32>
    %213 = vector.shape_cast %212 : vector<8xf32> to vector<8x1xf32>
    %214 = vector.broadcast %213 : vector<8x1xf32> to vector<8x128xf32>
    %215 = arith.cmpf oeq, %165, %214 : vector<8x128xf32>
    %216 = arith.extui %215 : vector<8x128xi1> to vector<8x128xi32>
    %217 = arith.sitofp %216 : vector<8x128xi32> to vector<8x128xf32>
    %cst_65 = arith.constant dense<0.000000e+00> : vector<8x128xf32>
    %218 = tpu.matmul %217, %2, %cst_65 {dimension_numbers = #tpu.dot_dimension_numbers<[1], [0], [0], [1], [0, 0, 1, 1], [], []>} : vector<8x128xf32>, vector<128x128xf32>, vector<8x128xf32> -> vector<8x128xf32>
    %c1_66 = arith.constant 1 : index
    %219 = memref.load %arg0[%c1_66] : memref<7xi32, #tpu.memory_space<smem>>
    %220 = arith.sitofp %219 : i32 to f32
    %c1_67 = arith.constant 1 : index
    %c0_68 = arith.constant 0 : index
    %c0_69 = arith.constant 0 : index
    %221 = vector.load %arg3[%c1_67, %c0_68, %c0_69] : memref<7x8x128xf32, #tpu.memory_space<vmem>>, vector<1x8x128xf32>
    %222 = vector.shape_cast %221 : vector<1x8x128xf32> to vector<8x128xf32>
    %223 = vector.broadcast %220 : f32 to vector<8x128xf32>
    %224 = arith.mulf %223, %222 : vector<8x128xf32>
    %cst_70 = arith.constant 1.000000e+00 : f32
    %225 = arith.subf %cst_70, %220 : f32
    %226 = vector.broadcast %225 : f32 to vector<8x128xf32>
    %227 = arith.mulf %226, %218 : vector<8x128xf32>
    %228 = arith.addf %224, %227 : vector<8x128xf32>
    %cst_71 = arith.constant dense<0.000000e+00> : vector<8x128xf32>
    %229 = tpu.matmul %197, %1, %cst_71 {dimension_numbers = #tpu.dot_dimension_numbers<[1], [0], [0], [1], [0, 0, 1, 1], [], []>} : vector<8x32xf32>, vector<32x128xf32>, vector<8x128xf32> -> vector<8x128xf32>
    %230 = arith.addf %228, %229 : vector<8x128xf32>
    %231 = vector.broadcast %4 : vector<1x128xf32> to vector<8x128xf32>
    %232 = arith.addf %230, %231 : vector<8x128xf32>
    %233 = arith.negf %232 : vector<8x128xf32>
    %234 = math.exp %233 : vector<8x128xf32>
    %cst_72 = arith.constant 1.000000e+00 : f32
    %235 = vector.broadcast %cst_72 : f32 to vector<8x128xf32>
    %236 = arith.addf %235, %234 : vector<8x128xf32>
    %237 = arith.divf %235, %236 : vector<8x128xf32>
    %238 = vector.extract_strided_slice %232 {offsets = [0, 64], sizes = [8, 32], strides = [1, 1]} : vector<8x128xf32> to vector<8x32xf32>
    %239 = math.tanh %238 : vector<8x32xf32>
    %240 = vector.extract_strided_slice %237 {offsets = [0, 32], sizes = [8, 32], strides = [1, 1]} : vector<8x128xf32> to vector<8x32xf32>
    %241 = arith.mulf %240, %194 : vector<8x32xf32>
    %242 = vector.extract_strided_slice %237 {offsets = [0, 0], sizes = [8, 32], strides = [1, 1]} : vector<8x128xf32> to vector<8x32xf32>
    %243 = arith.mulf %242, %239 : vector<8x32xf32>
    %244 = arith.addf %241, %243 : vector<8x32xf32>
    %245 = vector.extract_strided_slice %237 {offsets = [0, 96], sizes = [8, 32], strides = [1, 1]} : vector<8x128xf32> to vector<8x32xf32>
    %246 = math.tanh %244 : vector<8x32xf32>
    %247 = arith.mulf %245, %246 : vector<8x32xf32>
    %cst_73 = arith.constant dense<0.000000e+00> : vector<8x128xf32>
    %248 = tpu.matmul %247, %3, %cst_73 {dimension_numbers = #tpu.dot_dimension_numbers<[1], [0], [0], [1], [0, 0, 1, 1], [], []>} : vector<8x32xf32>, vector<32x128xf32>, vector<8x128xf32> -> vector<8x128xf32>
    %249 = vector.broadcast %5 : vector<1x128xf32> to vector<8x128xf32>
    %250 = arith.addf %248, %249 : vector<8x128xf32>
    %c2_74 = arith.constant 2 : index
    %c0_75 = arith.constant 0 : index
    %c0_76 = arith.constant 0 : index
    %251 = vector.load %arg9[%c2_74, %c0_75, %c0_76] : memref<8x8x128xf32, #tpu.memory_space<vmem>>, vector<1x8x128xf32>
    %252 = vector.shape_cast %251 : vector<1x8x128xf32> to vector<8x128xf32>
    %253 = vector.shape_cast %250 : vector<8x128xf32> to vector<1x8x128xf32>
    tpu.vector_store %arg9[%c2_74, %c0_75, %c0_76], %253 {strides = array<i32>} : memref<8x8x128xf32, #tpu.memory_space<vmem>>, vector<1x8x128xf32>,
    %cst_77 = arith.constant -1.000000e+30 : f32
    %254 = vector.broadcast %cst_77 : f32 to vector<8x128xf32>
    %255 = arith.select %167, %250, %254 : vector<8x128xi1>, vector<8x128xf32>
    %cst_78 = arith.constant dense<0xFF800000> : vector<8xf32>
    %256 = vector.multi_reduction <maximumf>, %255, %cst_78 [1] : vector<8x128xf32> to vector<8xf32>
    %257 = vector.shape_cast %256 : vector<8xf32> to vector<8x1xf32>
    %258 = vector.broadcast %257 : vector<8x1xf32> to vector<8x128xf32>
    %259 = arith.cmpf oeq, %255, %258 : vector<8x128xf32>
    %cst_79 = arith.constant 1.280000e+02 : f32
    %260 = vector.broadcast %cst_79 : f32 to vector<8x128xf32>
    %261 = arith.select %259, %165, %260 : vector<8x128xi1>, vector<8x128xf32>
    %cst_80 = arith.constant dense<0x7F800000> : vector<8xf32>
    %262 = vector.multi_reduction <minimumf>, %261, %cst_80 [1] : vector<8x128xf32> to vector<8xf32>
    %263 = vector.shape_cast %262 : vector<8xf32> to vector<8x1xf32>
    %264 = vector.broadcast %263 : vector<8x1xf32> to vector<8x128xf32>
    %265 = arith.cmpf oeq, %165, %264 : vector<8x128xf32>
    %266 = arith.extui %265 : vector<8x128xi1> to vector<8x128xi32>
    %267 = arith.sitofp %266 : vector<8x128xi32> to vector<8x128xf32>
    %cst_81 = arith.constant dense<0.000000e+00> : vector<8x128xf32>
    %268 = tpu.matmul %267, %2, %cst_81 {dimension_numbers = #tpu.dot_dimension_numbers<[1], [0], [0], [1], [0, 0, 1, 1], [], []>} : vector<8x128xf32>, vector<128x128xf32>, vector<8x128xf32> -> vector<8x128xf32>
    %c2_82 = arith.constant 2 : index
    %269 = memref.load %arg0[%c2_82] : memref<7xi32, #tpu.memory_space<smem>>
    %270 = arith.sitofp %269 : i32 to f32
    %c2_83 = arith.constant 2 : index
    %c0_84 = arith.constant 0 : index
    %c0_85 = arith.constant 0 : index
    %271 = vector.load %arg3[%c2_83, %c0_84, %c0_85] : memref<7x8x128xf32, #tpu.memory_space<vmem>>, vector<1x8x128xf32>
    %272 = vector.shape_cast %271 : vector<1x8x128xf32> to vector<8x128xf32>
    %273 = vector.broadcast %270 : f32 to vector<8x128xf32>
    %274 = arith.mulf %273, %272 : vector<8x128xf32>
    %cst_86 = arith.constant 1.000000e+00 : f32
    %275 = arith.subf %cst_86, %270 : f32
    %276 = vector.broadcast %275 : f32 to vector<8x128xf32>
    %277 = arith.mulf %276, %268 : vector<8x128xf32>
    %278 = arith.addf %274, %277 : vector<8x128xf32>
    %cst_87 = arith.constant dense<0.000000e+00> : vector<8x128xf32>
    %279 = tpu.matmul %247, %1, %cst_87 {dimension_numbers = #tpu.dot_dimension_numbers<[1], [0], [0], [1], [0, 0, 1, 1], [], []>} : vector<8x32xf32>, vector<32x128xf32>, vector<8x128xf32> -> vector<8x128xf32>
    %280 = arith.addf %278, %279 : vector<8x128xf32>
    %281 = vector.broadcast %4 : vector<1x128xf32> to vector<8x128xf32>
    %282 = arith.addf %280, %281 : vector<8x128xf32>
    %283 = arith.negf %282 : vector<8x128xf32>
    %284 = math.exp %283 : vector<8x128xf32>
    %cst_88 = arith.constant 1.000000e+00 : f32
    %285 = vector.broadcast %cst_88 : f32 to vector<8x128xf32>
    %286 = arith.addf %285, %284 : vector<8x128xf32>
    %287 = arith.divf %285, %286 : vector<8x128xf32>
    %288 = vector.extract_strided_slice %282 {offsets = [0, 64], sizes = [8, 32], strides = [1, 1]} : vector<8x128xf32> to vector<8x32xf32>
    %289 = math.tanh %288 : vector<8x32xf32>
    %290 = vector.extract_strided_slice %287 {offsets = [0, 32], sizes = [8, 32], strides = [1, 1]} : vector<8x128xf32> to vector<8x32xf32>
    %291 = arith.mulf %290, %244 : vector<8x32xf32>
    %292 = vector.extract_strided_slice %287 {offsets = [0, 0], sizes = [8, 32], strides = [1, 1]} : vector<8x128xf32> to vector<8x32xf32>
    %293 = arith.mulf %292, %289 : vector<8x32xf32>
    %294 = arith.addf %291, %293 : vector<8x32xf32>
    %295 = vector.extract_strided_slice %287 {offsets = [0, 96], sizes = [8, 32], strides = [1, 1]} : vector<8x128xf32> to vector<8x32xf32>
    %296 = math.tanh %294 : vector<8x32xf32>
    %297 = arith.mulf %295, %296 : vector<8x32xf32>
    %cst_89 = arith.constant dense<0.000000e+00> : vector<8x128xf32>
    %298 = tpu.matmul %297, %3, %cst_89 {dimension_numbers = #tpu.dot_dimension_numbers<[1], [0], [0], [1], [0, 0, 1, 1], [], []>} : vector<8x32xf32>, vector<32x128xf32>, vector<8x128xf32> -> vector<8x128xf32>
    %299 = vector.broadcast %5 : vector<1x128xf32> to vector<8x128xf32>
    %300 = arith.addf %298, %299 : vector<8x128xf32>
    %c3_90 = arith.constant 3 : index
    %c0_91 = arith.constant 0 : index
    %c0_92 = arith.constant 0 : index
    %301 = vector.load %arg9[%c3_90, %c0_91, %c0_92] : memref<8x8x128xf32, #tpu.memory_space<vmem>>, vector<1x8x128xf32>
    %302 = vector.shape_cast %301 : vector<1x8x128xf32> to vector<8x128xf32>
    %303 = vector.shape_cast %300 : vector<8x128xf32> to vector<1x8x128xf32>
    tpu.vector_store %arg9[%c3_90, %c0_91, %c0_92], %303 {strides = array<i32>} : memref<8x8x128xf32, #tpu.memory_space<vmem>>, vector<1x8x128xf32>,
    %cst_93 = arith.constant -1.000000e+30 : f32
    %304 = vector.broadcast %cst_93 : f32 to vector<8x128xf32>
    %305 = arith.select %167, %300, %304 : vector<8x128xi1>, vector<8x128xf32>
    %cst_94 = arith.constant dense<0xFF800000> : vector<8xf32>
    %306 = vector.multi_reduction <maximumf>, %305, %cst_94 [1] : vector<8x128xf32> to vector<8xf32>
    %307 = vector.shape_cast %306 : vector<8xf32> to vector<8x1xf32>
    %308 = vector.broadcast %307 : vector<8x1xf32> to vector<8x128xf32>
    %309 = arith.cmpf oeq, %305, %308 : vector<8x128xf32>
    %cst_95 = arith.constant 1.280000e+02 : f32
    %310 = vector.broadcast %cst_95 : f32 to vector<8x128xf32>
    %311 = arith.select %309, %165, %310 : vector<8x128xi1>, vector<8x128xf32>
    %cst_96 = arith.constant dense<0x7F800000> : vector<8xf32>
    %312 = vector.multi_reduction <minimumf>, %311, %cst_96 [1] : vector<8x128xf32> to vector<8xf32>
    %313 = vector.shape_cast %312 : vector<8xf32> to vector<8x1xf32>
    %314 = vector.broadcast %313 : vector<8x1xf32> to vector<8x128xf32>
    %315 = arith.cmpf oeq, %165, %314 : vector<8x128xf32>
    %316 = arith.extui %315 : vector<8x128xi1> to vector<8x128xi32>
    %317 = arith.sitofp %316 : vector<8x128xi32> to vector<8x128xf32>
    %cst_97 = arith.constant dense<0.000000e+00> : vector<8x128xf32>
    %318 = tpu.matmul %317, %2, %cst_97 {dimension_numbers = #tpu.dot_dimension_numbers<[1], [0], [0], [1], [0, 0, 1, 1], [], []>} : vector<8x128xf32>, vector<128x128xf32>, vector<8x128xf32> -> vector<8x128xf32>
    %c3_98 = arith.constant 3 : index
    %319 = memref.load %arg0[%c3_98] : memref<7xi32, #tpu.memory_space<smem>>
    %320 = arith.sitofp %319 : i32 to f32
    %c3_99 = arith.constant 3 : index
    %c0_100 = arith.constant 0 : index
    %c0_101 = arith.constant 0 : index
    %321 = vector.load %arg3[%c3_99, %c0_100, %c0_101] : memref<7x8x128xf32, #tpu.memory_space<vmem>>, vector<1x8x128xf32>
    %322 = vector.shape_cast %321 : vector<1x8x128xf32> to vector<8x128xf32>
    %323 = vector.broadcast %320 : f32 to vector<8x128xf32>
    %324 = arith.mulf %323, %322 : vector<8x128xf32>
    %cst_102 = arith.constant 1.000000e+00 : f32
    %325 = arith.subf %cst_102, %320 : f32
    %326 = vector.broadcast %325 : f32 to vector<8x128xf32>
    %327 = arith.mulf %326, %318 : vector<8x128xf32>
    %328 = arith.addf %324, %327 : vector<8x128xf32>
    %cst_103 = arith.constant dense<0.000000e+00> : vector<8x128xf32>
    %329 = tpu.matmul %297, %1, %cst_103 {dimension_numbers = #tpu.dot_dimension_numbers<[1], [0], [0], [1], [0, 0, 1, 1], [], []>} : vector<8x32xf32>, vector<32x128xf32>, vector<8x128xf32> -> vector<8x128xf32>
    %330 = arith.addf %328, %329 : vector<8x128xf32>
    %331 = vector.broadcast %4 : vector<1x128xf32> to vector<8x128xf32>
    %332 = arith.addf %330, %331 : vector<8x128xf32>
    %333 = arith.negf %332 : vector<8x128xf32>
    %334 = math.exp %333 : vector<8x128xf32>
    %cst_104 = arith.constant 1.000000e+00 : f32
    %335 = vector.broadcast %cst_104 : f32 to vector<8x128xf32>
    %336 = arith.addf %335, %334 : vector<8x128xf32>
    %337 = arith.divf %335, %336 : vector<8x128xf32>
    %338 = vector.extract_strided_slice %332 {offsets = [0, 64], sizes = [8, 32], strides = [1, 1]} : vector<8x128xf32> to vector<8x32xf32>
    %339 = math.tanh %338 : vector<8x32xf32>
    %340 = vector.extract_strided_slice %337 {offsets = [0, 32], sizes = [8, 32], strides = [1, 1]} : vector<8x128xf32> to vector<8x32xf32>
    %341 = arith.mulf %340, %294 : vector<8x32xf32>
    %342 = vector.extract_strided_slice %337 {offsets = [0, 0], sizes = [8, 32], strides = [1, 1]} : vector<8x128xf32> to vector<8x32xf32>
    %343 = arith.mulf %342, %339 : vector<8x32xf32>
    %344 = arith.addf %341, %343 : vector<8x32xf32>
    %345 = vector.extract_strided_slice %337 {offsets = [0, 96], sizes = [8, 32], strides = [1, 1]} : vector<8x128xf32> to vector<8x32xf32>
    %346 = math.tanh %344 : vector<8x32xf32>
    %347 = arith.mulf %345, %346 : vector<8x32xf32>
    %cst_105 = arith.constant dense<0.000000e+00> : vector<8x128xf32>
    %348 = tpu.matmul %347, %3, %cst_105 {dimension_numbers = #tpu.dot_dimension_numbers<[1], [0], [0], [1], [0, 0, 1, 1], [], []>} : vector<8x32xf32>, vector<32x128xf32>, vector<8x128xf32> -> vector<8x128xf32>
    %349 = vector.broadcast %5 : vector<1x128xf32> to vector<8x128xf32>
    %350 = arith.addf %348, %349 : vector<8x128xf32>
    %c4_106 = arith.constant 4 : index
    %c0_107 = arith.constant 0 : index
    %c0_108 = arith.constant 0 : index
    %351 = vector.load %arg9[%c4_106, %c0_107, %c0_108] : memref<8x8x128xf32, #tpu.memory_space<vmem>>, vector<1x8x128xf32>
    %352 = vector.shape_cast %351 : vector<1x8x128xf32> to vector<8x128xf32>
    %353 = vector.shape_cast %350 : vector<8x128xf32> to vector<1x8x128xf32>
    tpu.vector_store %arg9[%c4_106, %c0_107, %c0_108], %353 {strides = array<i32>} : memref<8x8x128xf32, #tpu.memory_space<vmem>>, vector<1x8x128xf32>,
    %cst_109 = arith.constant -1.000000e+30 : f32
    %354 = vector.broadcast %cst_109 : f32 to vector<8x128xf32>
    %355 = arith.select %167, %350, %354 : vector<8x128xi1>, vector<8x128xf32>
    %cst_110 = arith.constant dense<0xFF800000> : vector<8xf32>
    %356 = vector.multi_reduction <maximumf>, %355, %cst_110 [1] : vector<8x128xf32> to vector<8xf32>
    %357 = vector.shape_cast %356 : vector<8xf32> to vector<8x1xf32>
    %358 = vector.broadcast %357 : vector<8x1xf32> to vector<8x128xf32>
    %359 = arith.cmpf oeq, %355, %358 : vector<8x128xf32>
    %cst_111 = arith.constant 1.280000e+02 : f32
    %360 = vector.broadcast %cst_111 : f32 to vector<8x128xf32>
    %361 = arith.select %359, %165, %360 : vector<8x128xi1>, vector<8x128xf32>
    %cst_112 = arith.constant dense<0x7F800000> : vector<8xf32>
    %362 = vector.multi_reduction <minimumf>, %361, %cst_112 [1] : vector<8x128xf32> to vector<8xf32>
    %363 = vector.shape_cast %362 : vector<8xf32> to vector<8x1xf32>
    %364 = vector.broadcast %363 : vector<8x1xf32> to vector<8x128xf32>
    %365 = arith.cmpf oeq, %165, %364 : vector<8x128xf32>
    %366 = arith.extui %365 : vector<8x128xi1> to vector<8x128xi32>
    %367 = arith.sitofp %366 : vector<8x128xi32> to vector<8x128xf32>
    %cst_113 = arith.constant dense<0.000000e+00> : vector<8x128xf32>
    %368 = tpu.matmul %367, %2, %cst_113 {dimension_numbers = #tpu.dot_dimension_numbers<[1], [0], [0], [1], [0, 0, 1, 1], [], []>} : vector<8x128xf32>, vector<128x128xf32>, vector<8x128xf32> -> vector<8x128xf32>
    %c4_114 = arith.constant 4 : index
    %369 = memref.load %arg0[%c4_114] : memref<7xi32, #tpu.memory_space<smem>>
    %370 = arith.sitofp %369 : i32 to f32
    %c4_115 = arith.constant 4 : index
    %c0_116 = arith.constant 0 : index
    %c0_117 = arith.constant 0 : index
    %371 = vector.load %arg3[%c4_115, %c0_116, %c0_117] : memref<7x8x128xf32, #tpu.memory_space<vmem>>, vector<1x8x128xf32>
    %372 = vector.shape_cast %371 : vector<1x8x128xf32> to vector<8x128xf32>
    %373 = vector.broadcast %370 : f32 to vector<8x128xf32>
    %374 = arith.mulf %373, %372 : vector<8x128xf32>
    %cst_118 = arith.constant 1.000000e+00 : f32
    %375 = arith.subf %cst_118, %370 : f32
    %376 = vector.broadcast %375 : f32 to vector<8x128xf32>
    %377 = arith.mulf %376, %368 : vector<8x128xf32>
    %378 = arith.addf %374, %377 : vector<8x128xf32>
    %cst_119 = arith.constant dense<0.000000e+00> : vector<8x128xf32>
    %379 = tpu.matmul %347, %1, %cst_119 {dimension_numbers = #tpu.dot_dimension_numbers<[1], [0], [0], [1], [0, 0, 1, 1], [], []>} : vector<8x32xf32>, vector<32x128xf32>, vector<8x128xf32> -> vector<8x128xf32>
    %380 = arith.addf %378, %379 : vector<8x128xf32>
    %381 = vector.broadcast %4 : vector<1x128xf32> to vector<8x128xf32>
    %382 = arith.addf %380, %381 : vector<8x128xf32>
    %383 = arith.negf %382 : vector<8x128xf32>
    %384 = math.exp %383 : vector<8x128xf32>
    %cst_120 = arith.constant 1.000000e+00 : f32
    %385 = vector.broadcast %cst_120 : f32 to vector<8x128xf32>
    %386 = arith.addf %385, %384 : vector<8x128xf32>
    %387 = arith.divf %385, %386 : vector<8x128xf32>
    %388 = vector.extract_strided_slice %382 {offsets = [0, 64], sizes = [8, 32], strides = [1, 1]} : vector<8x128xf32> to vector<8x32xf32>
    %389 = math.tanh %388 : vector<8x32xf32>
    %390 = vector.extract_strided_slice %387 {offsets = [0, 32], sizes = [8, 32], strides = [1, 1]} : vector<8x128xf32> to vector<8x32xf32>
    %391 = arith.mulf %390, %344 : vector<8x32xf32>
    %392 = vector.extract_strided_slice %387 {offsets = [0, 0], sizes = [8, 32], strides = [1, 1]} : vector<8x128xf32> to vector<8x32xf32>
    %393 = arith.mulf %392, %389 : vector<8x32xf32>
    %394 = arith.addf %391, %393 : vector<8x32xf32>
    %395 = vector.extract_strided_slice %387 {offsets = [0, 96], sizes = [8, 32], strides = [1, 1]} : vector<8x128xf32> to vector<8x32xf32>
    %396 = math.tanh %394 : vector<8x32xf32>
    %397 = arith.mulf %395, %396 : vector<8x32xf32>
    %cst_121 = arith.constant dense<0.000000e+00> : vector<8x128xf32>
    %398 = tpu.matmul %397, %3, %cst_121 {dimension_numbers = #tpu.dot_dimension_numbers<[1], [0], [0], [1], [0, 0, 1, 1], [], []>} : vector<8x32xf32>, vector<32x128xf32>, vector<8x128xf32> -> vector<8x128xf32>
    %399 = vector.broadcast %5 : vector<1x128xf32> to vector<8x128xf32>
    %400 = arith.addf %398, %399 : vector<8x128xf32>
    %c5_122 = arith.constant 5 : index
    %c0_123 = arith.constant 0 : index
    %c0_124 = arith.constant 0 : index
    %401 = vector.load %arg9[%c5_122, %c0_123, %c0_124] : memref<8x8x128xf32, #tpu.memory_space<vmem>>, vector<1x8x128xf32>
    %402 = vector.shape_cast %401 : vector<1x8x128xf32> to vector<8x128xf32>
    %403 = vector.shape_cast %400 : vector<8x128xf32> to vector<1x8x128xf32>
    tpu.vector_store %arg9[%c5_122, %c0_123, %c0_124], %403 {strides = array<i32>} : memref<8x8x128xf32, #tpu.memory_space<vmem>>, vector<1x8x128xf32>,
    %cst_125 = arith.constant -1.000000e+30 : f32
    %404 = vector.broadcast %cst_125 : f32 to vector<8x128xf32>
    %405 = arith.select %167, %400, %404 : vector<8x128xi1>, vector<8x128xf32>
    %cst_126 = arith.constant dense<0xFF800000> : vector<8xf32>
    %406 = vector.multi_reduction <maximumf>, %405, %cst_126 [1] : vector<8x128xf32> to vector<8xf32>
    %407 = vector.shape_cast %406 : vector<8xf32> to vector<8x1xf32>
    %408 = vector.broadcast %407 : vector<8x1xf32> to vector<8x128xf32>
    %409 = arith.cmpf oeq, %405, %408 : vector<8x128xf32>
    %cst_127 = arith.constant 1.280000e+02 : f32
    %410 = vector.broadcast %cst_127 : f32 to vector<8x128xf32>
    %411 = arith.select %409, %165, %410 : vector<8x128xi1>, vector<8x128xf32>
    %cst_128 = arith.constant dense<0x7F800000> : vector<8xf32>
    %412 = vector.multi_reduction <minimumf>, %411, %cst_128 [1] : vector<8x128xf32> to vector<8xf32>
    %413 = vector.shape_cast %412 : vector<8xf32> to vector<8x1xf32>
    %414 = vector.broadcast %413 : vector<8x1xf32> to vector<8x128xf32>
    %415 = arith.cmpf oeq, %165, %414 : vector<8x128xf32>
    %416 = arith.extui %415 : vector<8x128xi1> to vector<8x128xi32>
    %417 = arith.sitofp %416 : vector<8x128xi32> to vector<8x128xf32>
    %cst_129 = arith.constant dense<0.000000e+00> : vector<8x128xf32>
    %418 = tpu.matmul %417, %2, %cst_129 {dimension_numbers = #tpu.dot_dimension_numbers<[1], [0], [0], [1], [0, 0, 1, 1], [], []>} : vector<8x128xf32>, vector<128x128xf32>, vector<8x128xf32> -> vector<8x128xf32>
    %c5_130 = arith.constant 5 : index
    %419 = memref.load %arg0[%c5_130] : memref<7xi32, #tpu.memory_space<smem>>
    %420 = arith.sitofp %419 : i32 to f32
    %c5_131 = arith.constant 5 : index
    %c0_132 = arith.constant 0 : index
    %c0_133 = arith.constant 0 : index
    %421 = vector.load %arg3[%c5_131, %c0_132, %c0_133] : memref<7x8x128xf32, #tpu.memory_space<vmem>>, vector<1x8x128xf32>
    %422 = vector.shape_cast %421 : vector<1x8x128xf32> to vector<8x128xf32>
    %423 = vector.broadcast %420 : f32 to vector<8x128xf32>
    %424 = arith.mulf %423, %422 : vector<8x128xf32>
    %cst_134 = arith.constant 1.000000e+00 : f32
    %425 = arith.subf %cst_134, %420 : f32
    %426 = vector.broadcast %425 : f32 to vector<8x128xf32>
    %427 = arith.mulf %426, %418 : vector<8x128xf32>
    %428 = arith.addf %424, %427 : vector<8x128xf32>
    %cst_135 = arith.constant dense<0.000000e+00> : vector<8x128xf32>
    %429 = tpu.matmul %397, %1, %cst_135 {dimension_numbers = #tpu.dot_dimension_numbers<[1], [0], [0], [1], [0, 0, 1, 1], [], []>} : vector<8x32xf32>, vector<32x128xf32>, vector<8x128xf32> -> vector<8x128xf32>
    %430 = arith.addf %428, %429 : vector<8x128xf32>
    %431 = vector.broadcast %4 : vector<1x128xf32> to vector<8x128xf32>
    %432 = arith.addf %430, %431 : vector<8x128xf32>
    %433 = arith.negf %432 : vector<8x128xf32>
    %434 = math.exp %433 : vector<8x128xf32>
    %cst_136 = arith.constant 1.000000e+00 : f32
    %435 = vector.broadcast %cst_136 : f32 to vector<8x128xf32>
    %436 = arith.addf %435, %434 : vector<8x128xf32>
    %437 = arith.divf %435, %436 : vector<8x128xf32>
    %438 = vector.extract_strided_slice %432 {offsets = [0, 64], sizes = [8, 32], strides = [1, 1]} : vector<8x128xf32> to vector<8x32xf32>
    %439 = math.tanh %438 : vector<8x32xf32>
    %440 = vector.extract_strided_slice %437 {offsets = [0, 32], sizes = [8, 32], strides = [1, 1]} : vector<8x128xf32> to vector<8x32xf32>
    %441 = arith.mulf %440, %394 : vector<8x32xf32>
    %442 = vector.extract_strided_slice %437 {offsets = [0, 0], sizes = [8, 32], strides = [1, 1]} : vector<8x128xf32> to vector<8x32xf32>
    %443 = arith.mulf %442, %439 : vector<8x32xf32>
    %444 = arith.addf %441, %443 : vector<8x32xf32>
    %445 = vector.extract_strided_slice %437 {offsets = [0, 96], sizes = [8, 32], strides = [1, 1]} : vector<8x128xf32> to vector<8x32xf32>
    %446 = math.tanh %444 : vector<8x32xf32>
    %447 = arith.mulf %445, %446 : vector<8x32xf32>
    %cst_137 = arith.constant dense<0.000000e+00> : vector<8x128xf32>
    %448 = tpu.matmul %447, %3, %cst_137 {dimension_numbers = #tpu.dot_dimension_numbers<[1], [0], [0], [1], [0, 0, 1, 1], [], []>} : vector<8x32xf32>, vector<32x128xf32>, vector<8x128xf32> -> vector<8x128xf32>
    %449 = vector.broadcast %5 : vector<1x128xf32> to vector<8x128xf32>
    %450 = arith.addf %448, %449 : vector<8x128xf32>
    %c6_138 = arith.constant 6 : index
    %c0_139 = arith.constant 0 : index
    %c0_140 = arith.constant 0 : index
    %451 = vector.load %arg9[%c6_138, %c0_139, %c0_140] : memref<8x8x128xf32, #tpu.memory_space<vmem>>, vector<1x8x128xf32>
    %452 = vector.shape_cast %451 : vector<1x8x128xf32> to vector<8x128xf32>
    %453 = vector.shape_cast %450 : vector<8x128xf32> to vector<1x8x128xf32>
    tpu.vector_store %arg9[%c6_138, %c0_139, %c0_140], %453 {strides = array<i32>} : memref<8x8x128xf32, #tpu.memory_space<vmem>>, vector<1x8x128xf32>,
    %cst_141 = arith.constant -1.000000e+30 : f32
    %454 = vector.broadcast %cst_141 : f32 to vector<8x128xf32>
    %455 = arith.select %167, %450, %454 : vector<8x128xi1>, vector<8x128xf32>
    %cst_142 = arith.constant dense<0xFF800000> : vector<8xf32>
    %456 = vector.multi_reduction <maximumf>, %455, %cst_142 [1] : vector<8x128xf32> to vector<8xf32>
    %457 = vector.shape_cast %456 : vector<8xf32> to vector<8x1xf32>
    %458 = vector.broadcast %457 : vector<8x1xf32> to vector<8x128xf32>
    %459 = arith.cmpf oeq, %455, %458 : vector<8x128xf32>
    %cst_143 = arith.constant 1.280000e+02 : f32
    %460 = vector.broadcast %cst_143 : f32 to vector<8x128xf32>
    %461 = arith.select %459, %165, %460 : vector<8x128xi1>, vector<8x128xf32>
    %cst_144 = arith.constant dense<0x7F800000> : vector<8xf32>
    %462 = vector.multi_reduction <minimumf>, %461, %cst_144 [1] : vector<8x128xf32> to vector<8xf32>
    %463 = vector.shape_cast %462 : vector<8xf32> to vector<8x1xf32>
    %464 = vector.broadcast %463 : vector<8x1xf32> to vector<8x128xf32>
    %465 = arith.cmpf oeq, %165, %464 : vector<8x128xf32>
    %466 = arith.extui %465 : vector<8x128xi1> to vector<8x128xi32>
    %467 = arith.sitofp %466 : vector<8x128xi32> to vector<8x128xf32>
    %cst_145 = arith.constant dense<0.000000e+00> : vector<8x128xf32>
    %468 = tpu.matmul %467, %2, %cst_145 {dimension_numbers = #tpu.dot_dimension_numbers<[1], [0], [0], [1], [0, 0, 1, 1], [], []>} : vector<8x128xf32>, vector<128x128xf32>, vector<8x128xf32> -> vector<8x128xf32>
    %c6_146 = arith.constant 6 : index
    %469 = memref.load %arg0[%c6_146] : memref<7xi32, #tpu.memory_space<smem>>
    %470 = arith.sitofp %469 : i32 to f32
    %c6_147 = arith.constant 6 : index
    %c0_148 = arith.constant 0 : index
    %c0_149 = arith.constant 0 : index
    %471 = vector.load %arg3[%c6_147, %c0_148, %c0_149] : memref<7x8x128xf32, #tpu.memory_space<vmem>>, vector<1x8x128xf32>
    %472 = vector.shape_cast %471 : vector<1x8x128xf32> to vector<8x128xf32>
    %473 = vector.broadcast %470 : f32 to vector<8x128xf32>
    %474 = arith.mulf %473, %472 : vector<8x128xf32>
    %cst_150 = arith.constant 1.000000e+00 : f32
    %475 = arith.subf %cst_150, %470 : f32
    %476 = vector.broadcast %475 : f32 to vector<8x128xf32>
    %477 = arith.mulf %476, %468 : vector<8x128xf32>
    %478 = arith.addf %474, %477 : vector<8x128xf32>
    %cst_151 = arith.constant dense<0.000000e+00> : vector<8x128xf32>
    %479 = tpu.matmul %447, %1, %cst_151 {dimension_numbers = #tpu.dot_dimension_numbers<[1], [0], [0], [1], [0, 0, 1, 1], [], []>} : vector<8x32xf32>, vector<32x128xf32>, vector<8x128xf32> -> vector<8x128xf32>
    %480 = arith.addf %478, %479 : vector<8x128xf32>
    %481 = vector.broadcast %4 : vector<1x128xf32> to vector<8x128xf32>
    %482 = arith.addf %480, %481 : vector<8x128xf32>
    %483 = arith.negf %482 : vector<8x128xf32>
    %484 = math.exp %483 : vector<8x128xf32>
    %cst_152 = arith.constant 1.000000e+00 : f32
    %485 = vector.broadcast %cst_152 : f32 to vector<8x128xf32>
    %486 = arith.addf %485, %484 : vector<8x128xf32>
    %487 = arith.divf %485, %486 : vector<8x128xf32>
    %488 = vector.extract_strided_slice %482 {offsets = [0, 64], sizes = [8, 32], strides = [1, 1]} : vector<8x128xf32> to vector<8x32xf32>
    %489 = math.tanh %488 : vector<8x32xf32>
    %490 = vector.extract_strided_slice %487 {offsets = [0, 32], sizes = [8, 32], strides = [1, 1]} : vector<8x128xf32> to vector<8x32xf32>
    %491 = arith.mulf %490, %444 : vector<8x32xf32>
    %492 = vector.extract_strided_slice %487 {offsets = [0, 0], sizes = [8, 32], strides = [1, 1]} : vector<8x128xf32> to vector<8x32xf32>
    %493 = arith.mulf %492, %489 : vector<8x32xf32>
    %494 = arith.addf %491, %493 : vector<8x32xf32>
    %495 = vector.extract_strided_slice %487 {offsets = [0, 96], sizes = [8, 32], strides = [1, 1]} : vector<8x128xf32> to vector<8x32xf32>
    %496 = math.tanh %494 : vector<8x32xf32>
    %497 = arith.mulf %495, %496 : vector<8x32xf32>
    %cst_153 = arith.constant dense<0.000000e+00> : vector<8x128xf32>
    %498 = tpu.matmul %497, %3, %cst_153 {dimension_numbers = #tpu.dot_dimension_numbers<[1], [0], [0], [1], [0, 0, 1, 1], [], []>} : vector<8x32xf32>, vector<32x128xf32>, vector<8x128xf32> -> vector<8x128xf32>
    %499 = vector.broadcast %5 : vector<1x128xf32> to vector<8x128xf32>
    %500 = arith.addf %498, %499 : vector<8x128xf32>
    %c7_154 = arith.constant 7 : index
    %c0_155 = arith.constant 0 : index
    %c0_156 = arith.constant 0 : index
    %501 = vector.load %arg9[%c7_154, %c0_155, %c0_156] : memref<8x8x128xf32, #tpu.memory_space<vmem>>, vector<1x8x128xf32>
    %502 = vector.shape_cast %501 : vector<1x8x128xf32> to vector<8x128xf32>
    %503 = vector.shape_cast %500 : vector<8x128xf32> to vector<1x8x128xf32>
    tpu.vector_store %arg9[%c7_154, %c0_155, %c0_156], %503 {strides = array<i32>} : memref<8x8x128xf32, #tpu.memory_space<vmem>>, vector<1x8x128xf32>,
    return
  }
}

</mosaic_0001>

<llo_original>
// kernel: _seq2seq_jit.1
$region0: #{_seq2seq_jit.1}
  #allocation0 [shape = 'u32[]', space=smem, size = 0x4, offset = 0x4, fixed_abs, tag = 'smem constant byte address 0x4 - core index']
  #allocation1 [shape = 'u32[144,128]{1,0:T(1,128)}', space=vmem, size = 0x12000, scoped, tag = 'internal scratch']
  %s0 = inlined_call_operand.vmem [shape: s32[7], index: 0, kind: input, shape index: {}]
  %s1 = inlined_call_operand.vmem [shape: f32[8,8,128], index: 1, kind: input, shape index: {}]
  %s2 = inlined_call_operand.vmem [shape: f32[32,128], index: 2, kind: input, shape index: {}]
  %s3 = inlined_call_operand.vmem [shape: f32[7,8,128], index: 3, kind: input, shape index: {}]
  %s4 = inlined_call_operand.vmem [shape: f32[128,128], index: 4, kind: input, shape index: {}]
  %s5 = inlined_call_operand.vmem [shape: f32[32,128], index: 5, kind: input, shape index: {}]
  %s6 = inlined_call_operand.vmem [shape: f32[1,128], index: 6, kind: input, shape index: {}]
  %s7 = inlined_call_operand.vmem [shape: f32[32,128], index: 7, kind: input, shape index: {}]
  %s8 = inlined_call_operand.vmem [shape: f32[1,128], index: 8, kind: input, shape index: {}]
  %s9 = inlined_call_operand.vmem [shape: f32[8,8,128], index: 9, kind: output, shape index: {}]
  %s10 = sld [smem:[#allocation0]]
  $region50: #{_seq2seq_jit.1} parent=0
    _
  %s12 = ssub.s32 1, %s10
  %s13 = scalar_select 0, %s12, %s10
  $region1: #{_seq2seq_jit.1} parent=0
    #allocation2 [shape = 'u8[512]{0}', space=smem, size = 0x200, scoped, tag = 'input window, operand 0, single buffered']
    #allocation3 [shape = 's32[1]{0}', space=sflag, size = 0x4, scoped, tag = 'scoped memory for _seq2seq_jit.1']
    %14 = vsyncpa [#allocation3], 0
    // Predicated region
    $region2: #{_seq2seq_jit.1} parent=1 // pred_check
      _
    $region3: #{_seq2seq_jit.1} parent=1 // pred_check_branch
      %16 = sbr.rel (0) target = $region5
    $region4: #{_seq2seq_jit.1} parent=1 // pred_region
      %s18 = ssub.s32 16, 16
      %19 = vsyncadd [#allocation3], %s18
      %s21 = sshll.u32 %s0, 4
      %s22 = int_to_ptr.vmem [resolvable:$true] %s21
      %24 = dma.vmem_to_smem %s22, 16, [#allocation2], [#allocation3]
    $region5: #{_seq2seq_jit.1} parent=1 // pred_fallthru
      _
    // Predicated region
    $region6: #{_seq2seq_jit.1} parent=1 // pred_check
      _
    $region7: #{_seq2seq_jit.1} parent=1 // pred_check_branch
      %26 = sbr.rel (0) target = $region9
    $region8: #{_seq2seq_jit.1} parent=1 // pred_region
      _
    $region9: #{_seq2seq_jit.1} parent=1 // pred_fallthru
      _
    // Predicated region
    $region10: #{_seq2seq_jit.1} parent=1 // pred_check
      _
    $region11: #{_seq2seq_jit.1} parent=1 // pred_check_branch
      %28 = sbr.rel (0) target = $region13
    $region12: #{_seq2seq_jit.1} parent=1 // pred_region
      _
    $region13: #{_seq2seq_jit.1} parent=1 // pred_fallthru
      _
    // Predicated region
    $region14: #{_seq2seq_jit.1} parent=1 // pred_check
      _
    $region15: #{_seq2seq_jit.1} parent=1 // pred_check_branch
      %30 = sbr.rel (0) target = $region17
    $region16: #{_seq2seq_jit.1} parent=1 // pred_region
      _
    $region17: #{_seq2seq_jit.1} parent=1 // pred_fallthru
      _
    // Predicated region
    $region18: #{_seq2seq_jit.1} parent=1 // pred_check
      _
    $region19: #{_seq2seq_jit.1} parent=1 // pred_check_branch
      %32 = sbr.rel (0) target = $region21
    $region20: #{_seq2seq_jit.1} parent=1 // pred_region
      _
    $region21: #{_seq2seq_jit.1} parent=1 // pred_fallthru
      _
    // Predicated region
    $region22: #{_seq2seq_jit.1} parent=1 // pred_check
      _
    $region23: #{_seq2seq_jit.1} parent=1 // pred_check_branch
      %34 = sbr.rel (0) target = $region25
    $region24: #{_seq2seq_jit.1} parent=1 // pred_region
      _
    $region25: #{_seq2seq_jit.1} parent=1 // pred_fallthru
      _
    // Predicated region
    $region26: #{_seq2seq_jit.1} parent=1 // pred_check
      _
    $region27: #{_seq2seq_jit.1} parent=1 // pred_check_branch
      %36 = sbr.rel (0) target = $region29
    $region28: #{_seq2seq_jit.1} parent=1 // pred_region
      _
    $region29: #{_seq2seq_jit.1} parent=1 // pred_fallthru
      _
    // Predicated region
    $region30: #{_seq2seq_jit.1} parent=1 // pred_check
      _
    $region31: #{_seq2seq_jit.1} parent=1 // pred_check_branch
      %38 = sbr.rel (0) target = $region33
    $region32: #{_seq2seq_jit.1} parent=1 // pred_region
      _
    $region33: #{_seq2seq_jit.1} parent=1 // pred_fallthru
      _
    // Predicated region
    $region34: #{_seq2seq_jit.1} parent=1 // pred_check
      _
    $region35: #{_seq2seq_jit.1} parent=1 // pred_check_branch
      %40 = sbr.rel (0) target = $region37
    $region36: #{_seq2seq_jit.1} parent=1 // pred_region
      _
    $region37: #{_seq2seq_jit.1} parent=1 // pred_fallthru
      _
    // Predicated region
    $region38: #{_seq2seq_jit.1} parent=1 // pred_check
      _
    $region39: #{_seq2seq_jit.1} parent=1 // pred_check_branch
      %42 = sbr.rel (0) target = $region41
    $region40: #{_seq2seq_jit.1} parent=1 // pred_region
      %43 = dma.done [#allocation3], 16
    $region41: #{_seq2seq_jit.1} parent=1 // pred_fallthru
      _
    %44 = sfence
    %v45 = vld [vmem:[%s2] sm:$0xff]
    %v46 = vld [vmem:[%s2 + $0x8] sm:$0xff]
    %v47 = vld [vmem:[%s2 + $0x10] sm:$0xff]
    %v48 = vld [vmem:[%s2 + $0x18] sm:$0xff]
    %v49 = vld [vmem:[%s5] sm:$0xff]
    %v50 = vld [vmem:[%s5 + $0x8] sm:$0xff]
    %v51 = vld [vmem:[%s5 + $0x10] sm:$0xff]
    %v52 = vld [vmem:[%s5 + $0x18] sm:$0xff]
    %v53 = vld [vmem:[%s4] sm:$0xff]
    %v54 = vld [vmem:[%s4 + $0x8] sm:$0xff]
    %v55 = vld [vmem:[%s4 + $0x10] sm:$0xff]
    %v56 = vld [vmem:[%s4 + $0x18] sm:$0xff]
    %v57 = vld [vmem:[%s4 + $0x20] sm:$0xff]
    %v58 = vld [vmem:[%s4 + $0x28] sm:$0xff]
    %v59 = vld [vmem:[%s4 + $0x30] sm:$0xff]
    %v60 = vld [vmem:[%s4 + $0x38] sm:$0xff]
    %v61 = vld [vmem:[%s4 + $0x40] sm:$0xff]
    %v62 = vld [vmem:[%s4 + $0x48] sm:$0xff]
    %v63 = vld [vmem:[%s4 + $0x50] sm:$0xff]
    %v64 = vld [vmem:[%s4 + $0x58] sm:$0xff]
    %v65 = vld [vmem:[%s4 + $0x60] sm:$0xff]
    %v66 = vld [vmem:[%s4 + $0x68] sm:$0xff]
    %v67 = vld [vmem:[%s4 + $0x70] sm:$0xff]
    %v68 = vld [vmem:[%s4 + $0x78] sm:$0xff]
    %v69 = vld [vmem:[%s7] sm:$0xff]
    %v70 = vld [vmem:[%s7 + $0x8] sm:$0xff]
    %v71 = vld [vmem:[%s7 + $0x10] sm:$0xff]
    %v72 = vld [vmem:[%s7 + $0x18] sm:$0xff]
    %v73 = vld [vmem:[%s6] sm:$0x1]
    %v74 = vld [vmem:[%s8] sm:$0x1]
    %v75 = vld [vmem:[%s1] sm:$0xff]
    %vm76 = vcmask 261120
    %v78 = vsel %vm76, 0.0, 0
    %80 = vmatprep.subr.mxu0 0.0
    %81 = vmatpush1.msra.mxu0 %v45
    %82 = vmatprep.subr.mxu0 0.0
    %83 = vmatpush1.msra.mxu0 %v46
    %84 = vmatprep.subr.mxu0 0.0
    %85 = vmatpush1.msra.mxu0 %v47
    %86 = vmatprep.subr.mxu0 0.0
    %87 = vmatpush1.msra.mxu0 %v48
    %88 = vmatprep.subr.mxu0 0.0
    %89 = vmatpush1.msra.mxu0 0.0
    %90 = vmatprep.subr.mxu0 0.0
    %91 = vmatpush1.msra.mxu0 0.0
    %92 = vmatprep.subr.mxu0 0.0
    %93 = vmatpush1.msra.mxu0 0.0
    %94 = vmatprep.subr.mxu0 0.0
    %95 = vmatpush1.msra.mxu0 0.0
    %96 = vmatprep.subr.mxu0 0.0
    %97 = vmatpush1.msra.mxu0 0.0
    %98 = vmatprep.subr.mxu0 0.0
    %99 = vmatpush1.msra.mxu0 0.0
    %100 = vmatprep.subr.mxu0 0.0
    %101 = vmatpush1.msra.mxu0 0.0
    %102 = vmatprep.subr.mxu0 0.0
    %103 = vmatpush1.msra.mxu0 0.0
    %104 = vmatprep.subr.mxu0 0.0
    %105 = vmatpush1.msra.mxu0 0.0
    %106 = vmatprep.subr.mxu0 0.0
    %107 = vmatpush1.msra.mxu0 0.0
    %108 = vmatprep.subr.mxu0 0.0
    %109 = vmatpush1.msra.mxu0 0.0
    %110 = vmatprep.subr.mxu0 0.0
    %111 = vmatpush1.msra.mxu0 0.0
    %112 = vmatprep.subr.mxu0 0.0
    %113 = vmatpush1.msra.mxu0 0.0
    %114 = vmatprep.subr.mxu0 0.0
    %115 = vmatpush1.msra.mxu0 0.0
    %116 = vmatprep.subr.mxu0 0.0
    %117 = vmatpush1.msra.mxu0 0.0
    %118 = vmatprep.subr.mxu0 0.0
    %119 = vmatpush1.msra.mxu0 0.0
    %120 = vmatprep.subr.mxu0 0.0
    %121 = vmatpush1.msra.mxu0 0.0
    %122 = vmatprep.subr.mxu0 0.0
    %123 = vmatpush1.msra.mxu0 0.0
    %124 = vmatprep.subr.mxu0 0.0
    %125 = vmatpush1.msra.mxu0 0.0
    %126 = vmatprep.subr.mxu0 0.0
    %127 = vmatpush1.msra.mxu0 0.0
    %128 = vmatprep.subr.mxu0 0.0
    %129 = vmatpush1.msra.mxu0 0.0
    %130 = vmatprep.subr.mxu0 0.0
    %131 = vmatpush1.msra.mxu0 0.0
    %132 = vmatprep.subr.mxu0 0.0
    %133 = vmatpush1.msra.mxu0 0.0
    %134 = vmatprep.subr.mxu0 0.0
    %135 = vmatpush1.msra.mxu0 0.0
    %136 = vmatprep.subr.mxu0 0.0
    %137 = vmatpush1.msra.mxu0 0.0
    %138 = vmatprep.subr.mxu0 0.0
    %139 = vmatpush1.msra.mxu0 0.0
    %140 = vmatprep.subr.mxu0 0.0
    %141 = vmatpush1.msra.mxu0 0.0
    %142 = vmatprep.subr.mxu0 0.0
    %143 = vmatpush1.msra.mxu0 0.0
    %144 = vmatprep.mubr.f32.mxu0 0.0
    %145 = vmatmul.mubr.f32.gmra.mrb[0].mxu0 %v78
    %v146 = vpop.f32.mrb[0].mxu0
    %v147 = vadd.f32 0.0, %v146
    %v148 = vpop.f32.mrb[0].mxu0
    %149 = vdwg.mxu0
    %v150 = vadd.f32 %v75, %v147
    %v151 = vxor.u32 %v150, 2147483648
    %v152 = vmul.f32 %v151, 1.442695
    %v153 = vpow.pop %v152
    %v154 = vadd.f32 %v153, 1.0
    %v155 = vrcp.pop %v154
    %v156 = vmul.f32 1.0, %v155
    %v157 = vtanh.pop %v150
    %v158 = vmul.f32 %v156, 0.0
    %160 = vrot.lane.b32.xlu0 %v157, 64
    %v161 = vpop.permute.xlu0 %160
    %v163 = vmul.f32 %v156, %v161
    %165 = vrot.lane.b32.xlu0 %v163, 32
    %v166 = vpop.permute.xlu0 %165
    %v168 = vadd.f32 %v158, %v166
    %v169 = vtanh.pop %v168
    %171 = vrot.lane.b32.xlu0 %v169, 64
    %v172 = vpop.permute.xlu0 %171
    %v174 = vmul.f32 %v156, %v172
    %s175 = scalar_lea.vmem %s1, 8
    %v176 = vld [vmem:[%s175] sm:$0xff]
    %178 = vrot.lane.b32.xlu0 %v174, 32
    %v179 = vpop.permute.xlu0 %178
    %v180 = vsel %vm76, %v179, 0
    %182 = vmatprep.subr.mxu0 0.0
    %183 = vmatpush1.msra.mxu0 %v45
    %184 = vmatprep.subr.mxu0 0.0
    %185 = vmatpush1.msra.mxu0 %v46
    %186 = vmatprep.subr.mxu0 0.0
    %187 = vmatpush1.msra.mxu0 %v47
    %188 = vmatprep.subr.mxu0 0.0
    %189 = vmatpush1.msra.mxu0 %v48
    %190 = vmatprep.subr.mxu0 0.0
    %191 = vmatpush1.msra.mxu0 0.0
    %192 = vmatprep.subr.mxu0 0.0
    %193 = vmatpush1.msra.mxu0 0.0
    %194 = vmatprep.subr.mxu0 0.0
    %195 = vmatpush1.msra.mxu0 0.0
    %196 = vmatprep.subr.mxu0 0.0
    %197 = vmatpush1.msra.mxu0 0.0
    %198 = vmatprep.subr.mxu0 0.0
    %199 = vmatpush1.msra.mxu0 0.0
    %200 = vmatprep.subr.mxu0 0.0
    %201 = vmatpush1.msra.mxu0 0.0
    %202 = vmatprep.subr.mxu0 0.0
    %203 = vmatpush1.msra.mxu0 0.0
    %204 = vmatprep.subr.mxu0 0.0
    %205 = vmatpush1.msra.mxu0 0.0
    %206 = vmatprep.subr.mxu0 0.0
    %207 = vmatpush1.msra.mxu0 0.0
    %208 = vmatprep.subr.mxu0 0.0
    %209 = vmatpush1.msra.mxu0 0.0
    %210 = vmatprep.subr.mxu0 0.0
    %211 = vmatpush1.msra.mxu0 0.0
    %212 = vmatprep.subr.mxu0 0.0
    %213 = vmatpush1.msra.mxu0 0.0
    %214 = vmatprep.subr.mxu0 0.0
    %215 = vmatpush1.msra.mxu0 0.0
    %216 = vmatprep.subr.mxu0 0.0
    %217 = vmatpush1.msra.mxu0 0.0
    %218 = vmatprep.subr.mxu0 0.0
    %219 = vmatpush1.msra.mxu0 0.0
    %220 = vmatprep.subr.mxu0 0.0
    %221 = vmatpush1.msra.mxu0 0.0
    %222 = vmatprep.subr.mxu0 0.0
    %223 = vmatpush1.msra.mxu0 0.0
    %224 = vmatprep.subr.mxu0 0.0
    %225 = vmatpush1.msra.mxu0 0.0
    %226 = vmatprep.subr.mxu0 0.0
    %227 = vmatpush1.msra.mxu0 0.0
    %228 = vmatprep.subr.mxu0 0.0
    %229 = vmatpush1.msra.mxu0 0.0
    %230 = vmatprep.subr.mxu0 0.0
    %231 = vmatpush1.msra.mxu0 0.0
    %232 = vmatprep.subr.mxu0 0.0
    %233 = vmatpush1.msra.mxu0 0.0
    %234 = vmatprep.subr.mxu0 0.0
    %235 = vmatpush1.msra.mxu0 0.0
    %236 = vmatprep.subr.mxu0 0.0
    %237 = vmatpush1.msra.mxu0 0.0
    %238 = vmatprep.subr.mxu0 0.0
    %239 = vmatpush1.msra.mxu0 0.0
    %240 = vmatprep.subr.mxu0 0.0
    %241 = vmatpush1.msra.mxu0 0.0
    %242 = vmatprep.subr.mxu0 0.0
    %243 = vmatpush1.msra.mxu0 0.0
    %244 = vmatprep.subr.mxu0 0.0
    %245 = vmatpush1.msra.mxu0 0.0
    %246 = vmatprep.mubr.f32.mxu0 0.0
    %247 = vmatmul.mubr.f32.gmra.mrb[0].mxu0 %v180
    %v248 = vpop.f32.mrb[0].mxu0
    %v249 = vadd.f32 0.0, %v248
    %v250 = vpop.f32.mrb[0].mxu0
    %251 = vdwg.mxu0
    %v252 = vadd.f32 %v176, %v249
    %v253 = vxor.u32 %v252, 2147483648
    %v254 = vmul.f32 %v253, 1.442695
    %v255 = vpow.pop %v254
    %v256 = vadd.f32 %v255, 1.0
    %v257 = vrcp.pop %v256
    %v258 = vmul.f32 1.0, %v257
    %v259 = vtanh.pop %v252
    %v260 = vmul.f32 %v258, %v168
    %262 = vrot.lane.b32.xlu0 %v259, 64
    %v263 = vpop.permute.xlu0 %262
    %v265 = vmul.f32 %v258, %v263
    %267 = vrot.lane.b32.xlu0 %v265, 32
    %v268 = vpop.permute.xlu0 %267
    %v270 = vadd.f32 %v260, %v268
    %v271 = vtanh.pop %v270
    %273 = vrot.lane.b32.xlu0 %v271, 64
    %v274 = vpop.permute.xlu0 %273
    %v276 = vmul.f32 %v258, %v274
    %s277 = scalar_lea.vmem %s1, 16
    %v278 = vld [vmem:[%s277] sm:$0xff]
    %280 = vrot.lane.b32.xlu0 %v276, 32
    %v281 = vpop.permute.xlu0 %280
    %v282 = vsel %vm76, %v281, 0
    %284 = vmatprep.subr.mxu0 0.0
    %285 = vmatpush1.msra.mxu0 %v45
    %286 = vmatprep.subr.mxu0 0.0
    %287 = vmatpush1.msra.mxu0 %v46
    %288 = vmatprep.subr.mxu0 0.0
    %289 = vmatpush1.msra.mxu0 %v47
    %290 = vmatprep.subr.mxu0 0.0
    %291 = vmatpush1.msra.mxu0 %v48
    %292 = vmatprep.subr.mxu0 0.0
    %293 = vmatpush1.msra.mxu0 0.0
    %294 = vmatprep.subr.mxu0 0.0
    %295 = vmatpush1.msra.mxu0 0.0
    %296 = vmatprep.subr.mxu0 0.0
    %297 = vmatpush1.msra.mxu0 0.0
    %298 = vmatprep.subr.mxu0 0.0
    %299 = vmatpush1.msra.mxu0 0.0
    %300 = vmatprep.subr.mxu0 0.0
    %301 = vmatpush1.msra.mxu0 0.0
    %302 = vmatprep.subr.mxu0 0.0
    %303 = vmatpush1.msra.mxu0 0.0
    %304 = vmatprep.subr.mxu0 0.0
    %305 = vmatpush1.msra.mxu0 0.0
    %306 = vmatprep.subr.mxu0 0.0
    %307 = vmatpush1.msra.mxu0 0.0
    %308 = vmatprep.subr.mxu0 0.0
    %309 = vmatpush1.msra.mxu0 0.0
    %310 = vmatprep.subr.mxu0 0.0
    %311 = vmatpush1.msra.mxu0 0.0
    %312 = vmatprep.subr.mxu0 0.0
    %313 = vmatpush1.msra.mxu0 0.0
    %314 = vmatprep.subr.mxu0 0.0
    %315 = vmatpush1.msra.mxu0 0.0
    %316 = vmatprep.subr.mxu0 0.0
    %317 = vmatpush1.msra.mxu0 0.0
    %318 = vmatprep.subr.mxu0 0.0
    %319 = vmatpush1.msra.mxu0 0.0
    %320 = vmatprep.subr.mxu0 0.0
    %321 = vmatpush1.msra.mxu0 0.0
    %322 = vmatprep.subr.mxu0 0.0
    %323 = vmatpush1.msra.mxu0 0.0
    %324 = vmatprep.subr.mxu0 0.0
    %325 = vmatpush1.msra.mxu0 0.0
    %326 = vmatprep.subr.mxu0 0.0
    %327 = vmatpush1.msra.mxu0 0.0
    %328 = vmatprep.subr.mxu0 0.0
    %329 = vmatpush1.msra.mxu0 0.0
    %330 = vmatprep.subr.mxu0 0.0
    %331 = vmatpush1.msra.mxu0 0.0
    %332 = vmatprep.subr.mxu0 0.0
    %333 = vmatpush1.msra.mxu0 0.0
    %334 = vmatprep.subr.mxu0 0.0
    %335 = vmatpush1.msra.mxu0 0.0
    %336 = vmatprep.subr.mxu0 0.0
    %337 = vmatpush1.msra.mxu0 0.0
    %338 = vmatprep.subr.mxu0 0.0
    %339 = vmatpush1.msra.mxu0 0.0
    %340 = vmatprep.subr.mxu0 0.0
    %341 = vmatpush1.msra.mxu0 0.0
    %342 = vmatprep.subr.mxu0 0.0
    %343 = vmatpush1.msra.mxu0 0.0
    %344 = vmatprep.subr.mxu0 0.0
    %345 = vmatpush1.msra.mxu0 0.0
    %346 = vmatprep.subr.mxu0 0.0
    %347 = vmatpush1.msra.mxu0 0.0
    %348 = vmatprep.mubr.f32.mxu0 0.0
    %349 = vmatmul.mubr.f32.gmra.mrb[0].mxu0 %v282
    %v350 = vpop.f32.mrb[0].mxu0
    %v351 = vadd.f32 0.0, %v350
    %v352 = vpop.f32.mrb[0].mxu0
    %353 = vdwg.mxu0
    %v354 = vadd.f32 %v278, %v351
    %v355 = vxor.u32 %v354, 2147483648
    %v356 = vmul.f32 %v355, 1.442695
    %v357 = vpow.pop %v356
    %v358 = vadd.f32 %v357, 1.0
    %v359 = vrcp.pop %v358
    %v360 = vmul.f32 1.0, %v359
    %v361 = vtanh.pop %v354
    %v362 = vmul.f32 %v360, %v270
    %364 = vrot.lane.b32.xlu0 %v361, 64
    %v365 = vpop.permute.xlu0 %364
    %v367 = vmul.f32 %v360, %v365
    %369 = vrot.lane.b32.xlu0 %v367, 32
    %v370 = vpop.permute.xlu0 %369
    %v372 = vadd.f32 %v362, %v370
    %v373 = vtanh.pop %v372
    %375 = vrot.lane.b32.xlu0 %v373, 64
    %v376 = vpop.permute.xlu0 %375
    %v378 = vmul.f32 %v360, %v376
    %s379 = scalar_lea.vmem %s1, 24
    %v380 = vld [vmem:[%s379] sm:$0xff]
    %382 = vrot.lane.b32.xlu0 %v378, 32
    %v383 = vpop.permute.xlu0 %382
    %v384 = vsel %vm76, %v383, 0
    %386 = vmatprep.subr.mxu0 0.0
    %387 = vmatpush1.msra.mxu0 %v45
    %388 = vmatprep.subr.mxu0 0.0
    %389 = vmatpush1.msra.mxu0 %v46
    %390 = vmatprep.subr.mxu0 0.0
    %391 = vmatpush1.msra.mxu0 %v47
    %392 = vmatprep.subr.mxu0 0.0
    %393 = vmatpush1.msra.mxu0 %v48
    %394 = vmatprep.subr.mxu0 0.0
    %395 = vmatpush1.msra.mxu0 0.0
    %396 = vmatprep.subr.mxu0 0.0
    %397 = vmatpush1.msra.mxu0 0.0
    %398 = vmatprep.subr.mxu0 0.0
    %399 = vmatpush1.msra.mxu0 0.0
    %400 = vmatprep.subr.mxu0 0.0
    %401 = vmatpush1.msra.mxu0 0.0
    %402 = vmatprep.subr.mxu0 0.0
    %403 = vmatpush1.msra.mxu0 0.0
    %404 = vmatprep.subr.mxu0 0.0
    %405 = vmatpush1.msra.mxu0 0.0
    %406 = vmatprep.subr.mxu0 0.0
    %407 = vmatpush1.msra.mxu0 0.0
    %408 = vmatprep.subr.mxu0 0.0
    %409 = vmatpush1.msra.mxu0 0.0
    %410 = vmatprep.subr.mxu0 0.0
    %411 = vmatpush1.msra.mxu0 0.0
    %412 = vmatprep.subr.mxu0 0.0
    %413 = vmatpush1.msra.mxu0 0.0
    %414 = vmatprep.subr.mxu0 0.0
    %415 = vmatpush1.msra.mxu0 0.0
    %416 = vmatprep.subr.mxu0 0.0
    %417 = vmatpush1.msra.mxu0 0.0
    %418 = vmatprep.subr.mxu0 0.0
    %419 = vmatpush1.msra.mxu0 0.0
    %420 = vmatprep.subr.mxu0 0.0
    %421 = vmatpush1.msra.mxu0 0.0
    %422 = vmatprep.subr.mxu0 0.0
    %423 = vmatpush1.msra.mxu0 0.0
    %424 = vmatprep.subr.mxu0 0.0
    %425 = vmatpush1.msra.mxu0 0.0
    %426 = vmatprep.subr.mxu0 0.0
    %427 = vmatpush1.msra.mxu0 0.0
    %428 = vmatprep.subr.mxu0 0.0
    %429 = vmatpush1.msra.mxu0 0.0
    %430 = vmatprep.subr.mxu0 0.0
    %431 = vmatpush1.msra.mxu0 0.0
    %432 = vmatprep.subr.mxu0 0.0
    %433 = vmatpush1.msra.mxu0 0.0
    %434 = vmatprep.subr.mxu0 0.0
    %435 = vmatpush1.msra.mxu0 0.0
    %436 = vmatprep.subr.mxu0 0.0
    %437 = vmatpush1.msra.mxu0 0.0
    %438 = vmatprep.subr.mxu0 0.0
    %439 = vmatpush1.msra.mxu0 0.0
    %440 = vmatprep.subr.mxu0 0.0
    %441 = vmatpush1.msra.mxu0 0.0
    %442 = vmatprep.subr.mxu0 0.0
    %443 = vmatpush1.msra.mxu0 0.0
    %444 = vmatprep.subr.mxu0 0.0
    %445 = vmatpush1.msra.mxu0 0.0
    %446 = vmatprep.subr.mxu0 0.0
    %447 = vmatpush1.msra.mxu0 0.0
    %448 = vmatprep.subr.mxu0 0.0
    %449 = vmatpush1.msra.mxu0 0.0
    %450 = vmatprep.mubr.f32.mxu0 0.0
    %451 = vmatmul.mubr.f32.gmra.mrb[0].mxu0 %v384
    %v452 = vpop.f32.mrb[0].mxu0
    %v453 = vadd.f32 0.0, %v452
    %v454 = vpop.f32.mrb[0].mxu0
    %455 = vdwg.mxu0
    %v456 = vadd.f32 %v380, %v453
    %v457 = vxor.u32 %v456, 2147483648
    %v458 = vmul.f32 %v457, 1.442695
    %v459 = vpow.pop %v458
    %v460 = vadd.f32 %v459, 1.0
    %v461 = vrcp.pop %v460
    %v462 = vmul.f32 1.0, %v461
    %v463 = vtanh.pop %v456
    %v464 = vmul.f32 %v462, %v372
    %466 = vrot.lane.b32.xlu0 %v463, 64
    %v467 = vpop.permute.xlu0 %466
    %v469 = vmul.f32 %v462, %v467
    %471 = vrot.lane.b32.xlu0 %v469, 32
    %v472 = vpop.permute.xlu0 %471
    %v474 = vadd.f32 %v464, %v472
    %v475 = vtanh.pop %v474
    %477 = vrot.lane.b32.xlu0 %v475, 64
    %v478 = vpop.permute.xlu0 %477
    %v480 = vmul.f32 %v462, %v478
    %s481 = scalar_lea.vmem %s1, 32
    %v482 = vld [vmem:[%s481] sm:$0xff]
    %484 = vrot.lane.b32.xlu0 %v480, 32
    %v485 = vpop.permute.xlu0 %484
    %v486 = vsel %vm76, %v485, 0
    %488 = vmatprep.subr.mxu0 0.0
    %489 = vmatpush1.msra.mxu0 %v45
    %490 = vmatprep.subr.mxu0 0.0
    %491 = vmatpush1.msra.mxu0 %v46
    %492 = vmatprep.subr.mxu0 0.0
    %493 = vmatpush1.msra.mxu0 %v47
    %494 = vmatprep.subr.mxu0 0.0
    %495 = vmatpush1.msra.mxu0 %v48
    %496 = vmatprep.subr.mxu0 0.0
    %497 = vmatpush1.msra.mxu0 0.0
    %498 = vmatprep.subr.mxu0 0.0
    %499 = vmatpush1.msra.mxu0 0.0
    %500 = vmatprep.subr.mxu0 0.0
    %501 = vmatpush1.msra.mxu0 0.0
    %502 = vmatprep.subr.mxu0 0.0
    %503 = vmatpush1.msra.mxu0 0.0
    %504 = vmatprep.subr.mxu0 0.0
    %505 = vmatpush1.msra.mxu0 0.0
    %506 = vmatprep.subr.mxu0 0.0
    %507 = vmatpush1.msra.mxu0 0.0
    %508 = vmatprep.subr.mxu0 0.0
    %509 = vmatpush1.msra.mxu0 0.0
    %510 = vmatprep.subr.mxu0 0.0
    %511 = vmatpush1.msra.mxu0 0.0
    %512 = vmatprep.subr.mxu0 0.0
    %513 = vmatpush1.msra.mxu0 0.0
    %514 = vmatprep.subr.mxu0 0.0
    %515 = vmatpush1.msra.mxu0 0.0
    %516 = vmatprep.subr.mxu0 0.0
    %517 = vmatpush1.msra.mxu0 0.0
    %518 = vmatprep.subr.mxu0 0.0
    %519 = vmatpush1.msra.mxu0 0.0
    %520 = vmatprep.subr.mxu0 0.0
    %521 = vmatpush1.msra.mxu0 0.0
    %522 = vmatprep.subr.mxu0 0.0
    %523 = vmatpush1.msra.mxu0 0.0
    %524 = vmatprep.subr.mxu0 0.0
    %525 = vmatpush1.msra.mxu0 0.0
    %526 = vmatprep.subr.mxu0 0.0
    %527 = vmatpush1.msra.mxu0 0.0
    %528 = vmatprep.subr.mxu0 0.0
    %529 = vmatpush1.msra.mxu0 0.0
    %530 = vmatprep.subr.mxu0 0.0
    %531 = vmatpush1.msra.mxu0 0.0
    %532 = vmatprep.subr.mxu0 0.0
    %533 = vmatpush1.msra.mxu0 0.0
    %534 = vmatprep.subr.mxu0 0.0
    %535 = vmatpush1.msra.mxu0 0.0
    %536 = vmatprep.subr.mxu0 0.0
    %537 = vmatpush1.msra.mxu0 0.0
    %538 = vmatprep.subr.mxu0 0.0
    %539 = vmatpush1.msra.mxu0 0.0
    %540 = vmatprep.subr.mxu0 0.0
    %541 = vmatpush1.msra.mxu0 0.0
    %542 = vmatprep.subr.mxu0 0.0
    %543 = vmatpush1.msra.mxu0 0.0
    %544 = vmatprep.subr.mxu0 0.0
    %545 = vmatpush1.msra.mxu0 0.0
    %546 = vmatprep.subr.mxu0 0.0
    %547 = vmatpush1.msra.mxu0 0.0
    %548 = vmatprep.subr.mxu0 0.0
    %549 = vmatpush1.msra.mxu0 0.0
    %550 = vmatprep.subr.mxu0 0.0
    %551 = vmatpush1.msra.mxu0 0.0
    %552 = vmatprep.mubr.f32.mxu0 0.0
    %553 = vmatmul.mubr.f32.gmra.mrb[0].mxu0 %v486
    %v554 = vpop.f32.mrb[0].mxu0
    %v555 = vadd.f32 0.0, %v554
    %v556 = vpop.f32.mrb[0].mxu0
    %557 = vdwg.mxu0
    %v558 = vadd.f32 %v482, %v555
    %v559 = vxor.u32 %v558, 2147483648
    %v560 = vmul.f32 %v559, 1.442695
    %v561 = vpow.pop %v560
    %v562 = vadd.f32 %v561, 1.0
    %v563 = vrcp.pop %v562
    %v564 = vmul.f32 1.0, %v563
    %v565 = vtanh.pop %v558
    %v566 = vmul.f32 %v564, %v474
    %568 = vrot.lane.b32.xlu0 %v565, 64
    %v569 = vpop.permute.xlu0 %568
    %v571 = vmul.f32 %v564, %v569
    %573 = vrot.lane.b32.xlu0 %v571, 32
    %v574 = vpop.permute.xlu0 %573
    %v576 = vadd.f32 %v566, %v574
    %v577 = vtanh.pop %v576
    %579 = vrot.lane.b32.xlu0 %v577, 64
    %v580 = vpop.permute.xlu0 %579
    %v582 = vmul.f32 %v564, %v580
    %s583 = scalar_lea.vmem %s1, 40
    %v584 = vld [vmem:[%s583] sm:$0xff]
    %586 = vrot.lane.b32.xlu0 %v582, 32
    %v587 = vpop.permute.xlu0 %586
    %v588 = vsel %vm76, %v587, 0
    %590 = vmatprep.subr.mxu0 0.0
    %591 = vmatpush1.msra.mxu0 %v45
    %592 = vmatprep.subr.mxu0 0.0
    %593 = vmatpush1.msra.mxu0 %v46
    %594 = vmatprep.subr.mxu0 0.0
    %595 = vmatpush1.msra.mxu0 %v47
    %596 = vmatprep.subr.mxu0 0.0
    %597 = vmatpush1.msra.mxu0 %v48
    %598 = vmatprep.subr.mxu0 0.0
    %599 = vmatpush1.msra.mxu0 0.0
    %600 = vmatprep.subr.mxu0 0.0
    %601 = vmatpush1.msra.mxu0 0.0
    %602 = vmatprep.subr.mxu0 0.0
    %603 = vmatpush1.msra.mxu0 0.0
    %604 = vmatprep.subr.mxu0 0.0
    %605 = vmatpush1.msra.mxu0 0.0
    %606 = vmatprep.subr.mxu0 0.0
    %607 = vmatpush1.msra.mxu0 0.0
    %608 = vmatprep.subr.mxu0 0.0
    %609 = vmatpush1.msra.mxu0 0.0
    %610 = vmatprep.subr.mxu0 0.0
    %611 = vmatpush1.msra.mxu0 0.0
    %612 = vmatprep.subr.mxu0 0.0
    %613 = vmatpush1.msra.mxu0 0.0
    %614 = vmatprep.subr.mxu0 0.0
    %615 = vmatpush1.msra.mxu0 0.0
    %616 = vmatprep.subr.mxu0 0.0
    %617 = vmatpush1.msra.mxu0 0.0
    %618 = vmatprep.subr.mxu0 0.0
    %619 = vmatpush1.msra.mxu0 0.0
    %620 = vmatprep.subr.mxu0 0.0
    %621 = vmatpush1.msra.mxu0 0.0
    %622 = vmatprep.subr.mxu0 0.0
    %623 = vmatpush1.msra.mxu0 0.0
    %624 = vmatprep.subr.mxu0 0.0
    %625 = vmatpush1.msra.mxu0 0.0
    %626 = vmatprep.subr.mxu0 0.0
    %627 = vmatpush1.msra.mxu0 0.0
    %628 = vmatprep.subr.mxu0 0.0
    %629 = vmatpush1.msra.mxu0 0.0
    %630 = vmatprep.subr.mxu0 0.0
    %631 = vmatpush1.msra.mxu0 0.0
    %632 = vmatprep.subr.mxu0 0.0
    %633 = vmatpush1.msra.mxu0 0.0
    %634 = vmatprep.subr.mxu0 0.0
    %635 = vmatpush1.msra.mxu0 0.0
    %636 = vmatprep.subr.mxu0 0.0
    %637 = vmatpush1.msra.mxu0 0.0
    %638 = vmatprep.subr.mxu0 0.0
    %639 = vmatpush1.msra.mxu0 0.0
    %640 = vmatprep.subr.mxu0 0.0
    %641 = vmatpush1.msra.mxu0 0.0
    %642 = vmatprep.subr.mxu0 0.0
    %643 = vmatpush1.msra.mxu0 0.0
    %644 = vmatprep.subr.mxu0 0.0
    %645 = vmatpush1.msra.mxu0 0.0
    %646 = vmatprep.subr.mxu0 0.0
    %647 = vmatpush1.msra.mxu0 0.0
    %648 = vmatprep.subr.mxu0 0.0
    %649 = vmatpush1.msra.mxu0 0.0
    %650 = vmatprep.subr.mxu0 0.0
    %651 = vmatpush1.msra.mxu0 0.0
    %652 = vmatprep.subr.mxu0 0.0
    %653 = vmatpush1.msra.mxu0 0.0
    %654 = vmatprep.mubr.f32.mxu0 0.0
    %655 = vmatmul.mubr.f32.gmra.mrb[0].mxu0 %v588
    %v656 = vpop.f32.mrb[0].mxu0
    %v657 = vadd.f32 0.0, %v656
    %v658 = vpop.f32.mrb[0].mxu0
    %659 = vdwg.mxu0
    %v660 = vadd.f32 %v584, %v657
    %v661 = vxor.u32 %v660, 2147483648
    %v662 = vmul.f32 %v661, 1.442695
    %v663 = vpow.pop %v662
    %v664 = vadd.f32 %v663, 1.0
    %v665 = vrcp.pop %v664
    %v666 = vmul.f32 1.0, %v665
    %v667 = vtanh.pop %v660
    %v668 = vmul.f32 %v666, %v576
    %670 = vrot.lane.b32.xlu0 %v667, 64
    %v671 = vpop.permute.xlu0 %670
    %v673 = vmul.f32 %v666, %v671
    %675 = vrot.lane.b32.xlu0 %v673, 32
    %v676 = vpop.permute.xlu0 %675
    %v678 = vadd.f32 %v668, %v676
    %v679 = vtanh.pop %v678
    %681 = vrot.lane.b32.xlu0 %v679, 64
    %v682 = vpop.permute.xlu0 %681
    %v684 = vmul.f32 %v666, %v682
    %s685 = scalar_lea.vmem %s1, 48
    %v686 = vld [vmem:[%s685] sm:$0xff]
    %688 = vrot.lane.b32.xlu0 %v684, 32
    %v689 = vpop.permute.xlu0 %688
    %v690 = vsel %vm76, %v689, 0
    %692 = vmatprep.subr.mxu0 0.0
    %693 = vmatpush1.msra.mxu0 %v45
    %694 = vmatprep.subr.mxu0 0.0
    %695 = vmatpush1.msra.mxu0 %v46
    %696 = vmatprep.subr.mxu0 0.0
    %697 = vmatpush1.msra.mxu0 %v47
    %698 = vmatprep.subr.mxu0 0.0
    %699 = vmatpush1.msra.mxu0 %v48
    %700 = vmatprep.subr.mxu0 0.0
    %701 = vmatpush1.msra.mxu0 0.0
    %702 = vmatprep.subr.mxu0 0.0
    %703 = vmatpush1.msra.mxu0 0.0
    %704 = vmatprep.subr.mxu0 0.0
    %705 = vmatpush1.msra.mxu0 0.0
    %706 = vmatprep.subr.mxu0 0.0
    %707 = vmatpush1.msra.mxu0 0.0
    %708 = vmatprep.subr.mxu0 0.0
    %709 = vmatpush1.msra.mxu0 0.0
    %710 = vmatprep.subr.mxu0 0.0
    %711 = vmatpush1.msra.mxu0 0.0
    %712 = vmatprep.subr.mxu0 0.0
    %713 = vmatpush1.msra.mxu0 0.0
    %714 = vmatprep.subr.mxu0 0.0
    %715 = vmatpush1.msra.mxu0 0.0
    %716 = vmatprep.subr.mxu0 0.0
    %717 = vmatpush1.msra.mxu0 0.0
    %718 = vmatprep.subr.mxu0 0.0
    %719 = vmatpush1.msra.mxu0 0.0
    %720 = vmatprep.subr.mxu0 0.0
    %721 = vmatpush1.msra.mxu0 0.0
    %722 = vmatprep.subr.mxu0 0.0
    %723 = vmatpush1.msra.mxu0 0.0
    %724 = vmatprep.subr.mxu0 0.0
    %725 = vmatpush1.msra.mxu0 0.0
    %726 = vmatprep.subr.mxu0 0.0
    %727 = vmatpush1.msra.mxu0 0.0
    %728 = vmatprep.subr.mxu0 0.0
    %729 = vmatpush1.msra.mxu0 0.0
    %730 = vmatprep.subr.mxu0 0.0
    %731 = vmatpush1.msra.mxu0 0.0
    %732 = vmatprep.subr.mxu0 0.0
    %733 = vmatpush1.msra.mxu0 0.0
    %734 = vmatprep.subr.mxu0 0.0
    %735 = vmatpush1.msra.mxu0 0.0
    %736 = vmatprep.subr.mxu0 0.0
    %737 = vmatpush1.msra.mxu0 0.0
    %738 = vmatprep.subr.mxu0 0.0
    %739 = vmatpush1.msra.mxu0 0.0
    %740 = vmatprep.subr.mxu0 0.0
    %741 = vmatpush1.msra.mxu0 0.0
    %742 = vmatprep.subr.mxu0 0.0
    %743 = vmatpush1.msra.mxu0 0.0
    %744 = vmatprep.subr.mxu0 0.0
    %745 = vmatpush1.msra.mxu0 0.0
    %746 = vmatprep.subr.mxu0 0.0
    %747 = vmatpush1.msra.mxu0 0.0
    %748 = vmatprep.subr.mxu0 0.0
    %749 = vmatpush1.msra.mxu0 0.0
    %750 = vmatprep.subr.mxu0 0.0
    %751 = vmatpush1.msra.mxu0 0.0
    %752 = vmatprep.subr.mxu0 0.0
    %753 = vmatpush1.msra.mxu0 0.0
    %754 = vmatprep.subr.mxu0 0.0
    %755 = vmatpush1.msra.mxu0 0.0
    %756 = vmatprep.mubr.f32.mxu0 0.0
    %757 = vmatmul.mubr.f32.gmra.mrb[0].mxu0 %v690
    %v758 = vpop.f32.mrb[0].mxu0
    %v759 = vadd.f32 0.0, %v758
    %v760 = vpop.f32.mrb[0].mxu0
    %761 = vdwg.mxu0
    %v762 = vadd.f32 %v686, %v759
    %v763 = vxor.u32 %v762, 2147483648
    %v764 = vmul.f32 %v763, 1.442695
    %v765 = vpow.pop %v764
    %v766 = vadd.f32 %v765, 1.0
    %v767 = vrcp.pop %v766
    %v768 = vmul.f32 1.0, %v767
    %v769 = vtanh.pop %v762
    %v770 = vmul.f32 %v768, %v678
    %772 = vrot.lane.b32.xlu0 %v769, 64
    %v773 = vpop.permute.xlu0 %772
    %v775 = vmul.f32 %v768, %v773
    %777 = vrot.lane.b32.xlu0 %v775, 32
    %v778 = vpop.permute.xlu0 %777
    %v780 = vadd.f32 %v770, %v778
    %v781 = vtanh.pop %v780
    %783 = vrot.lane.b32.xlu0 %v781, 64
    %v784 = vpop.permute.xlu0 %783
    %v786 = vmul.f32 %v768, %v784
    %s787 = scalar_lea.vmem %s1, 56
    %v788 = vld [vmem:[%s787] sm:$0xff]
    %790 = vrot.lane.b32.xlu0 %v786, 32
    %v791 = vpop.permute.xlu0 %790
    %v792 = vsel %vm76, %v791, 0
    %794 = vmatprep.subr.mxu0 0.0
    %795 = vmatpush1.msra.mxu0 %v45
    %796 = vmatprep.subr.mxu0 0.0
    %797 = vmatpush1.msra.mxu0 %v46
    %798 = vmatprep.subr.mxu0 0.0
    %799 = vmatpush1.msra.mxu0 %v47
    %800 = vmatprep.subr.mxu0 0.0
    %801 = vmatpush1.msra.mxu0 %v48
    %802 = vmatprep.subr.mxu0 0.0
    %803 = vmatpush1.msra.mxu0 0.0
    %804 = vmatprep.subr.mxu0 0.0
    %805 = vmatpush1.msra.mxu0 0.0
    %806 = vmatprep.subr.mxu0 0.0
    %807 = vmatpush1.msra.mxu0 0.0
    %808 = vmatprep.subr.mxu0 0.0
    %809 = vmatpush1.msra.mxu0 0.0
    %810 = vmatprep.subr.mxu0 0.0
    %811 = vmatpush1.msra.mxu0 0.0
    %812 = vmatprep.subr.mxu0 0.0
    %813 = vmatpush1.msra.mxu0 0.0
    %814 = vmatprep.subr.mxu0 0.0
    %815 = vmatpush1.msra.mxu0 0.0
    %816 = vmatprep.subr.mxu0 0.0
    %817 = vmatpush1.msra.mxu0 0.0
    %818 = vmatprep.subr.mxu0 0.0
    %819 = vmatpush1.msra.mxu0 0.0
    %820 = vmatprep.subr.mxu0 0.0
    %821 = vmatpush1.msra.mxu0 0.0
    %822 = vmatprep.subr.mxu0 0.0
    %823 = vmatpush1.msra.mxu0 0.0
    %824 = vmatprep.subr.mxu0 0.0
    %825 = vmatpush1.msra.mxu0 0.0
    %826 = vmatprep.subr.mxu0 0.0
    %827 = vmatpush1.msra.mxu0 0.0
    %828 = vmatprep.subr.mxu0 0.0
    %829 = vmatpush1.msra.mxu0 0.0
    %830 = vmatprep.subr.mxu0 0.0
    %831 = vmatpush1.msra.mxu0 0.0
    %832 = vmatprep.subr.mxu0 0.0
    %833 = vmatpush1.msra.mxu0 0.0
    %834 = vmatprep.subr.mxu0 0.0
    %835 = vmatpush1.msra.mxu0 0.0
    %836 = vmatprep.subr.mxu0 0.0
    %837 = vmatpush1.msra.mxu0 0.0
    %838 = vmatprep.subr.mxu0 0.0
    %839 = vmatpush1.msra.mxu0 0.0
    %840 = vmatprep.subr.mxu0 0.0
    %841 = vmatpush1.msra.mxu0 0.0
    %842 = vmatprep.subr.mxu0 0.0
    %843 = vmatpush1.msra.mxu0 0.0
    %844 = vmatprep.subr.mxu0 0.0
    %845 = vmatpush1.msra.mxu0 0.0
    %846 = vmatprep.subr.mxu0 0.0
    %847 = vmatpush1.msra.mxu0 0.0
    %848 = vmatprep.subr.mxu0 0.0
    %849 = vmatpush1.msra.mxu0 0.0
    %850 = vmatprep.subr.mxu0 0.0
    %851 = vmatpush1.msra.mxu0 0.0
    %852 = vmatprep.subr.mxu0 0.0
    %853 = vmatpush1.msra.mxu0 0.0
    %854 = vmatprep.subr.mxu0 0.0
    %855 = vmatpush1.msra.mxu0 0.0
    %856 = vmatprep.subr.mxu0 0.0
    %857 = vmatpush1.msra.mxu0 0.0
    %858 = vmatprep.mubr.f32.mxu0 0.0
    %859 = vmatmul.mubr.f32.gmra.mrb[0].mxu0 %v792
    %v860 = vpop.f32.mrb[0].mxu0
    %v861 = vadd.f32 0.0, %v860
    %v862 = vpop.f32.mrb[0].mxu0
    %863 = vdwg.mxu0
    %v864 = vadd.f32 %v788, %v861
    %v865 = vxor.u32 %v864, 2147483648
    %v866 = vmul.f32 %v865, 1.442695
    %v867 = vpow.pop %v866
    %v868 = vadd.f32 %v867, 1.0
    %v869 = vrcp.pop %v868
    %v870 = vmul.f32 1.0, %v869
    %v871 = vtanh.pop %v864
    %v872 = vmul.f32 %v870, %v780
    %874 = vrot.lane.b32.xlu0 %v871, 64
    %v875 = vpop.permute.xlu0 %874
    %v877 = vmul.f32 %v870, %v875
    %879 = vrot.lane.b32.xlu0 %v877, 32
    %v880 = vpop.permute.xlu0 %879
    %v882 = vadd.f32 %v872, %v880
    %v883 = vtanh.pop %v882
    %885 = vrot.lane.b32.xlu0 %v883, 64
    %v886 = vpop.permute.xlu0 %885
    %v888 = vmul.f32 %v870, %v886
    %889 = vst [vmem:[%s9] sm:$0xff] 0.0
    %v890 = vlaneseq
    %v891 = vand.u32 %v890, 127
    %v892 = vcvt.s32.f32 %v891
    %vm893 = vcmp.lt.s32.totalorder %v891, 16
    %s894 = sld [smem:[#allocation2]]
    %s895 = scvt.s32.f32 %s894
    %v896 = vld [vmem:[%s3] sm:$0xff]
    %v897 = vstv %s895
    %v898 = vmul.f32 %v897, %v896
    %s899 = ssub.f32 1.0, %s895
    %v900 = vstv %s899
    %v901 = vmul.f32 %v900, 0.0
    %v902 = vadd.f32 %v898, %v901
    %904 = vrot.lane.b32.xlu0 %v888, 32
    %v905 = vpop.permute.xlu0 %904
    %v906 = vsel %vm76, %v905, 0
    %908 = vmatprep.subr.mxu0 0.0
    %909 = vmatpush1.msra.mxu0 %v49
    %910 = vmatprep.subr.mxu0 0.0
    %911 = vmatpush1.msra.mxu0 %v50
    %912 = vmatprep.subr.mxu0 0.0
    %913 = vmatpush1.msra.mxu0 %v51
    %914 = vmatprep.subr.mxu0 0.0
    %915 = vmatpush1.msra.mxu0 %v52
    %916 = vmatprep.subr.mxu0 0.0
    %917 = vmatpush1.msra.mxu0 0.0
    %918 = vmatprep.subr.mxu0 0.0
    %919 = vmatpush1.msra.mxu0 0.0
    %920 = vmatprep.subr.mxu0 0.0
    %921 = vmatpush1.msra.mxu0 0.0
    %922 = vmatprep.subr.mxu0 0.0
    %923 = vmatpush1.msra.mxu0 0.0
    %924 = vmatprep.subr.mxu0 0.0
    %925 = vmatpush1.msra.mxu0 0.0
    %926 = vmatprep.subr.mxu0 0.0
    %927 = vmatpush1.msra.mxu0 0.0
    %928 = vmatprep.subr.mxu0 0.0
    %929 = vmatpush1.msra.mxu0 0.0
    %930 = vmatprep.subr.mxu0 0.0
    %931 = vmatpush1.msra.mxu0 0.0
    %932 = vmatprep.subr.mxu0 0.0
    %933 = vmatpush1.msra.mxu0 0.0
    %934 = vmatprep.subr.mxu0 0.0
    %935 = vmatpush1.msra.mxu0 0.0
    %936 = vmatprep.subr.mxu0 0.0
    %937 = vmatpush1.msra.mxu0 0.0
    %938 = vmatprep.subr.mxu0 0.0
    %939 = vmatpush1.msra.mxu0 0.0
    %940 = vmatprep.subr.mxu0 0.0
    %941 = vmatpush1.msra.mxu0 0.0
    %942 = vmatprep.subr.mxu0 0.0
    %943 = vmatpush1.msra.mxu0 0.0
    %944 = vmatprep.subr.mxu0 0.0
    %945 = vmatpush1.msra.mxu0 0.0
    %946 = vmatprep.subr.mxu0 0.0
    %947 = vmatpush1.msra.mxu0 0.0
    %948 = vmatprep.subr.mxu0 0.0
    %949 = vmatpush1.msra.mxu0 0.0
    %950 = vmatprep.subr.mxu0 0.0
    %951 = vmatpush1.msra.mxu0 0.0
    %952 = vmatprep.subr.mxu0 0.0
    %953 = vmatpush1.msra.mxu0 0.0
    %954 = vmatprep.subr.mxu0 0.0
    %955 = vmatpush1.msra.mxu0 0.0
    %956 = vmatprep.subr.mxu0 0.0
    %957 = vmatpush1.msra.mxu0 0.0
    %958 = vmatprep.subr.mxu0 0.0
    %959 = vmatpush1.msra.mxu0 0.0
    %960 = vmatprep.subr.mxu0 0.0
    %961 = vmatpush1.msra.mxu0 0.0
    %962 = vmatprep.subr.mxu0 0.0
    %963 = vmatpush1.msra.mxu0 0.0
    %964 = vmatprep.subr.mxu0 0.0
    %965 = vmatpush1.msra.mxu0 0.0
    %966 = vmatprep.subr.mxu0 0.0
    %967 = vmatpush1.msra.mxu0 0.0
    %968 = vmatprep.subr.mxu0 0.0
    %969 = vmatpush1.msra.mxu0 0.0
    %970 = vmatprep.subr.mxu0 0.0
    %971 = vmatpush1.msra.mxu0 0.0
    %972 = vmatprep.mubr.f32.mxu0 0.0
    %973 = vmatmul.mubr.f32.gmra.mrb[0].mxu0 %v906
    %v974 = vpop.f32.mrb[0].mxu0
    %v975 = vadd.f32 0.0, %v974
    %v976 = vpop.f32.mrb[0].mxu0
    %977 = vdwg.mxu0
    %v978 = vadd.f32 %v902, %v975
    %v980 = vlaneseq
    %v981 = vshrl.u32 %v980, 7
    %v982 = vsub.s32 0, %v981
    %v983 = vrot.slane %v73, %v982
    %v985 = vadd.f32 %v978, %v983
    %v986 = vxor.u32 %v985, 2147483648
    %v987 = vmul.f32 %v986, 1.442695
    %v988 = vpow.pop %v987
    %v989 = vadd.f32 %v988, 1.0
    %v990 = vrcp.pop %v989
    %v991 = vmul.f32 1.0, %v990
    %v992 = vtanh.pop %v985
    %v993 = vmul.f32 %v991, %v882
    %995 = vrot.lane.b32.xlu0 %v992, 64
    %v996 = vpop.permute.xlu0 %995
    %v998 = vmul.f32 %v991, %v996
    %1000 = vrot.lane.b32.xlu0 %v998, 32
    %v1001 = vpop.permute.xlu0 %1000
    %v1003 = vadd.f32 %v993, %v1001
    %v1004 = vtanh.pop %v1003
    %1006 = vrot.lane.b32.xlu0 %v1004, 64
    %v1007 = vpop.permute.xlu0 %1006
    %v1009 = vmul.f32 %v991, %v1007
    %v1011 = vlaneseq
    %v1012 = vshrl.u32 %v1011, 7
    %v1013 = vsub.s32 0, %v1012
    %v1014 = vrot.slane %v74, %v1013
    %1017 = vrot.lane.b32.xlu0 %v1009, 32
    %v1018 = vpop.permute.xlu0 %1017
    %v1019 = vsel %vm76, %v1018, 0
    %1021 = vmatprep.subr.mxu0 0.0
    %1022 = vmatpush1.msra.mxu0 %v69
    %1023 = vmatprep.subr.mxu0 0.0
    %1024 = vmatpush1.msra.mxu0 %v70
    %1025 = vmatprep.subr.mxu0 0.0
    %1026 = vmatpush1.msra.mxu0 %v71
    %1027 = vmatprep.subr.mxu0 0.0
    %1028 = vmatpush1.msra.mxu0 %v72
    %1029 = vmatprep.subr.mxu0 0.0
    %1030 = vmatpush1.msra.mxu0 0.0
    %1031 = vmatprep.subr.mxu0 0.0
    %1032 = vmatpush1.msra.mxu0 0.0
    %1033 = vmatprep.subr.mxu0 0.0
    %1034 = vmatpush1.msra.mxu0 0.0
    %1035 = vmatprep.subr.mxu0 0.0
    %1036 = vmatpush1.msra.mxu0 0.0
    %1037 = vmatprep.subr.mxu0 0.0
    %1038 = vmatpush1.msra.mxu0 0.0
    %1039 = vmatprep.subr.mxu0 0.0
    %1040 = vmatpush1.msra.mxu0 0.0
    %1041 = vmatprep.subr.mxu0 0.0
    %1042 = vmatpush1.msra.mxu0 0.0
    %1043 = vmatprep.subr.mxu0 0.0
    %1044 = vmatpush1.msra.mxu0 0.0
    %1045 = vmatprep.subr.mxu0 0.0
    %1046 = vmatpush1.msra.mxu0 0.0
    %1047 = vmatprep.subr.mxu0 0.0
    %1048 = vmatpush1.msra.mxu0 0.0
    %1049 = vmatprep.subr.mxu0 0.0
    %1050 = vmatpush1.msra.mxu0 0.0
    %1051 = vmatprep.subr.mxu0 0.0
    %1052 = vmatpush1.msra.mxu0 0.0
    %1053 = vmatprep.subr.mxu0 0.0
    %1054 = vmatpush1.msra.mxu0 0.0
    %1055 = vmatprep.subr.mxu0 0.0
    %1056 = vmatpush1.msra.mxu0 0.0
    %1057 = vmatprep.subr.mxu0 0.0
    %1058 = vmatpush1.msra.mxu0 0.0
    %1059 = vmatprep.subr.mxu0 0.0
    %1060 = vmatpush1.msra.mxu0 0.0
    %1061 = vmatprep.subr.mxu0 0.0
    %1062 = vmatpush1.msra.mxu0 0.0
    %1063 = vmatprep.subr.mxu0 0.0
    %1064 = vmatpush1.msra.mxu0 0.0
    %1065 = vmatprep.subr.mxu0 0.0
    %1066 = vmatpush1.msra.mxu0 0.0
    %1067 = vmatprep.subr.mxu0 0.0
    %1068 = vmatpush1.msra.mxu0 0.0
    %1069 = vmatprep.subr.mxu0 0.0
    %1070 = vmatpush1.msra.mxu0 0.0
    %1071 = vmatprep.subr.mxu0 0.0
    %1072 = vmatpush1.msra.mxu0 0.0
    %1073 = vmatprep.subr.mxu0 0.0
    %1074 = vmatpush1.msra.mxu0 0.0
    %1075 = vmatprep.subr.mxu0 0.0
    %1076 = vmatpush1.msra.mxu0 0.0
    %1077 = vmatprep.subr.mxu0 0.0
    %1078 = vmatpush1.msra.mxu0 0.0
    %1079 = vmatprep.subr.mxu0 0.0
    %1080 = vmatpush1.msra.mxu0 0.0
    %1081 = vmatprep.subr.mxu0 0.0
    %1082 = vmatpush1.msra.mxu0 0.0
    %1083 = vmatprep.subr.mxu0 0.0
    %1084 = vmatpush1.msra.mxu0 0.0
    %1085 = vmatprep.mubr.f32.mxu0 0.0
    %1086 = vmatmul.mubr.f32.gmra.mrb[0].mxu0 %v1019
    %v1087 = vpop.f32.mrb[0].mxu0
    %v1088 = vadd.f32 %v1014, %v1087
    %v1089 = vpop.f32.mrb[0].mxu0
    %1090 = vdwg.mxu0
    %s1091 = scalar_lea.vmem %s9, 8
    %1092 = vst [vmem:[%s1091] sm:$0xff] %v1088
    %v1093 = vsel %vm893, %v1088, -1e+30
    %1094 = vmax.xlane.f32.xlu0 %v1093
    %v1095 = vpop.xlane.xlu0 %1094
    %vm1096 = vcmp.eq.f32.partialorder %v1093, %v1095
    %v1097 = vsel %vm1096, %v892, 128.0
    %1098 = vmin.xlane.f32.xlu0 %v1097
    %v1099 = vpop.xlane.xlu0 %1098
    %vm1100 = vcmp.eq.f32.partialorder %v892, %v1099
    %v1101 = vsel %vm1100, 1, 0
    %v1102 = vcvt.s32.f32 %v1101
    %1103 = vmatprep.subr.mxu0 0.0
    %1104 = vmatpush1.msra.mxu0 %v53
    %1105 = vmatprep.subr.mxu0 0.0
    %1106 = vmatpush1.msra.mxu0 %v54
    %1107 = vmatprep.subr.mxu0 0.0
    %1108 = vmatpush1.msra.mxu0 %v55
    %1109 = vmatprep.subr.mxu0 0.0
    %1110 = vmatpush1.msra.mxu0 %v56
    %1111 = vmatprep.subr.mxu0 0.0
    %1112 = vmatpush1.msra.mxu0 %v57
    %1113 = vmatprep.subr.mxu0 0.0
    %1114 = vmatpush1.msra.mxu0 %v58
    %1115 = vmatprep.subr.mxu0 0.0
    %1116 = vmatpush1.msra.mxu0 %v59
    %1117 = vmatprep.subr.mxu0 0.0
    %1118 = vmatpush1.msra.mxu0 %v60
    %1119 = vmatprep.subr.mxu0 0.0
    %1120 = vmatpush1.msra.mxu0 %v61
    %1121 = vmatprep.subr.mxu0 0.0
    %1122 = vmatpush1.msra.mxu0 %v62
    %1123 = vmatprep.subr.mxu0 0.0
    %1124 = vmatpush1.msra.mxu0 %v63
    %1125 = vmatprep.subr.mxu0 0.0
    %1126 = vmatpush1.msra.mxu0 %v64
    %1127 = vmatprep.subr.mxu0 0.0
    %1128 = vmatpush1.msra.mxu0 %v65
    %1129 = vmatprep.subr.mxu0 0.0
    %1130 = vmatpush1.msra.mxu0 %v66
    %1131 = vmatprep.subr.mxu0 0.0
    %1132 = vmatpush1.msra.mxu0 %v67
    %1133 = vmatprep.subr.mxu0 0.0
    %1134 = vmatpush1.msra.mxu0 %v68
    %1135 = vmatprep.subr.mxu0 0.0
    %1136 = vmatpush1.msra.mxu0 0.0
    %1137 = vmatprep.subr.mxu0 0.0
    %1138 = vmatpush1.msra.mxu0 0.0
    %1139 = vmatprep.subr.mxu0 0.0
    %1140 = vmatpush1.msra.mxu0 0.0
    %1141 = vmatprep.subr.mxu0 0.0
    %1142 = vmatpush1.msra.mxu0 0.0
    %1143 = vmatprep.subr.mxu0 0.0
    %1144 = vmatpush1.msra.mxu0 0.0
    %1145 = vmatprep.subr.mxu0 0.0
    %1146 = vmatpush1.msra.mxu0 0.0
    %1147 = vmatprep.subr.mxu0 0.0
    %1148 = vmatpush1.msra.mxu0 0.0
    %1149 = vmatprep.subr.mxu0 0.0
    %1150 = vmatpush1.msra.mxu0 0.0
    %1151 = vmatprep.subr.mxu0 0.0
    %1152 = vmatpush1.msra.mxu0 0.0
    %1153 = vmatprep.subr.mxu0 0.0
    %1154 = vmatpush1.msra.mxu0 0.0
    %1155 = vmatprep.subr.mxu0 0.0
    %1156 = vmatpush1.msra.mxu0 0.0
    %1157 = vmatprep.subr.mxu0 0.0
    %1158 = vmatpush1.msra.mxu0 0.0
    %1159 = vmatprep.subr.mxu0 0.0
    %1160 = vmatpush1.msra.mxu0 0.0
    %1161 = vmatprep.subr.mxu0 0.0
    %1162 = vmatpush1.msra.mxu0 0.0
    %1163 = vmatprep.subr.mxu0 0.0
    %1164 = vmatpush1.msra.mxu0 0.0
    %1165 = vmatprep.subr.mxu0 0.0
    %1166 = vmatpush1.msra.mxu0 0.0
    %1167 = vmatprep.mubr.f32.mxu0 0.0
    %1168 = vmatmul.mubr.f32.gmra.mrb[0].mxu0 %v1102
    %v1169 = vpop.f32.mrb[0].mxu0
    %v1170 = vadd.f32 0.0, %v1169
    %v1171 = vpop.f32.mrb[0].mxu0
    %1172 = vdwg.mxu0
    %s1173 = sld [smem:[#allocation2 + $0x1]]
    %s1174 = scvt.s32.f32 %s1173
    %s1175 = scalar_lea.vmem %s3, 8
    %v1176 = vld [vmem:[%s1175] sm:$0xff]
    %v1177 = vstv %s1174
    %v1178 = vmul.f32 %v1177, %v1176
    %s1179 = ssub.f32 1.0, %s1174
    %v1180 = vstv %s1179
    %v1181 = vmul.f32 %v1180, %v1170
    %v1182 = vadd.f32 %v1178, %v1181
    %1183 = vmatprep.subr.mxu0 0.0
    %1184 = vmatpush1.msra.mxu0 %v49
    %1185 = vmatprep.subr.mxu0 0.0
    %1186 = vmatpush1.msra.mxu0 %v50
    %1187 = vmatprep.subr.mxu0 0.0
    %1188 = vmatpush1.msra.mxu0 %v51
    %1189 = vmatprep.subr.mxu0 0.0
    %1190 = vmatpush1.msra.mxu0 %v52
    %1191 = vmatprep.subr.mxu0 0.0
    %1192 = vmatpush1.msra.mxu0 0.0
    %1193 = vmatprep.subr.mxu0 0.0
    %1194 = vmatpush1.msra.mxu0 0.0
    %1195 = vmatprep.subr.mxu0 0.0
    %1196 = vmatpush1.msra.mxu0 0.0
    %1197 = vmatprep.subr.mxu0 0.0
    %1198 = vmatpush1.msra.mxu0 0.0
    %1199 = vmatprep.subr.mxu0 0.0
    %1200 = vmatpush1.msra.mxu0 0.0
    %1201 = vmatprep.subr.mxu0 0.0
    %1202 = vmatpush1.msra.mxu0 0.0
    %1203 = vmatprep.subr.mxu0 0.0
    %1204 = vmatpush1.msra.mxu0 0.0
    %1205 = vmatprep.subr.mxu0 0.0
    %1206 = vmatpush1.msra.mxu0 0.0
    %1207 = vmatprep.subr.mxu0 0.0
    %1208 = vmatpush1.msra.mxu0 0.0
    %1209 = vmatprep.subr.mxu0 0.0
    %1210 = vmatpush1.msra.mxu0 0.0
    %1211 = vmatprep.subr.mxu0 0.0
    %1212 = vmatpush1.msra.mxu0 0.0
    %1213 = vmatprep.subr.mxu0 0.0
    %1214 = vmatpush1.msra.mxu0 0.0
    %1215 = vmatprep.subr.mxu0 0.0
    %1216 = vmatpush1.msra.mxu0 0.0
    %1217 = vmatprep.subr.mxu0 0.0
    %1218 = vmatpush1.msra.mxu0 0.0
    %1219 = vmatprep.subr.mxu0 0.0
    %1220 = vmatpush1.msra.mxu0 0.0
    %1221 = vmatprep.subr.mxu0 0.0
    %1222 = vmatpush1.msra.mxu0 0.0
    %1223 = vmatprep.subr.mxu0 0.0
    %1224 = vmatpush1.msra.mxu0 0.0
    %1225 = vmatprep.subr.mxu0 0.0
    %1226 = vmatpush1.msra.mxu0 0.0
    %1227 = vmatprep.subr.mxu0 0.0
    %1228 = vmatpush1.msra.mxu0 0.0
    %1229 = vmatprep.subr.mxu0 0.0
    %1230 = vmatpush1.msra.mxu0 0.0
    %1231 = vmatprep.subr.mxu0 0.0
    %1232 = vmatpush1.msra.mxu0 0.0
    %1233 = vmatprep.subr.mxu0 0.0
    %1234 = vmatpush1.msra.mxu0 0.0
    %1235 = vmatprep.subr.mxu0 0.0
    %1236 = vmatpush1.msra.mxu0 0.0
    %1237 = vmatprep.subr.mxu0 0.0
    %1238 = vmatpush1.msra.mxu0 0.0
    %1239 = vmatprep.subr.mxu0 0.0
    %1240 = vmatpush1.msra.mxu0 0.0
    %1241 = vmatprep.subr.mxu0 0.0
    %1242 = vmatpush1.msra.mxu0 0.0
    %1243 = vmatprep.subr.mxu0 0.0
    %1244 = vmatpush1.msra.mxu0 0.0
    %1245 = vmatprep.subr.mxu0 0.0
    %1246 = vmatpush1.msra.mxu0 0.0
    %1247 = vmatprep.mubr.f32.mxu0 0.0
    %1248 = vmatmul.mubr.f32.gmra.mrb[0].mxu0 %v1019
    %v1249 = vpop.f32.mrb[0].mxu0
    %v1250 = vadd.f32 0.0, %v1249
    %v1251 = vpop.f32.mrb[0].mxu0
    %1252 = vdwg.mxu0
    %v1253 = vadd.f32 %v1182, %v1250
    %v1254 = vadd.f32 %v1253, %v983
    %v1255 = vxor.u32 %v1254, 2147483648
    %v1256 = vmul.f32 %v1255, 1.442695
    %v1257 = vpow.pop %v1256
    %v1258 = vadd.f32 %v1257, 1.0
    %v1259 = vrcp.pop %v1258
    %v1260 = vmul.f32 1.0, %v1259
    %v1261 = vtanh.pop %v1254
    %v1262 = vmul.f32 %v1260, %v1003
    %1264 = vrot.lane.b32.xlu0 %v1261, 64
    %v1265 = vpop.permute.xlu0 %1264
    %v1267 = vmul.f32 %v1260, %v1265
    %1269 = vrot.lane.b32.xlu0 %v1267, 32
    %v1270 = vpop.permute.xlu0 %1269
    %v1272 = vadd.f32 %v1262, %v1270
    %v1273 = vtanh.pop %v1272
    %1275 = vrot.lane.b32.xlu0 %v1273, 64
    %v1276 = vpop.permute.xlu0 %1275
    %v1278 = vmul.f32 %v1260, %v1276
    %1280 = vrot.lane.b32.xlu0 %v1278, 32
    %v1281 = vpop.permute.xlu0 %1280
    %v1282 = vsel %vm76, %v1281, 0
    %1284 = vmatprep.subr.mxu0 0.0
    %1285 = vmatpush1.msra.mxu0 %v69
    %1286 = vmatprep.subr.mxu0 0.0
    %1287 = vmatpush1.msra.mxu0 %v70
    %1288 = vmatprep.subr.mxu0 0.0
    %1289 = vmatpush1.msra.mxu0 %v71
    %1290 = vmatprep.subr.mxu0 0.0
    %1291 = vmatpush1.msra.mxu0 %v72
    %1292 = vmatprep.subr.mxu0 0.0
    %1293 = vmatpush1.msra.mxu0 0.0
    %1294 = vmatprep.subr.mxu0 0.0
    %1295 = vmatpush1.msra.mxu0 0.0
    %1296 = vmatprep.subr.mxu0 0.0
    %1297 = vmatpush1.msra.mxu0 0.0
    %1298 = vmatprep.subr.mxu0 0.0
    %1299 = vmatpush1.msra.mxu0 0.0
    %1300 = vmatprep.subr.mxu0 0.0
    %1301 = vmatpush1.msra.mxu0 0.0
    %1302 = vmatprep.subr.mxu0 0.0
    %1303 = vmatpush1.msra.mxu0 0.0
    %1304 = vmatprep.subr.mxu0 0.0
    %1305 = vmatpush1.msra.mxu0 0.0
    %1306 = vmatprep.subr.mxu0 0.0
    %1307 = vmatpush1.msra.mxu0 0.0
    %1308 = vmatprep.subr.mxu0 0.0
    %1309 = vmatpush1.msra.mxu0 0.0
    %1310 = vmatprep.subr.mxu0 0.0
    %1311 = vmatpush1.msra.mxu0 0.0
    %1312 = vmatprep.subr.mxu0 0.0
    %1313 = vmatpush1.msra.mxu0 0.0
    %1314 = vmatprep.subr.mxu0 0.0
    %1315 = vmatpush1.msra.mxu0 0.0
    %1316 = vmatprep.subr.mxu0 0.0
    %1317 = vmatpush1.msra.mxu0 0.0
    %1318 = vmatprep.subr.mxu0 0.0
    %1319 = vmatpush1.msra.mxu0 0.0
    %1320 = vmatprep.subr.mxu0 0.0
    %1321 = vmatpush1.msra.mxu0 0.0
    %1322 = vmatprep.subr.mxu0 0.0
    %1323 = vmatpush1.msra.mxu0 0.0
    %1324 = vmatprep.subr.mxu0 0.0
    %1325 = vmatpush1.msra.mxu0 0.0
    %1326 = vmatprep.subr.mxu0 0.0
    %1327 = vmatpush1.msra.mxu0 0.0
    %1328 = vmatprep.subr.mxu0 0.0
    %1329 = vmatpush1.msra.mxu0 0.0
    %1330 = vmatprep.subr.mxu0 0.0
    %1331 = vmatpush1.msra.mxu0 0.0
    %1332 = vmatprep.subr.mxu0 0.0
    %1333 = vmatpush1.msra.mxu0 0.0
    %1334 = vmatprep.subr.mxu0 0.0
    %1335 = vmatpush1.msra.mxu0 0.0
    %1336 = vmatprep.subr.mxu0 0.0
    %1337 = vmatpush1.msra.mxu0 0.0
    %1338 = vmatprep.subr.mxu0 0.0
    %1339 = vmatpush1.msra.mxu0 0.0
    %1340 = vmatprep.subr.mxu0 0.0
    %1341 = vmatpush1.msra.mxu0 0.0
    %1342 = vmatprep.subr.mxu0 0.0
    %1343 = vmatpush1.msra.mxu0 0.0
    %1344 = vmatprep.subr.mxu0 0.0
    %1345 = vmatpush1.msra.mxu0 0.0
    %1346 = vmatprep.subr.mxu0 0.0
    %1347 = vmatpush1.msra.mxu0 0.0
    %1348 = vmatprep.mubr.f32.mxu0 0.0
    %1349 = vmatmul.mubr.f32.gmra.mrb[0].mxu0 %v1282
    %v1350 = vpop.f32.mrb[0].mxu0
    %v1351 = vadd.f32 %v1014, %v1350
    %v1352 = vpop.f32.mrb[0].mxu0
    %1353 = vdwg.mxu0
    %s1354 = scalar_lea.vmem %s9, 16
    %1355 = vst [vmem:[%s1354] sm:$0xff] %v1351
    %v1356 = vsel %vm893, %v1351, -1e+30
    %1357 = vmax.xlane.f32.xlu0 %v1356
    %v1358 = vpop.xlane.xlu0 %1357
    %vm1359 = vcmp.eq.f32.partialorder %v1356, %v1358
    %v1360 = vsel %vm1359, %v892, 128.0
    %1361 = vmin.xlane.f32.xlu0 %v1360
    %v1362 = vpop.xlane.xlu0 %1361
    %vm1363 = vcmp.eq.f32.partialorder %v892, %v1362
    %v1364 = vsel %vm1363, 1, 0
    %v1365 = vcvt.s32.f32 %v1364
    %1366 = vmatprep.subr.mxu0 0.0
    %1367 = vmatpush1.msra.mxu0 %v53
    %1368 = vmatprep.subr.mxu0 0.0
    %1369 = vmatpush1.msra.mxu0 %v54
    %1370 = vmatprep.subr.mxu0 0.0
    %1371 = vmatpush1.msra.mxu0 %v55
    %1372 = vmatprep.subr.mxu0 0.0
    %1373 = vmatpush1.msra.mxu0 %v56
    %1374 = vmatprep.subr.mxu0 0.0
    %1375 = vmatpush1.msra.mxu0 %v57
    %1376 = vmatprep.subr.mxu0 0.0
    %1377 = vmatpush1.msra.mxu0 %v58
    %1378 = vmatprep.subr.mxu0 0.0
    %1379 = vmatpush1.msra.mxu0 %v59
    %1380 = vmatprep.subr.mxu0 0.0
    %1381 = vmatpush1.msra.mxu0 %v60
    %1382 = vmatprep.subr.mxu0 0.0
    %1383 = vmatpush1.msra.mxu0 %v61
    %1384 = vmatprep.subr.mxu0 0.0
    %1385 = vmatpush1.msra.mxu0 %v62
    %1386 = vmatprep.subr.mxu0 0.0
    %1387 = vmatpush1.msra.mxu0 %v63
    %1388 = vmatprep.subr.mxu0 0.0
    %1389 = vmatpush1.msra.mxu0 %v64
    %1390 = vmatprep.subr.mxu0 0.0
    %1391 = vmatpush1.msra.mxu0 %v65
    %1392 = vmatprep.subr.mxu0 0.0
    %1393 = vmatpush1.msra.mxu0 %v66
    %1394 = vmatprep.subr.mxu0 0.0
    %1395 = vmatpush1.msra.mxu0 %v67
    %1396 = vmatprep.subr.mxu0 0.0
    %1397 = vmatpush1.msra.mxu0 %v68
    %1398 = vmatprep.subr.mxu0 0.0
    %1399 = vmatpush1.msra.mxu0 0.0
    %1400 = vmatprep.subr.mxu0 0.0
    %1401 = vmatpush1.msra.mxu0 0.0
    %1402 = vmatprep.subr.mxu0 0.0
    %1403 = vmatpush1.msra.mxu0 0.0
    %1404 = vmatprep.subr.mxu0 0.0
    %1405 = vmatpush1.msra.mxu0 0.0
    %1406 = vmatprep.subr.mxu0 0.0
    %1407 = vmatpush1.msra.mxu0 0.0
    %1408 = vmatprep.subr.mxu0 0.0
    %1409 = vmatpush1.msra.mxu0 0.0
    %1410 = vmatprep.subr.mxu0 0.0
    %1411 = vmatpush1.msra.mxu0 0.0
    %1412 = vmatprep.subr.mxu0 0.0
    %1413 = vmatpush1.msra.mxu0 0.0
    %1414 = vmatprep.subr.mxu0 0.0
    %1415 = vmatpush1.msra.mxu0 0.0
    %1416 = vmatprep.subr.mxu0 0.0
    %1417 = vmatpush1.msra.mxu0 0.0
    %1418 = vmatprep.subr.mxu0 0.0
    %1419 = vmatpush1.msra.mxu0 0.0
    %1420 = vmatprep.subr.mxu0 0.0
    %1421 = vmatpush1.msra.mxu0 0.0
    %1422 = vmatprep.subr.mxu0 0.0
    %1423 = vmatpush1.msra.mxu0 0.0
    %1424 = vmatprep.subr.mxu0 0.0
    %1425 = vmatpush1.msra.mxu0 0.0
    %1426 = vmatprep.subr.mxu0 0.0
    %1427 = vmatpush1.msra.mxu0 0.0
    %1428 = vmatprep.subr.mxu0 0.0
    %1429 = vmatpush1.msra.mxu0 0.0
    %1430 = vmatprep.mubr.f32.mxu0 0.0
    %1431 = vmatmul.mubr.f32.gmra.mrb[0].mxu0 %v1365
    %v1432 = vpop.f32.mrb[0].mxu0
    %v1433 = vadd.f32 0.0, %v1432
    %v1434 = vpop.f32.mrb[0].mxu0
    %1435 = vdwg.mxu0
    %s1436 = sld [smem:[#allocation2 + $0x2]]
    %s1437 = scvt.s32.f32 %s1436
    %s1438 = scalar_lea.vmem %s3, 16
    %v1439 = vld [vmem:[%s1438] sm:$0xff]
    %v1440 = vstv %s1437
    %v1441 = vmul.f32 %v1440, %v1439
    %s1442 = ssub.f32 1.0, %s1437
    %v1443 = vstv %s1442
    %v1444 = vmul.f32 %v1443, %v1433
    %v1445 = vadd.f32 %v1441, %v1444
    %1446 = vmatprep.subr.mxu0 0.0
    %1447 = vmatpush1.msra.mxu0 %v49
    %1448 = vmatprep.subr.mxu0 0.0
    %1449 = vmatpush1.msra.mxu0 %v50
    %1450 = vmatprep.subr.mxu0 0.0
    %1451 = vmatpush1.msra.mxu0 %v51
    %1452 = vmatprep.subr.mxu0 0.0
    %1453 = vmatpush1.msra.mxu0 %v52
    %1454 = vmatprep.subr.mxu0 0.0
    %1455 = vmatpush1.msra.mxu0 0.0
    %1456 = vmatprep.subr.mxu0 0.0
    %1457 = vmatpush1.msra.mxu0 0.0
    %1458 = vmatprep.subr.mxu0 0.0
    %1459 = vmatpush1.msra.mxu0 0.0
    %1460 = vmatprep.subr.mxu0 0.0
    %1461 = vmatpush1.msra.mxu0 0.0
    %1462 = vmatprep.subr.mxu0 0.0
    %1463 = vmatpush1.msra.mxu0 0.0
    %1464 = vmatprep.subr.mxu0 0.0
    %1465 = vmatpush1.msra.mxu0 0.0
    %1466 = vmatprep.subr.mxu0 0.0
    %1467 = vmatpush1.msra.mxu0 0.0
    %1468 = vmatprep.subr.mxu0 0.0
    %1469 = vmatpush1.msra.mxu0 0.0
    %1470 = vmatprep.subr.mxu0 0.0
    %1471 = vmatpush1.msra.mxu0 0.0
    %1472 = vmatprep.subr.mxu0 0.0
    %1473 = vmatpush1.msra.mxu0 0.0
    %1474 = vmatprep.subr.mxu0 0.0
    %1475 = vmatpush1.msra.mxu0 0.0
    %1476 = vmatprep.subr.mxu0 0.0
    %1477 = vmatpush1.msra.mxu0 0.0
    %1478 = vmatprep.subr.mxu0 0.0
    %1479 = vmatpush1.msra.mxu0 0.0
    %1480 = vmatprep.subr.mxu0 0.0
    %1481 = vmatpush1.msra.mxu0 0.0
    %1482 = vmatprep.subr.mxu0 0.0
    %1483 = vmatpush1.msra.mxu0 0.0
    %1484 = vmatprep.subr.mxu0 0.0
    %1485 = vmatpush1.msra.mxu0 0.0
    %1486 = vmatprep.subr.mxu0 0.0
    %1487 = vmatpush1.msra.mxu0 0.0
    %1488 = vmatprep.subr.mxu0 0.0
    %1489 = vmatpush1.msra.mxu0 0.0
    %1490 = vmatprep.subr.mxu0 0.0
    %1491 = vmatpush1.msra.mxu0 0.0
    %1492 = vmatprep.subr.mxu0 0.0
    %1493 = vmatpush1.msra.mxu0 0.0
    %1494 = vmatprep.subr.mxu0 0.0
    %1495 = vmatpush1.msra.mxu0 0.0
    %1496 = vmatprep.subr.mxu0 0.0
    %1497 = vmatpush1.msra.mxu0 0.0
    %1498 = vmatprep.subr.mxu0 0.0
    %1499 = vmatpush1.msra.mxu0 0.0
    %1500 = vmatprep.subr.mxu0 0.0
    %1501 = vmatpush1.msra.mxu0 0.0
    %1502 = vmatprep.subr.mxu0 0.0
    %1503 = vmatpush1.msra.mxu0 0.0
    %1504 = vmatprep.subr.mxu0 0.0
    %1505 = vmatpush1.msra.mxu0 0.0
    %1506 = vmatprep.subr.mxu0 0.0
    %1507 = vmatpush1.msra.mxu0 0.0
    %1508 = vmatprep.subr.mxu0 0.0
    %1509 = vmatpush1.msra.mxu0 0.0
    %1510 = vmatprep.mubr.f32.mxu0 0.0
    %1511 = vmatmul.mubr.f32.gmra.mrb[0].mxu0 %v1282
    %v1512 = vpop.f32.mrb[0].mxu0
    %v1513 = vadd.f32 0.0, %v1512
    %v1514 = vpop.f32.mrb[0].mxu0
    %1515 = vdwg.mxu0
    %v1516 = vadd.f32 %v1445, %v1513
    %v1517 = vadd.f32 %v1516, %v983
    %v1518 = vxor.u32 %v1517, 2147483648
    %v1519 = vmul.f32 %v1518, 1.442695
    %v1520 = vpow.pop %v1519
    %v1521 = vadd.f32 %v1520, 1.0
    %v1522 = vrcp.pop %v1521
    %v1523 = vmul.f32 1.0, %v1522
    %v1524 = vtanh.pop %v1517
    %v1525 = vmul.f32 %v1523, %v1272
    %1527 = vrot.lane.b32.xlu0 %v1524, 64
    %v1528 = vpop.permute.xlu0 %1527
    %v1530 = vmul.f32 %v1523, %v1528
    %1532 = vrot.lane.b32.xlu0 %v1530, 32
    %v1533 = vpop.permute.xlu0 %1532
    %v1535 = vadd.f32 %v1525, %v1533
    %v1536 = vtanh.pop %v1535
    %1538 = vrot.lane.b32.xlu0 %v1536, 64
    %v1539 = vpop.permute.xlu0 %1538
    %v1541 = vmul.f32 %v1523, %v1539
    %1543 = vrot.lane.b32.xlu0 %v1541, 32
    %v1544 = vpop.permute.xlu0 %1543
    %v1545 = vsel %vm76, %v1544, 0
    %1547 = vmatprep.subr.mxu0 0.0
    %1548 = vmatpush1.msra.mxu0 %v69
    %1549 = vmatprep.subr.mxu0 0.0
    %1550 = vmatpush1.msra.mxu0 %v70
    %1551 = vmatprep.subr.mxu0 0.0
    %1552 = vmatpush1.msra.mxu0 %v71
    %1553 = vmatprep.subr.mxu0 0.0
    %1554 = vmatpush1.msra.mxu0 %v72
    %1555 = vmatprep.subr.mxu0 0.0
    %1556 = vmatpush1.msra.mxu0 0.0
    %1557 = vmatprep.subr.mxu0 0.0
    %1558 = vmatpush1.msra.mxu0 0.0
    %1559 = vmatprep.subr.mxu0 0.0
    %1560 = vmatpush1.msra.mxu0 0.0
    %1561 = vmatprep.subr.mxu0 0.0
    %1562 = vmatpush1.msra.mxu0 0.0
    %1563 = vmatprep.subr.mxu0 0.0
    %1564 = vmatpush1.msra.mxu0 0.0
    %1565 = vmatprep.subr.mxu0 0.0
    %1566 = vmatpush1.msra.mxu0 0.0
    %1567 = vmatprep.subr.mxu0 0.0
    %1568 = vmatpush1.msra.mxu0 0.0
    %1569 = vmatprep.subr.mxu0 0.0
    %1570 = vmatpush1.msra.mxu0 0.0
    %1571 = vmatprep.subr.mxu0 0.0
    %1572 = vmatpush1.msra.mxu0 0.0
    %1573 = vmatprep.subr.mxu0 0.0
    %1574 = vmatpush1.msra.mxu0 0.0
    %1575 = vmatprep.subr.mxu0 0.0
    %1576 = vmatpush1.msra.mxu0 0.0
    %1577 = vmatprep.subr.mxu0 0.0
    %1578 = vmatpush1.msra.mxu0 0.0
    %1579 = vmatprep.subr.mxu0 0.0
    %1580 = vmatpush1.msra.mxu0 0.0
    %1581 = vmatprep.subr.mxu0 0.0
    %1582 = vmatpush1.msra.mxu0 0.0
    %1583 = vmatprep.subr.mxu0 0.0
    %1584 = vmatpush1.msra.mxu0 0.0
    %1585 = vmatprep.subr.mxu0 0.0
    %1586 = vmatpush1.msra.mxu0 0.0
    %1587 = vmatprep.subr.mxu0 0.0
    %1588 = vmatpush1.msra.mxu0 0.0
    %1589 = vmatprep.subr.mxu0 0.0
    %1590 = vmatpush1.msra.mxu0 0.0
    %1591 = vmatprep.subr.mxu0 0.0
    %1592 = vmatpush1.msra.mxu0 0.0
    %1593 = vmatprep.subr.mxu0 0.0
    %1594 = vmatpush1.msra.mxu0 0.0
    %1595 = vmatprep.subr.mxu0 0.0
    %1596 = vmatpush1.msra.mxu0 0.0
    %1597 = vmatprep.subr.mxu0 0.0
    %1598 = vmatpush1.msra.mxu0 0.0
    %1599 = vmatprep.subr.mxu0 0.0
    %1600 = vmatpush1.msra.mxu0 0.0
    %1601 = vmatprep.subr.mxu0 0.0
    %1602 = vmatpush1.msra.mxu0 0.0
    %1603 = vmatprep.subr.mxu0 0.0
    %1604 = vmatpush1.msra.mxu0 0.0
    %1605 = vmatprep.subr.mxu0 0.0
    %1606 = vmatpush1.msra.mxu0 0.0
    %1607 = vmatprep.subr.mxu0 0.0
    %1608 = vmatpush1.msra.mxu0 0.0
    %1609 = vmatprep.subr.mxu0 0.0
    %1610 = vmatpush1.msra.mxu0 0.0
    %1611 = vmatprep.mubr.f32.mxu0 0.0
    %1612 = vmatmul.mubr.f32.gmra.mrb[0].mxu0 %v1545
    %v1613 = vpop.f32.mrb[0].mxu0
    %v1614 = vadd.f32 %v1014, %v1613
    %v1615 = vpop.f32.mrb[0].mxu0
    %1616 = vdwg.mxu0
    %s1617 = scalar_lea.vmem %s9, 24
    %1618 = vst [vmem:[%s1617] sm:$0xff] %v1614
    %v1619 = vsel %vm893, %v1614, -1e+30
    %1620 = vmax.xlane.f32.xlu0 %v1619
    %v1621 = vpop.xlane.xlu0 %1620
    %vm1622 = vcmp.eq.f32.partialorder %v1619, %v1621
    %v1623 = vsel %vm1622, %v892, 128.0
    %1624 = vmin.xlane.f32.xlu0 %v1623
    %v1625 = vpop.xlane.xlu0 %1624
    %vm1626 = vcmp.eq.f32.partialorder %v892, %v1625
    %v1627 = vsel %vm1626, 1, 0
    %v1628 = vcvt.s32.f32 %v1627
    %1629 = vmatprep.subr.mxu0 0.0
    %1630 = vmatpush1.msra.mxu0 %v53
    %1631 = vmatprep.subr.mxu0 0.0
    %1632 = vmatpush1.msra.mxu0 %v54
    %1633 = vmatprep.subr.mxu0 0.0
    %1634 = vmatpush1.msra.mxu0 %v55
    %1635 = vmatprep.subr.mxu0 0.0
    %1636 = vmatpush1.msra.mxu0 %v56
    %1637 = vmatprep.subr.mxu0 0.0
    %1638 = vmatpush1.msra.mxu0 %v57
    %1639 = vmatprep.subr.mxu0 0.0
    %1640 = vmatpush1.msra.mxu0 %v58
    %1641 = vmatprep.subr.mxu0 0.0
    %1642 = vmatpush1.msra.mxu0 %v59
    %1643 = vmatprep.subr.mxu0 0.0
    %1644 = vmatpush1.msra.mxu0 %v60
    %1645 = vmatprep.subr.mxu0 0.0
    %1646 = vmatpush1.msra.mxu0 %v61
    %1647 = vmatprep.subr.mxu0 0.0
    %1648 = vmatpush1.msra.mxu0 %v62
    %1649 = vmatprep.subr.mxu0 0.0
    %1650 = vmatpush1.msra.mxu0 %v63
    %1651 = vmatprep.subr.mxu0 0.0
    %1652 = vmatpush1.msra.mxu0 %v64
    %1653 = vmatprep.subr.mxu0 0.0
    %1654 = vmatpush1.msra.mxu0 %v65
    %1655 = vmatprep.subr.mxu0 0.0
    %1656 = vmatpush1.msra.mxu0 %v66
    %1657 = vmatprep.subr.mxu0 0.0
    %1658 = vmatpush1.msra.mxu0 %v67
    %1659 = vmatprep.subr.mxu0 0.0
    %1660 = vmatpush1.msra.mxu0 %v68
    %1661 = vmatprep.subr.mxu0 0.0
    %1662 = vmatpush1.msra.mxu0 0.0
    %1663 = vmatprep.subr.mxu0 0.0
    %1664 = vmatpush1.msra.mxu0 0.0
    %1665 = vmatprep.subr.mxu0 0.0
    %1666 = vmatpush1.msra.mxu0 0.0
    %1667 = vmatprep.subr.mxu0 0.0
    %1668 = vmatpush1.msra.mxu0 0.0
    %1669 = vmatprep.subr.mxu0 0.0
    %1670 = vmatpush1.msra.mxu0 0.0
    %1671 = vmatprep.subr.mxu0 0.0
    %1672 = vmatpush1.msra.mxu0 0.0
    %1673 = vmatprep.subr.mxu0 0.0
    %1674 = vmatpush1.msra.mxu0 0.0
    %1675 = vmatprep.subr.mxu0 0.0
    %1676 = vmatpush1.msra.mxu0 0.0
    %1677 = vmatprep.subr.mxu0 0.0
    %1678 = vmatpush1.msra.mxu0 0.0
    %1679 = vmatprep.subr.mxu0 0.0
    %1680 = vmatpush1.msra.mxu0 0.0
    %1681 = vmatprep.subr.mxu0 0.0
    %1682 = vmatpush1.msra.mxu0 0.0
    %1683 = vmatprep.subr.mxu0 0.0
    %1684 = vmatpush1.msra.mxu0 0.0
    %1685 = vmatprep.subr.mxu0 0.0
    %1686 = vmatpush1.msra.mxu0 0.0
    %1687 = vmatprep.subr.mxu0 0.0
    %1688 = vmatpush1.msra.mxu0 0.0
    %1689 = vmatprep.subr.mxu0 0.0
    %1690 = vmatpush1.msra.mxu0 0.0
    %1691 = vmatprep.subr.mxu0 0.0
    %1692 = vmatpush1.msra.mxu0 0.0
    %1693 = vmatprep.mubr.f32.mxu0 0.0
    %1694 = vmatmul.mubr.f32.gmra.mrb[0].mxu0 %v1628
    %v1695 = vpop.f32.mrb[0].mxu0
    %v1696 = vadd.f32 0.0, %v1695
    %v1697 = vpop.f32.mrb[0].mxu0
    %1698 = vdwg.mxu0
    %s1699 = sld [smem:[#allocation2 + $0x3]]
    %s1700 = scvt.s32.f32 %s1699
    %s1701 = scalar_lea.vmem %s3, 24
    %v1702 = vld [vmem:[%s1701] sm:$0xff]
    %v1703 = vstv %s1700
    %v1704 = vmul.f32 %v1703, %v1702
    %s1705 = ssub.f32 1.0, %s1700
    %v1706 = vstv %s1705
    %v1707 = vmul.f32 %v1706, %v1696
    %v1708 = vadd.f32 %v1704, %v1707
    %1709 = vmatprep.subr.mxu0 0.0
    %1710 = vmatpush1.msra.mxu0 %v49
    %1711 = vmatprep.subr.mxu0 0.0
    %1712 = vmatpush1.msra.mxu0 %v50
    %1713 = vmatprep.subr.mxu0 0.0
    %1714 = vmatpush1.msra.mxu0 %v51
    %1715 = vmatprep.subr.mxu0 0.0
    %1716 = vmatpush1.msra.mxu0 %v52
    %1717 = vmatprep.subr.mxu0 0.0
    %1718 = vmatpush1.msra.mxu0 0.0
    %1719 = vmatprep.subr.mxu0 0.0
    %1720 = vmatpush1.msra.mxu0 0.0
    %1721 = vmatprep.subr.mxu0 0.0
    %1722 = vmatpush1.msra.mxu0 0.0
    %1723 = vmatprep.subr.mxu0 0.0
    %1724 = vmatpush1.msra.mxu0 0.0
    %1725 = vmatprep.subr.mxu0 0.0
    %1726 = vmatpush1.msra.mxu0 0.0
    %1727 = vmatprep.subr.mxu0 0.0
    %1728 = vmatpush1.msra.mxu0 0.0
    %1729 = vmatprep.subr.mxu0 0.0
    %1730 = vmatpush1.msra.mxu0 0.0
    %1731 = vmatprep.subr.mxu0 0.0
    %1732 = vmatpush1.msra.mxu0 0.0
    %1733 = vmatprep.subr.mxu0 0.0
    %1734 = vmatpush1.msra.mxu0 0.0
    %1735 = vmatprep.subr.mxu0 0.0
    %1736 = vmatpush1.msra.mxu0 0.0
    %1737 = vmatprep.subr.mxu0 0.0
    %1738 = vmatpush1.msra.mxu0 0.0
    %1739 = vmatprep.subr.mxu0 0.0
    %1740 = vmatpush1.msra.mxu0 0.0
    %1741 = vmatprep.subr.mxu0 0.0
    %1742 = vmatpush1.msra.mxu0 0.0
    %1743 = vmatprep.subr.mxu0 0.0
    %1744 = vmatpush1.msra.mxu0 0.0
    %1745 = vmatprep.subr.mxu0 0.0
    %1746 = vmatpush1.msra.mxu0 0.0
    %1747 = vmatprep.subr.mxu0 0.0
    %1748 = vmatpush1.msra.mxu0 0.0
    %1749 = vmatprep.subr.mxu0 0.0
    %1750 = vmatpush1.msra.mxu0 0.0
    %1751 = vmatprep.subr.mxu0 0.0
    %1752 = vmatpush1.msra.mxu0 0.0
    %1753 = vmatprep.subr.mxu0 0.0
    %1754 = vmatpush1.msra.mxu0 0.0
    %1755 = vmatprep.subr.mxu0 0.0
    %1756 = vmatpush1.msra.mxu0 0.0
    %1757 = vmatprep.subr.mxu0 0.0
    %1758 = vmatpush1.msra.mxu0 0.0
    %1759 = vmatprep.subr.mxu0 0.0
    %1760 = vmatpush1.msra.mxu0 0.0
    %1761 = vmatprep.subr.mxu0 0.0
    %1762 = vmatpush1.msra.mxu0 0.0
    %1763 = vmatprep.subr.mxu0 0.0
    %1764 = vmatpush1.msra.mxu0 0.0
    %1765 = vmatprep.subr.mxu0 0.0
    %1766 = vmatpush1.msra.mxu0 0.0
    %1767 = vmatprep.subr.mxu0 0.0
    %1768 = vmatpush1.msra.mxu0 0.0
    %1769 = vmatprep.subr.mxu0 0.0
    %1770 = vmatpush1.msra.mxu0 0.0
    %1771 = vmatprep.subr.mxu0 0.0
    %1772 = vmatpush1.msra.mxu0 0.0
    %1773 = vmatprep.mubr.f32.mxu0 0.0
    %1774 = vmatmul.mubr.f32.gmra.mrb[0].mxu0 %v1545
    %v1775 = vpop.f32.mrb[0].mxu0
    %v1776 = vadd.f32 0.0, %v1775
    %v1777 = vpop.f32.mrb[0].mxu0
    %1778 = vdwg.mxu0
    %v1779 = vadd.f32 %v1708, %v1776
    %v1780 = vadd.f32 %v1779, %v983
    %v1781 = vxor.u32 %v1780, 2147483648
    %v1782 = vmul.f32 %v1781, 1.442695
    %v1783 = vpow.pop %v1782
    %v1784 = vadd.f32 %v1783, 1.0
    %v1785 = vrcp.pop %v1784
    %v1786 = vmul.f32 1.0, %v1785
    %v1787 = vtanh.pop %v1780
    %v1788 = vmul.f32 %v1786, %v1535
    %1790 = vrot.lane.b32.xlu0 %v1787, 64
    %v1791 = vpop.permute.xlu0 %1790
    %v1793 = vmul.f32 %v1786, %v1791
    %1795 = vrot.lane.b32.xlu0 %v1793, 32
    %v1796 = vpop.permute.xlu0 %1795
    %v1798 = vadd.f32 %v1788, %v1796
    %v1799 = vtanh.pop %v1798
    %1801 = vrot.lane.b32.xlu0 %v1799, 64
    %v1802 = vpop.permute.xlu0 %1801
    %v1804 = vmul.f32 %v1786, %v1802
    %1806 = vrot.lane.b32.xlu0 %v1804, 32
    %v1807 = vpop.permute.xlu0 %1806
    %v1808 = vsel %vm76, %v1807, 0
    %1810 = vmatprep.subr.mxu0 0.0
    %1811 = vmatpush1.msra.mxu0 %v69
    %1812 = vmatprep.subr.mxu0 0.0
    %1813 = vmatpush1.msra.mxu0 %v70
    %1814 = vmatprep.subr.mxu0 0.0
    %1815 = vmatpush1.msra.mxu0 %v71
    %1816 = vmatprep.subr.mxu0 0.0
    %1817 = vmatpush1.msra.mxu0 %v72
    %1818 = vmatprep.subr.mxu0 0.0
    %1819 = vmatpush1.msra.mxu0 0.0
    %1820 = vmatprep.subr.mxu0 0.0
    %1821 = vmatpush1.msra.mxu0 0.0
    %1822 = vmatprep.subr.mxu0 0.0
    %1823 = vmatpush1.msra.mxu0 0.0
    %1824 = vmatprep.subr.mxu0 0.0
    %1825 = vmatpush1.msra.mxu0 0.0
    %1826 = vmatprep.subr.mxu0 0.0
    %1827 = vmatpush1.msra.mxu0 0.0
    %1828 = vmatprep.subr.mxu0 0.0
    %1829 = vmatpush1.msra.mxu0 0.0
    %1830 = vmatprep.subr.mxu0 0.0
    %1831 = vmatpush1.msra.mxu0 0.0
    %1832 = vmatprep.subr.mxu0 0.0
    %1833 = vmatpush1.msra.mxu0 0.0
    %1834 = vmatprep.subr.mxu0 0.0
    %1835 = vmatpush1.msra.mxu0 0.0
    %1836 = vmatprep.subr.mxu0 0.0
    %1837 = vmatpush1.msra.mxu0 0.0
    %1838 = vmatprep.subr.mxu0 0.0
    %1839 = vmatpush1.msra.mxu0 0.0
    %1840 = vmatprep.subr.mxu0 0.0
    %1841 = vmatpush1.msra.mxu0 0.0
    %1842 = vmatprep.subr.mxu0 0.0
    %1843 = vmatpush1.msra.mxu0 0.0
    %1844 = vmatprep.subr.mxu0 0.0
    %1845 = vmatpush1.msra.mxu0 0.0
    %1846 = vmatprep.subr.mxu0 0.0
    %1847 = vmatpush1.msra.mxu0 0.0
    %1848 = vmatprep.subr.mxu0 0.0
    %1849 = vmatpush1.msra.mxu0 0.0
    %1850 = vmatprep.subr.mxu0 0.0
    %1851 = vmatpush1.msra.mxu0 0.0
    %1852 = vmatprep.subr.mxu0 0.0
    %1853 = vmatpush1.msra.mxu0 0.0
    %1854 = vmatprep.subr.mxu0 0.0
    %1855 = vmatpush1.msra.mxu0 0.0
    %1856 = vmatprep.subr.mxu0 0.0
    %1857 = vmatpush1.msra.mxu0 0.0
    %1858 = vmatprep.subr.mxu0 0.0
    %1859 = vmatpush1.msra.mxu0 0.0
    %1860 = vmatprep.subr.mxu0 0.0
    %1861 = vmatpush1.msra.mxu0 0.0
    %1862 = vmatprep.subr.mxu0 0.0
    %1863 = vmatpush1.msra.mxu0 0.0
    %1864 = vmatprep.subr.mxu0 0.0
    %1865 = vmatpush1.msra.mxu0 0.0
    %1866 = vmatprep.subr.mxu0 0.0
    %1867 = vmatpush1.msra.mxu0 0.0
    %1868 = vmatprep.subr.mxu0 0.0
    %1869 = vmatpush1.msra.mxu0 0.0
    %1870 = vmatprep.subr.mxu0 0.0
    %1871 = vmatpush1.msra.mxu0 0.0
    %1872 = vmatprep.subr.mxu0 0.0
    %1873 = vmatpush1.msra.mxu0 0.0
    %1874 = vmatprep.mubr.f32.mxu0 0.0
    %1875 = vmatmul.mubr.f32.gmra.mrb[0].mxu0 %v1808
    %v1876 = vpop.f32.mrb[0].mxu0
    %v1877 = vadd.f32 %v1014, %v1876
    %v1878 = vpop.f32.mrb[0].mxu0
    %1879 = vdwg.mxu0
    %s1880 = scalar_lea.vmem %s9, 32
    %1881 = vst [vmem:[%s1880] sm:$0xff] %v1877
    %v1882 = vsel %vm893, %v1877, -1e+30
    %1883 = vmax.xlane.f32.xlu0 %v1882
    %v1884 = vpop.xlane.xlu0 %1883
    %vm1885 = vcmp.eq.f32.partialorder %v1882, %v1884
    %v1886 = vsel %vm1885, %v892, 128.0
    %1887 = vmin.xlane.f32.xlu0 %v1886
    %v1888 = vpop.xlane.xlu0 %1887
    %vm1889 = vcmp.eq.f32.partialorder %v892, %v1888
    %v1890 = vsel %vm1889, 1, 0
    %v1891 = vcvt.s32.f32 %v1890
    %1892 = vmatprep.subr.mxu0 0.0
    %1893 = vmatpush1.msra.mxu0 %v53
    %1894 = vmatprep.subr.mxu0 0.0
    %1895 = vmatpush1.msra.mxu0 %v54
    %1896 = vmatprep.subr.mxu0 0.0
    %1897 = vmatpush1.msra.mxu0 %v55
    %1898 = vmatprep.subr.mxu0 0.0
    %1899 = vmatpush1.msra.mxu0 %v56
    %1900 = vmatprep.subr.mxu0 0.0
    %1901 = vmatpush1.msra.mxu0 %v57
    %1902 = vmatprep.subr.mxu0 0.0
    %1903 = vmatpush1.msra.mxu0 %v58
    %1904 = vmatprep.subr.mxu0 0.0
    %1905 = vmatpush1.msra.mxu0 %v59
    %1906 = vmatprep.subr.mxu0 0.0
    %1907 = vmatpush1.msra.mxu0 %v60
    %1908 = vmatprep.subr.mxu0 0.0
    %1909 = vmatpush1.msra.mxu0 %v61
    %1910 = vmatprep.subr.mxu0 0.0
    %1911 = vmatpush1.msra.mxu0 %v62
    %1912 = vmatprep.subr.mxu0 0.0
    %1913 = vmatpush1.msra.mxu0 %v63
    %1914 = vmatprep.subr.mxu0 0.0
    %1915 = vmatpush1.msra.mxu0 %v64
    %1916 = vmatprep.subr.mxu0 0.0
    %1917 = vmatpush1.msra.mxu0 %v65
    %1918 = vmatprep.subr.mxu0 0.0
    %1919 = vmatpush1.msra.mxu0 %v66
    %1920 = vmatprep.subr.mxu0 0.0
    %1921 = vmatpush1.msra.mxu0 %v67
    %1922 = vmatprep.subr.mxu0 0.0
    %1923 = vmatpush1.msra.mxu0 %v68
    %1924 = vmatprep.subr.mxu0 0.0
    %1925 = vmatpush1.msra.mxu0 0.0
    %1926 = vmatprep.subr.mxu0 0.0
    %1927 = vmatpush1.msra.mxu0 0.0
    %1928 = vmatprep.subr.mxu0 0.0
    %1929 = vmatpush1.msra.mxu0 0.0
    %1930 = vmatprep.subr.mxu0 0.0
    %1931 = vmatpush1.msra.mxu0 0.0
    %1932 = vmatprep.subr.mxu0 0.0
    %1933 = vmatpush1.msra.mxu0 0.0
    %1934 = vmatprep.subr.mxu0 0.0
    %1935 = vmatpush1.msra.mxu0 0.0
    %1936 = vmatprep.subr.mxu0 0.0
    %1937 = vmatpush1.msra.mxu0 0.0
    %1938 = vmatprep.subr.mxu0 0.0
    %1939 = vmatpush1.msra.mxu0 0.0
    %1940 = vmatprep.subr.mxu0 0.0
    %1941 = vmatpush1.msra.mxu0 0.0
    %1942 = vmatprep.subr.mxu0 0.0
    %1943 = vmatpush1.msra.mxu0 0.0
    %1944 = vmatprep.subr.mxu0 0.0
    %1945 = vmatpush1.msra.mxu0 0.0
    %1946 = vmatprep.subr.mxu0 0.0
    %1947 = vmatpush1.msra.mxu0 0.0
    %1948 = vmatprep.subr.mxu0 0.0
    %1949 = vmatpush1.msra.mxu0 0.0
    %1950 = vmatprep.subr.mxu0 0.0
    %1951 = vmatpush1.msra.mxu0 0.0
    %1952 = vmatprep.subr.mxu0 0.0
    %1953 = vmatpush1.msra.mxu0 0.0
    %1954 = vmatprep.subr.mxu0 0.0
    %1955 = vmatpush1.msra.mxu0 0.0
    %1956 = vmatprep.mubr.f32.mxu0 0.0
    %1957 = vmatmul.mubr.f32.gmra.mrb[0].mxu0 %v1891
    %v1958 = vpop.f32.mrb[0].mxu0
    %v1959 = vadd.f32 0.0, %v1958
    %v1960 = vpop.f32.mrb[0].mxu0
    %1961 = vdwg.mxu0
    %s1962 = sld [smem:[#allocation2 + $0x4]]
    %s1963 = scvt.s32.f32 %s1962
    %s1964 = scalar_lea.vmem %s3, 32
    %v1965 = vld [vmem:[%s1964] sm:$0xff]
    %v1966 = vstv %s1963
    %v1967 = vmul.f32 %v1966, %v1965
    %s1968 = ssub.f32 1.0, %s1963
    %v1969 = vstv %s1968
    %v1970 = vmul.f32 %v1969, %v1959
    %v1971 = vadd.f32 %v1967, %v1970
    %1972 = vmatprep.subr.mxu0 0.0
    %1973 = vmatpush1.msra.mxu0 %v49
    %1974 = vmatprep.subr.mxu0 0.0
    %1975 = vmatpush1.msra.mxu0 %v50
    %1976 = vmatprep.subr.mxu0 0.0
    %1977 = vmatpush1.msra.mxu0 %v51
    %1978 = vmatprep.subr.mxu0 0.0
    %1979 = vmatpush1.msra.mxu0 %v52
    %1980 = vmatprep.subr.mxu0 0.0
    %1981 = vmatpush1.msra.mxu0 0.0
    %1982 = vmatprep.subr.mxu0 0.0
    %1983 = vmatpush1.msra.mxu0 0.0
    %1984 = vmatprep.subr.mxu0 0.0
    %1985 = vmatpush1.msra.mxu0 0.0
    %1986 = vmatprep.subr.mxu0 0.0
    %1987 = vmatpush1.msra.mxu0 0.0
    %1988 = vmatprep.subr.mxu0 0.0
    %1989 = vmatpush1.msra.mxu0 0.0
    %1990 = vmatprep.subr.mxu0 0.0
    %1991 = vmatpush1.msra.mxu0 0.0
    %1992 = vmatprep.subr.mxu0 0.0
    %1993 = vmatpush1.msra.mxu0 0.0
    %1994 = vmatprep.subr.mxu0 0.0
    %1995 = vmatpush1.msra.mxu0 0.0
    %1996 = vmatprep.subr.mxu0 0.0
    %1997 = vmatpush1.msra.mxu0 0.0
    %1998 = vmatprep.subr.mxu0 0.0
    %1999 = vmatpush1.msra.mxu0 0.0
    %2000 = vmatprep.subr.mxu0 0.0
    %2001 = vmatpush1.msra.mxu0 0.0
    %2002 = vmatprep.subr.mxu0 0.0
    %2003 = vmatpush1.msra.mxu0 0.0
    %2004 = vmatprep.subr.mxu0 0.0
    %2005 = vmatpush1.msra.mxu0 0.0
    %2006 = vmatprep.subr.mxu0 0.0
    %2007 = vmatpush1.msra.mxu0 0.0
    %2008 = vmatprep.subr.mxu0 0.0
    %2009 = vmatpush1.msra.mxu0 0.0
    %2010 = vmatprep.subr.mxu0 0.0
    %2011 = vmatpush1.msra.mxu0 0.0
    %2012 = vmatprep.subr.mxu0 0.0
    %2013 = vmatpush1.msra.mxu0 0.0
    %2014 = vmatprep.subr.mxu0 0.0
    %2015 = vmatpush1.msra.mxu0 0.0
    %2016 = vmatprep.subr.mxu0 0.0
    %2017 = vmatpush1.msra.mxu0 0.0
    %2018 = vmatprep.subr.mxu0 0.0
    %2019 = vmatpush1.msra.mxu0 0.0
    %2020 = vmatprep.subr.mxu0 0.0
    %2021 = vmatpush1.msra.mxu0 0.0
    %2022 = vmatprep.subr.mxu0 0.0
    %2023 = vmatpush1.msra.mxu0 0.0
    %2024 = vmatprep.subr.mxu0 0.0
    %2025 = vmatpush1.msra.mxu0 0.0
    %2026 = vmatprep.subr.mxu0 0.0
    %2027 = vmatpush1.msra.mxu0 0.0
    %2028 = vmatprep.subr.mxu0 0.0
    %2029 = vmatpush1.msra.mxu0 0.0
    %2030 = vmatprep.subr.mxu0 0.0
    %2031 = vmatpush1.msra.mxu0 0.0
    %2032 = vmatprep.subr.mxu0 0.0
    %2033 = vmatpush1.msra.mxu0 0.0
    %2034 = vmatprep.subr.mxu0 0.0
    %2035 = vmatpush1.msra.mxu0 0.0
    %2036 = vmatprep.mubr.f32.mxu0 0.0
    %2037 = vmatmul.mubr.f32.gmra.mrb[0].mxu0 %v1808
    %v2038 = vpop.f32.mrb[0].mxu0
    %v2039 = vadd.f32 0.0, %v2038
    %v2040 = vpop.f32.mrb[0].mxu0
    %2041 = vdwg.mxu0
    %v2042 = vadd.f32 %v1971, %v2039
    %v2043 = vadd.f32 %v2042, %v983
    %v2044 = vxor.u32 %v2043, 2147483648
    %v2045 = vmul.f32 %v2044, 1.442695
    %v2046 = vpow.pop %v2045
    %v2047 = vadd.f32 %v2046, 1.0
    %v2048 = vrcp.pop %v2047
    %v2049 = vmul.f32 1.0, %v2048
    %v2050 = vtanh.pop %v2043
    %v2051 = vmul.f32 %v2049, %v1798
    %2053 = vrot.lane.b32.xlu0 %v2050, 64
    %v2054 = vpop.permute.xlu0 %2053
    %v2056 = vmul.f32 %v2049, %v2054
    %2058 = vrot.lane.b32.xlu0 %v2056, 32
    %v2059 = vpop.permute.xlu0 %2058
    %v2061 = vadd.f32 %v2051, %v2059
    %v2062 = vtanh.pop %v2061
    %2064 = vrot.lane.b32.xlu0 %v2062, 64
    %v2065 = vpop.permute.xlu0 %2064
    %v2067 = vmul.f32 %v2049, %v2065
    %2069 = vrot.lane.b32.xlu0 %v2067, 32
    %v2070 = vpop.permute.xlu0 %2069
    %v2071 = vsel %vm76, %v2070, 0
    %2073 = vmatprep.subr.mxu0 0.0
    %2074 = vmatpush1.msra.mxu0 %v69
    %2075 = vmatprep.subr.mxu0 0.0
    %2076 = vmatpush1.msra.mxu0 %v70
    %2077 = vmatprep.subr.mxu0 0.0
    %2078 = vmatpush1.msra.mxu0 %v71
    %2079 = vmatprep.subr.mxu0 0.0
    %2080 = vmatpush1.msra.mxu0 %v72
    %2081 = vmatprep.subr.mxu0 0.0
    %2082 = vmatpush1.msra.mxu0 0.0
    %2083 = vmatprep.subr.mxu0 0.0
    %2084 = vmatpush1.msra.mxu0 0.0
    %2085 = vmatprep.subr.mxu0 0.0
    %2086 = vmatpush1.msra.mxu0 0.0
    %2087 = vmatprep.subr.mxu0 0.0
    %2088 = vmatpush1.msra.mxu0 0.0
    %2089 = vmatprep.subr.mxu0 0.0
    %2090 = vmatpush1.msra.mxu0 0.0
    %2091 = vmatprep.subr.mxu0 0.0
    %2092 = vmatpush1.msra.mxu0 0.0
    %2093 = vmatprep.subr.mxu0 0.0
    %2094 = vmatpush1.msra.mxu0 0.0
    %2095 = vmatprep.subr.mxu0 0.0
    %2096 = vmatpush1.msra.mxu0 0.0
    %2097 = vmatprep.subr.mxu0 0.0
    %2098 = vmatpush1.msra.mxu0 0.0
    %2099 = vmatprep.subr.mxu0 0.0
    %2100 = vmatpush1.msra.mxu0 0.0
    %2101 = vmatprep.subr.mxu0 0.0
    %2102 = vmatpush1.msra.mxu0 0.0
    %2103 = vmatprep.subr.mxu0 0.0
    %2104 = vmatpush1.msra.mxu0 0.0
    %2105 = vmatprep.subr.mxu0 0.0
    %2106 = vmatpush1.msra.mxu0 0.0
    %2107 = vmatprep.subr.mxu0 0.0
    %2108 = vmatpush1.msra.mxu0 0.0
    %2109 = vmatprep.subr.mxu0 0.0
    %2110 = vmatpush1.msra.mxu0 0.0
    %2111 = vmatprep.subr.mxu0 0.0
    %2112 = vmatpush1.msra.mxu0 0.0
    %2113 = vmatprep.subr.mxu0 0.0
    %2114 = vmatpush1.msra.mxu0 0.0
    %2115 = vmatprep.subr.mxu0 0.0
    %2116 = vmatpush1.msra.mxu0 0.0
    %2117 = vmatprep.subr.mxu0 0.0
    %2118 = vmatpush1.msra.mxu0 0.0
    %2119 = vmatprep.subr.mxu0 0.0
    %2120 = vmatpush1.msra.mxu0 0.0
    %2121 = vmatprep.subr.mxu0 0.0
    %2122 = vmatpush1.msra.mxu0 0.0
    %2123 = vmatprep.subr.mxu0 0.0
    %2124 = vmatpush1.msra.mxu0 0.0
    %2125 = vmatprep.subr.mxu0 0.0
    %2126 = vmatpush1.msra.mxu0 0.0
    %2127 = vmatprep.subr.mxu0 0.0
    %2128 = vmatpush1.msra.mxu0 0.0
    %2129 = vmatprep.subr.mxu0 0.0
    %2130 = vmatpush1.msra.mxu0 0.0
    %2131 = vmatprep.subr.mxu0 0.0
    %2132 = vmatpush1.msra.mxu0 0.0
    %2133 = vmatprep.subr.mxu0 0.0
    %2134 = vmatpush1.msra.mxu0 0.0
    %2135 = vmatprep.subr.mxu0 0.0
    %2136 = vmatpush1.msra.mxu0 0.0
    %2137 = vmatprep.mubr.f32.mxu0 0.0
    %2138 = vmatmul.mubr.f32.gmra.mrb[0].mxu0 %v2071
    %v2139 = vpop.f32.mrb[0].mxu0
    %v2140 = vadd.f32 %v1014, %v2139
    %v2141 = vpop.f32.mrb[0].mxu0
    %2142 = vdwg.mxu0
    %s2143 = scalar_lea.vmem %s9, 40
    %2144 = vst [vmem:[%s2143] sm:$0xff] %v2140
    %v2145 = vsel %vm893, %v2140, -1e+30
    %2146 = vmax.xlane.f32.xlu0 %v2145
    %v2147 = vpop.xlane.xlu0 %2146
    %vm2148 = vcmp.eq.f32.partialorder %v2145, %v2147
    %v2149 = vsel %vm2148, %v892, 128.0
    %2150 = vmin.xlane.f32.xlu0 %v2149
    %v2151 = vpop.xlane.xlu0 %2150
    %vm2152 = vcmp.eq.f32.partialorder %v892, %v2151
    %v2153 = vsel %vm2152, 1, 0
    %v2154 = vcvt.s32.f32 %v2153
    %2155 = vmatprep.subr.mxu0 0.0
    %2156 = vmatpush1.msra.mxu0 %v53
    %2157 = vmatprep.subr.mxu0 0.0
    %2158 = vmatpush1.msra.mxu0 %v54
    %2159 = vmatprep.subr.mxu0 0.0
    %2160 = vmatpush1.msra.mxu0 %v55
    %2161 = vmatprep.subr.mxu0 0.0
    %2162 = vmatpush1.msra.mxu0 %v56
    %2163 = vmatprep.subr.mxu0 0.0
    %2164 = vmatpush1.msra.mxu0 %v57
    %2165 = vmatprep.subr.mxu0 0.0
    %2166 = vmatpush1.msra.mxu0 %v58
    %2167 = vmatprep.subr.mxu0 0.0
    %2168 = vmatpush1.msra.mxu0 %v59
    %2169 = vmatprep.subr.mxu0 0.0
    %2170 = vmatpush1.msra.mxu0 %v60
    %2171 = vmatprep.subr.mxu0 0.0
    %2172 = vmatpush1.msra.mxu0 %v61
    %2173 = vmatprep.subr.mxu0 0.0
    %2174 = vmatpush1.msra.mxu0 %v62
    %2175 = vmatprep.subr.mxu0 0.0
    %2176 = vmatpush1.msra.mxu0 %v63
    %2177 = vmatprep.subr.mxu0 0.0
    %2178 = vmatpush1.msra.mxu0 %v64
    %2179 = vmatprep.subr.mxu0 0.0
    %2180 = vmatpush1.msra.mxu0 %v65
    %2181 = vmatprep.subr.mxu0 0.0
    %2182 = vmatpush1.msra.mxu0 %v66
    %2183 = vmatprep.subr.mxu0 0.0
    %2184 = vmatpush1.msra.mxu0 %v67
    %2185 = vmatprep.subr.mxu0 0.0
    %2186 = vmatpush1.msra.mxu0 %v68
    %2187 = vmatprep.subr.mxu0 0.0
    %2188 = vmatpush1.msra.mxu0 0.0
    %2189 = vmatprep.subr.mxu0 0.0
    %2190 = vmatpush1.msra.mxu0 0.0
    %2191 = vmatprep.subr.mxu0 0.0
    %2192 = vmatpush1.msra.mxu0 0.0
    %2193 = vmatprep.subr.mxu0 0.0
    %2194 = vmatpush1.msra.mxu0 0.0
    %2195 = vmatprep.subr.mxu0 0.0
    %2196 = vmatpush1.msra.mxu0 0.0
    %2197 = vmatprep.subr.mxu0 0.0
    %2198 = vmatpush1.msra.mxu0 0.0
    %2199 = vmatprep.subr.mxu0 0.0
    %2200 = vmatpush1.msra.mxu0 0.0
    %2201 = vmatprep.subr.mxu0 0.0
    %2202 = vmatpush1.msra.mxu0 0.0
    %2203 = vmatprep.subr.mxu0 0.0
    %2204 = vmatpush1.msra.mxu0 0.0
    %2205 = vmatprep.subr.mxu0 0.0
    %2206 = vmatpush1.msra.mxu0 0.0
    %2207 = vmatprep.subr.mxu0 0.0
    %2208 = vmatpush1.msra.mxu0 0.0
    %2209 = vmatprep.subr.mxu0 0.0
    %2210 = vmatpush1.msra.mxu0 0.0
    %2211 = vmatprep.subr.mxu0 0.0
    %2212 = vmatpush1.msra.mxu0 0.0
    %2213 = vmatprep.subr.mxu0 0.0
    %2214 = vmatpush1.msra.mxu0 0.0
    %2215 = vmatprep.subr.mxu0 0.0
    %2216 = vmatpush1.msra.mxu0 0.0
    %2217 = vmatprep.subr.mxu0 0.0
    %2218 = vmatpush1.msra.mxu0 0.0
    %2219 = vmatprep.mubr.f32.mxu0 0.0
    %2220 = vmatmul.mubr.f32.gmra.mrb[0].mxu0 %v2154
    %v2221 = vpop.f32.mrb[0].mxu0
    %v2222 = vadd.f32 0.0, %v2221
    %v2223 = vpop.f32.mrb[0].mxu0
    %2224 = vdwg.mxu0
    %s2225 = sld [smem:[#allocation2 + $0x5]]
    %s2226 = scvt.s32.f32 %s2225
    %s2227 = scalar_lea.vmem %s3, 40
    %v2228 = vld [vmem:[%s2227] sm:$0xff]
    %v2229 = vstv %s2226
    %v2230 = vmul.f32 %v2229, %v2228
    %s2231 = ssub.f32 1.0, %s2226
    %v2232 = vstv %s2231
    %v2233 = vmul.f32 %v2232, %v2222
    %v2234 = vadd.f32 %v2230, %v2233
    %2235 = vmatprep.subr.mxu0 0.0
    %2236 = vmatpush1.msra.mxu0 %v49
    %2237 = vmatprep.subr.mxu0 0.0
    %2238 = vmatpush1.msra.mxu0 %v50
    %2239 = vmatprep.subr.mxu0 0.0
    %2240 = vmatpush1.msra.mxu0 %v51
    %2241 = vmatprep.subr.mxu0 0.0
    %2242 = vmatpush1.msra.mxu0 %v52
    %2243 = vmatprep.subr.mxu0 0.0
    %2244 = vmatpush1.msra.mxu0 0.0
    %2245 = vmatprep.subr.mxu0 0.0
    %2246 = vmatpush1.msra.mxu0 0.0
    %2247 = vmatprep.subr.mxu0 0.0
    %2248 = vmatpush1.msra.mxu0 0.0
    %2249 = vmatprep.subr.mxu0 0.0
    %2250 = vmatpush1.msra.mxu0 0.0
    %2251 = vmatprep.subr.mxu0 0.0
    %2252 = vmatpush1.msra.mxu0 0.0
    %2253 = vmatprep.subr.mxu0 0.0
    %2254 = vmatpush1.msra.mxu0 0.0
    %2255 = vmatprep.subr.mxu0 0.0
    %2256 = vmatpush1.msra.mxu0 0.0
    %2257 = vmatprep.subr.mxu0 0.0
    %2258 = vmatpush1.msra.mxu0 0.0
    %2259 = vmatprep.subr.mxu0 0.0
    %2260 = vmatpush1.msra.mxu0 0.0
    %2261 = vmatprep.subr.mxu0 0.0
    %2262 = vmatpush1.msra.mxu0 0.0
    %2263 = vmatprep.subr.mxu0 0.0
    %2264 = vmatpush1.msra.mxu0 0.0
    %2265 = vmatprep.subr.mxu0 0.0
    %2266 = vmatpush1.msra.mxu0 0.0
    %2267 = vmatprep.subr.mxu0 0.0
    %2268 = vmatpush1.msra.mxu0 0.0
    %2269 = vmatprep.subr.mxu0 0.0
    %2270 = vmatpush1.msra.mxu0 0.0
    %2271 = vmatprep.subr.mxu0 0.0
    %2272 = vmatpush1.msra.mxu0 0.0
    %2273 = vmatprep.subr.mxu0 0.0
    %2274 = vmatpush1.msra.mxu0 0.0
    %2275 = vmatprep.subr.mxu0 0.0
    %2276 = vmatpush1.msra.mxu0 0.0
    %2277 = vmatprep.subr.mxu0 0.0
    %2278 = vmatpush1.msra.mxu0 0.0
    %2279 = vmatprep.subr.mxu0 0.0
    %2280 = vmatpush1.msra.mxu0 0.0
    %2281 = vmatprep.subr.mxu0 0.0
    %2282 = vmatpush1.msra.mxu0 0.0
    %2283 = vmatprep.subr.mxu0 0.0
    %2284 = vmatpush1.msra.mxu0 0.0
    %2285 = vmatprep.subr.mxu0 0.0
    %2286 = vmatpush1.msra.mxu0 0.0
    %2287 = vmatprep.subr.mxu0 0.0
    %2288 = vmatpush1.msra.mxu0 0.0
    %2289 = vmatprep.subr.mxu0 0.0
    %2290 = vmatpush1.msra.mxu0 0.0
    %2291 = vmatprep.subr.mxu0 0.0
    %2292 = vmatpush1.msra.mxu0 0.0
    %2293 = vmatprep.subr.mxu0 0.0
    %2294 = vmatpush1.msra.mxu0 0.0
    %2295 = vmatprep.subr.mxu0 0.0
    %2296 = vmatpush1.msra.mxu0 0.0
    %2297 = vmatprep.subr.mxu0 0.0
    %2298 = vmatpush1.msra.mxu0 0.0
    %2299 = vmatprep.mubr.f32.mxu0 0.0
    %2300 = vmatmul.mubr.f32.gmra.mrb[0].mxu0 %v2071
    %v2301 = vpop.f32.mrb[0].mxu0
    %v2302 = vadd.f32 0.0, %v2301
    %v2303 = vpop.f32.mrb[0].mxu0
    %2304 = vdwg.mxu0
    %v2305 = vadd.f32 %v2234, %v2302
    %v2306 = vadd.f32 %v2305, %v983
    %v2307 = vxor.u32 %v2306, 2147483648
    %v2308 = vmul.f32 %v2307, 1.442695
    %v2309 = vpow.pop %v2308
    %v2310 = vadd.f32 %v2309, 1.0
    %v2311 = vrcp.pop %v2310
    %v2312 = vmul.f32 1.0, %v2311
    %v2313 = vtanh.pop %v2306
    %v2314 = vmul.f32 %v2312, %v2061
    %2316 = vrot.lane.b32.xlu0 %v2313, 64
    %v2317 = vpop.permute.xlu0 %2316
    %v2319 = vmul.f32 %v2312, %v2317
    %2321 = vrot.lane.b32.xlu0 %v2319, 32
    %v2322 = vpop.permute.xlu0 %2321
    %v2324 = vadd.f32 %v2314, %v2322
    %v2325 = vtanh.pop %v2324
    %2327 = vrot.lane.b32.xlu0 %v2325, 64
    %v2328 = vpop.permute.xlu0 %2327
    %v2330 = vmul.f32 %v2312, %v2328
    %2332 = vrot.lane.b32.xlu0 %v2330, 32
    %v2333 = vpop.permute.xlu0 %2332
    %v2334 = vsel %vm76, %v2333, 0
    %2336 = vmatprep.subr.mxu0 0.0
    %2337 = vmatpush1.msra.mxu0 %v69
    %2338 = vmatprep.subr.mxu0 0.0
    %2339 = vmatpush1.msra.mxu0 %v70
    %2340 = vmatprep.subr.mxu0 0.0
    %2341 = vmatpush1.msra.mxu0 %v71
    %2342 = vmatprep.subr.mxu0 0.0
    %2343 = vmatpush1.msra.mxu0 %v72
    %2344 = vmatprep.subr.mxu0 0.0
    %2345 = vmatpush1.msra.mxu0 0.0
    %2346 = vmatprep.subr.mxu0 0.0
    %2347 = vmatpush1.msra.mxu0 0.0
    %2348 = vmatprep.subr.mxu0 0.0
    %2349 = vmatpush1.msra.mxu0 0.0
    %2350 = vmatprep.subr.mxu0 0.0
    %2351 = vmatpush1.msra.mxu0 0.0
    %2352 = vmatprep.subr.mxu0 0.0
    %2353 = vmatpush1.msra.mxu0 0.0
    %2354 = vmatprep.subr.mxu0 0.0
    %2355 = vmatpush1.msra.mxu0 0.0
    %2356 = vmatprep.subr.mxu0 0.0
    %2357 = vmatpush1.msra.mxu0 0.0
    %2358 = vmatprep.subr.mxu0 0.0
    %2359 = vmatpush1.msra.mxu0 0.0
    %2360 = vmatprep.subr.mxu0 0.0
    %2361 = vmatpush1.msra.mxu0 0.0
    %2362 = vmatprep.subr.mxu0 0.0
    %2363 = vmatpush1.msra.mxu0 0.0
    %2364 = vmatprep.subr.mxu0 0.0
    %2365 = vmatpush1.msra.mxu0 0.0
    %2366 = vmatprep.subr.mxu0 0.0
    %2367 = vmatpush1.msra.mxu0 0.0
    %2368 = vmatprep.subr.mxu0 0.0
    %2369 = vmatpush1.msra.mxu0 0.0
    %2370 = vmatprep.subr.mxu0 0.0
    %2371 = vmatpush1.msra.mxu0 0.0
    %2372 = vmatprep.subr.mxu0 0.0
    %2373 = vmatpush1.msra.mxu0 0.0
    %2374 = vmatprep.subr.mxu0 0.0
    %2375 = vmatpush1.msra.mxu0 0.0
    %2376 = vmatprep.subr.mxu0 0.0
    %2377 = vmatpush1.msra.mxu0 0.0
    %2378 = vmatprep.subr.mxu0 0.0
    %2379 = vmatpush1.msra.mxu0 0.0
    %2380 = vmatprep.subr.mxu0 0.0
    %2381 = vmatpush1.msra.mxu0 0.0
    %2382 = vmatprep.subr.mxu0 0.0
    %2383 = vmatpush1.msra.mxu0 0.0
    %2384 = vmatprep.subr.mxu0 0.0
    %2385 = vmatpush1.msra.mxu0 0.0
    %2386 = vmatprep.subr.mxu0 0.0
    %2387 = vmatpush1.msra.mxu0 0.0
    %2388 = vmatprep.subr.mxu0 0.0
    %2389 = vmatpush1.msra.mxu0 0.0
    %2390 = vmatprep.subr.mxu0 0.0
    %2391 = vmatpush1.msra.mxu0 0.0
    %2392 = vmatprep.subr.mxu0 0.0
    %2393 = vmatpush1.msra.mxu0 0.0
    %2394 = vmatprep.subr.mxu0 0.0
    %2395 = vmatpush1.msra.mxu0 0.0
    %2396 = vmatprep.subr.mxu0 0.0
    %2397 = vmatpush1.msra.mxu0 0.0
    %2398 = vmatprep.subr.mxu0 0.0
    %2399 = vmatpush1.msra.mxu0 0.0
    %2400 = vmatprep.mubr.f32.mxu0 0.0
    %2401 = vmatmul.mubr.f32.gmra.mrb[0].mxu0 %v2334
    %v2402 = vpop.f32.mrb[0].mxu0
    %v2403 = vadd.f32 %v1014, %v2402
    %v2404 = vpop.f32.mrb[0].mxu0
    %2405 = vdwg.mxu0
    %s2406 = scalar_lea.vmem %s9, 48
    %2407 = vst [vmem:[%s2406] sm:$0xff] %v2403
    %v2408 = vsel %vm893, %v2403, -1e+30
    %2409 = vmax.xlane.f32.xlu0 %v2408
    %v2410 = vpop.xlane.xlu0 %2409
    %vm2411 = vcmp.eq.f32.partialorder %v2408, %v2410
    %v2412 = vsel %vm2411, %v892, 128.0
    %2413 = vmin.xlane.f32.xlu0 %v2412
    %v2414 = vpop.xlane.xlu0 %2413
    %vm2415 = vcmp.eq.f32.partialorder %v892, %v2414
    %v2416 = vsel %vm2415, 1, 0
    %v2417 = vcvt.s32.f32 %v2416
    %2418 = vmatprep.subr.mxu0 0.0
    %2419 = vmatpush1.msra.mxu0 %v53
    %2420 = vmatprep.subr.mxu0 0.0
    %2421 = vmatpush1.msra.mxu0 %v54
    %2422 = vmatprep.subr.mxu0 0.0
    %2423 = vmatpush1.msra.mxu0 %v55
    %2424 = vmatprep.subr.mxu0 0.0
    %2425 = vmatpush1.msra.mxu0 %v56
    %2426 = vmatprep.subr.mxu0 0.0
    %2427 = vmatpush1.msra.mxu0 %v57
    %2428 = vmatprep.subr.mxu0 0.0
    %2429 = vmatpush1.msra.mxu0 %v58
    %2430 = vmatprep.subr.mxu0 0.0
    %2431 = vmatpush1.msra.mxu0 %v59
    %2432 = vmatprep.subr.mxu0 0.0
    %2433 = vmatpush1.msra.mxu0 %v60
    %2434 = vmatprep.subr.mxu0 0.0
    %2435 = vmatpush1.msra.mxu0 %v61
    %2436 = vmatprep.subr.mxu0 0.0
    %2437 = vmatpush1.msra.mxu0 %v62
    %2438 = vmatprep.subr.mxu0 0.0
    %2439 = vmatpush1.msra.mxu0 %v63
    %2440 = vmatprep.subr.mxu0 0.0
    %2441 = vmatpush1.msra.mxu0 %v64
    %2442 = vmatprep.subr.mxu0 0.0
    %2443 = vmatpush1.msra.mxu0 %v65
    %2444 = vmatprep.subr.mxu0 0.0
    %2445 = vmatpush1.msra.mxu0 %v66
    %2446 = vmatprep.subr.mxu0 0.0
    %2447 = vmatpush1.msra.mxu0 %v67
    %2448 = vmatprep.subr.mxu0 0.0
    %2449 = vmatpush1.msra.mxu0 %v68
    %2450 = vmatprep.subr.mxu0 0.0
    %2451 = vmatpush1.msra.mxu0 0.0
    %2452 = vmatprep.subr.mxu0 0.0
    %2453 = vmatpush1.msra.mxu0 0.0
    %2454 = vmatprep.subr.mxu0 0.0
    %2455 = vmatpush1.msra.mxu0 0.0
    %2456 = vmatprep.subr.mxu0 0.0
    %2457 = vmatpush1.msra.mxu0 0.0
    %2458 = vmatprep.subr.mxu0 0.0
    %2459 = vmatpush1.msra.mxu0 0.0
    %2460 = vmatprep.subr.mxu0 0.0
    %2461 = vmatpush1.msra.mxu0 0.0
    %2462 = vmatprep.subr.mxu0 0.0
    %2463 = vmatpush1.msra.mxu0 0.0
    %2464 = vmatprep.subr.mxu0 0.0
    %2465 = vmatpush1.msra.mxu0 0.0
    %2466 = vmatprep.subr.mxu0 0.0
    %2467 = vmatpush1.msra.mxu0 0.0
    %2468 = vmatprep.subr.mxu0 0.0
    %2469 = vmatpush1.msra.mxu0 0.0
    %2470 = vmatprep.subr.mxu0 0.0
    %2471 = vmatpush1.msra.mxu0 0.0
    %2472 = vmatprep.subr.mxu0 0.0
    %2473 = vmatpush1.msra.mxu0 0.0
    %2474 = vmatprep.subr.mxu0 0.0
    %2475 = vmatpush1.msra.mxu0 0.0
    %2476 = vmatprep.subr.mxu0 0.0
    %2477 = vmatpush1.msra.mxu0 0.0
    %2478 = vmatprep.subr.mxu0 0.0
    %2479 = vmatpush1.msra.mxu0 0.0
    %2480 = vmatprep.subr.mxu0 0.0
    %2481 = vmatpush1.msra.mxu0 0.0
    %2482 = vmatprep.mubr.f32.mxu0 0.0
    %2483 = vmatmul.mubr.f32.gmra.mrb[0].mxu0 %v2417
    %v2484 = vpop.f32.mrb[0].mxu0
    %v2485 = vadd.f32 0.0, %v2484
    %v2486 = vpop.f32.mrb[0].mxu0
    %2487 = vdwg.mxu0
    %s2488 = sld [smem:[#allocation2 + $0x6]]
    %s2489 = scvt.s32.f32 %s2488
    %s2490 = scalar_lea.vmem %s3, 48
    %v2491 = vld [vmem:[%s2490] sm:$0xff]
    %v2492 = vstv %s2489
    %v2493 = vmul.f32 %v2492, %v2491
    %s2494 = ssub.f32 1.0, %s2489
    %v2495 = vstv %s2494
    %v2496 = vmul.f32 %v2495, %v2485
    %v2497 = vadd.f32 %v2493, %v2496
    %2498 = vmatprep.subr.mxu0 0.0
    %2499 = vmatpush1.msra.mxu0 %v49
    %2500 = vmatprep.subr.mxu0 0.0
    %2501 = vmatpush1.msra.mxu0 %v50
    %2502 = vmatprep.subr.mxu0 0.0
    %2503 = vmatpush1.msra.mxu0 %v51
    %2504 = vmatprep.subr.mxu0 0.0
    %2505 = vmatpush1.msra.mxu0 %v52
    %2506 = vmatprep.subr.mxu0 0.0
    %2507 = vmatpush1.msra.mxu0 0.0
    %2508 = vmatprep.subr.mxu0 0.0
    %2509 = vmatpush1.msra.mxu0 0.0
    %2510 = vmatprep.subr.mxu0 0.0
    %2511 = vmatpush1.msra.mxu0 0.0
    %2512 = vmatprep.subr.mxu0 0.0
    %2513 = vmatpush1.msra.mxu0 0.0
    %2514 = vmatprep.subr.mxu0 0.0
    %2515 = vmatpush1.msra.mxu0 0.0
    %2516 = vmatprep.subr.mxu0 0.0
    %2517 = vmatpush1.msra.mxu0 0.0
    %2518 = vmatprep.subr.mxu0 0.0
    %2519 = vmatpush1.msra.mxu0 0.0
    %2520 = vmatprep.subr.mxu0 0.0
    %2521 = vmatpush1.msra.mxu0 0.0
    %2522 = vmatprep.subr.mxu0 0.0
    %2523 = vmatpush1.msra.mxu0 0.0
    %2524 = vmatprep.subr.mxu0 0.0
    %2525 = vmatpush1.msra.mxu0 0.0
    %2526 = vmatprep.subr.mxu0 0.0
    %2527 = vmatpush1.msra.mxu0 0.0
    %2528 = vmatprep.subr.mxu0 0.0
    %2529 = vmatpush1.msra.mxu0 0.0
    %2530 = vmatprep.subr.mxu0 0.0
    %2531 = vmatpush1.msra.mxu0 0.0
    %2532 = vmatprep.subr.mxu0 0.0
    %2533 = vmatpush1.msra.mxu0 0.0
    %2534 = vmatprep.subr.mxu0 0.0
    %2535 = vmatpush1.msra.mxu0 0.0
    %2536 = vmatprep.subr.mxu0 0.0
    %2537 = vmatpush1.msra.mxu0 0.0
    %2538 = vmatprep.subr.mxu0 0.0
    %2539 = vmatpush1.msra.mxu0 0.0
    %2540 = vmatprep.subr.mxu0 0.0
    %2541 = vmatpush1.msra.mxu0 0.0
    %2542 = vmatprep.subr.mxu0 0.0
    %2543 = vmatpush1.msra.mxu0 0.0
    %2544 = vmatprep.subr.mxu0 0.0
    %2545 = vmatpush1.msra.mxu0 0.0
    %2546 = vmatprep.subr.mxu0 0.0
    %2547 = vmatpush1.msra.mxu0 0.0
    %2548 = vmatprep.subr.mxu0 0.0
    %2549 = vmatpush1.msra.mxu0 0.0
    %2550 = vmatprep.subr.mxu0 0.0
    %2551 = vmatpush1.msra.mxu0 0.0
    %2552 = vmatprep.subr.mxu0 0.0
    %2553 = vmatpush1.msra.mxu0 0.0
    %2554 = vmatprep.subr.mxu0 0.0
    %2555 = vmatpush1.msra.mxu0 0.0
    %2556 = vmatprep.subr.mxu0 0.0
    %2557 = vmatpush1.msra.mxu0 0.0
    %2558 = vmatprep.subr.mxu0 0.0
    %2559 = vmatpush1.msra.mxu0 0.0
    %2560 = vmatprep.subr.mxu0 0.0
    %2561 = vmatpush1.msra.mxu0 0.0
    %2562 = vmatprep.mubr.f32.mxu0 0.0
    %2563 = vmatmul.mubr.f32.gmra.mrb[0].mxu0 %v2334
    %v2564 = vpop.f32.mrb[0].mxu0
    %v2565 = vadd.f32 0.0, %v2564
    %v2566 = vpop.f32.mrb[0].mxu0
    %2567 = vdwg.mxu0
    %v2568 = vadd.f32 %v2497, %v2565
    %v2569 = vadd.f32 %v2568, %v983
    %v2570 = vxor.u32 %v2569, 2147483648
    %v2571 = vmul.f32 %v2570, 1.442695
    %v2572 = vpow.pop %v2571
    %v2573 = vadd.f32 %v2572, 1.0
    %v2574 = vrcp.pop %v2573
    %v2575 = vmul.f32 1.0, %v2574
    %v2576 = vtanh.pop %v2569
    %v2577 = vmul.f32 %v2575, %v2324
    %2579 = vrot.lane.b32.xlu0 %v2576, 64
    %v2580 = vpop.permute.xlu0 %2579
    %v2582 = vmul.f32 %v2575, %v2580
    %2584 = vrot.lane.b32.xlu0 %v2582, 32
    %v2585 = vpop.permute.xlu0 %2584
    %v2587 = vadd.f32 %v2577, %v2585
    %v2588 = vtanh.pop %v2587
    %2590 = vrot.lane.b32.xlu0 %v2588, 64
    %v2591 = vpop.permute.xlu0 %2590
    %v2593 = vmul.f32 %v2575, %v2591
    %2595 = vrot.lane.b32.xlu0 %v2593, 32
    %v2596 = vpop.permute.xlu0 %2595
    %v2597 = vsel %vm76, %v2596, 0
    %2599 = vmatprep.subr.mxu0 0.0
    %2600 = vmatpush1.msra.mxu0 %v69
    %2601 = vmatprep.subr.mxu0 0.0
    %2602 = vmatpush1.msra.mxu0 %v70
    %2603 = vmatprep.subr.mxu0 0.0
    %2604 = vmatpush1.msra.mxu0 %v71
    %2605 = vmatprep.subr.mxu0 0.0
    %2606 = vmatpush1.msra.mxu0 %v72
    %2607 = vmatprep.subr.mxu0 0.0
    %2608 = vmatpush1.msra.mxu0 0.0
    %2609 = vmatprep.subr.mxu0 0.0
    %2610 = vmatpush1.msra.mxu0 0.0
    %2611 = vmatprep.subr.mxu0 0.0
    %2612 = vmatpush1.msra.mxu0 0.0
    %2613 = vmatprep.subr.mxu0 0.0
    %2614 = vmatpush1.msra.mxu0 0.0
    %2615 = vmatprep.subr.mxu0 0.0
    %2616 = vmatpush1.msra.mxu0 0.0
    %2617 = vmatprep.subr.mxu0 0.0
    %2618 = vmatpush1.msra.mxu0 0.0
    %2619 = vmatprep.subr.mxu0 0.0
    %2620 = vmatpush1.msra.mxu0 0.0
    %2621 = vmatprep.subr.mxu0 0.0
    %2622 = vmatpush1.msra.mxu0 0.0
    %2623 = vmatprep.subr.mxu0 0.0
    %2624 = vmatpush1.msra.mxu0 0.0
    %2625 = vmatprep.subr.mxu0 0.0
    %2626 = vmatpush1.msra.mxu0 0.0
    %2627 = vmatprep.subr.mxu0 0.0
    %2628 = vmatpush1.msra.mxu0 0.0
    %2629 = vmatprep.subr.mxu0 0.0
    %2630 = vmatpush1.msra.mxu0 0.0
    %2631 = vmatprep.subr.mxu0 0.0
    %2632 = vmatpush1.msra.mxu0 0.0
    %2633 = vmatprep.subr.mxu0 0.0
    %2634 = vmatpush1.msra.mxu0 0.0
    %2635 = vmatprep.subr.mxu0 0.0
    %2636 = vmatpush1.msra.mxu0 0.0
    %2637 = vmatprep.subr.mxu0 0.0
    %2638 = vmatpush1.msra.mxu0 0.0
    %2639 = vmatprep.subr.mxu0 0.0
    %2640 = vmatpush1.msra.mxu0 0.0
    %2641 = vmatprep.subr.mxu0 0.0
    %2642 = vmatpush1.msra.mxu0 0.0
    %2643 = vmatprep.subr.mxu0 0.0
    %2644 = vmatpush1.msra.mxu0 0.0
    %2645 = vmatprep.subr.mxu0 0.0
    %2646 = vmatpush1.msra.mxu0 0.0
    %2647 = vmatprep.subr.mxu0 0.0
    %2648 = vmatpush1.msra.mxu0 0.0
    %2649 = vmatprep.subr.mxu0 0.0
    %2650 = vmatpush1.msra.mxu0 0.0
    %2651 = vmatprep.subr.mxu0 0.0
    %2652 = vmatpush1.msra.mxu0 0.0
    %2653 = vmatprep.subr.mxu0 0.0
    %2654 = vmatpush1.msra.mxu0 0.0
    %2655 = vmatprep.subr.mxu0 0.0
    %2656 = vmatpush1.msra.mxu0 0.0
    %2657 = vmatprep.subr.mxu0 0.0
    %2658 = vmatpush1.msra.mxu0 0.0
    %2659 = vmatprep.subr.mxu0 0.0
    %2660 = vmatpush1.msra.mxu0 0.0
    %2661 = vmatprep.subr.mxu0 0.0
    %2662 = vmatpush1.msra.mxu0 0.0
    %2663 = vmatprep.mubr.f32.mxu0 0.0
    %2664 = vmatmul.mubr.f32.gmra.mrb[0].mxu0 %v2597
    %v2665 = vpop.f32.mrb[0].mxu0
    %v2666 = vadd.f32 %v1014, %v2665
    %v2667 = vpop.f32.mrb[0].mxu0
    %2668 = vdwg.mxu0
    %s2669 = scalar_lea.vmem %s9, 56
    %2670 = vst [vmem:[%s2669] sm:$0xff] %v2666
    // Predicated region
    $region42: #{_seq2seq_jit.1} parent=1 // pred_check
      _
    $region43: #{_seq2seq_jit.1} parent=1 // pred_check_branch
      %2672 = sbr.rel (0) target = $region45
    $region44: #{_seq2seq_jit.1} parent=1 // pred_region
      _
    $region45: #{_seq2seq_jit.1} parent=1 // pred_fallthru
      _
    // Predicated region
    $region46: #{_seq2seq_jit.1} parent=1 // pred_check
      _
    $region47: #{_seq2seq_jit.1} parent=1 // pred_check_branch
      %2674 = sbr.rel (0) target = $region49
    $region48: #{_seq2seq_jit.1} parent=1 // pred_region
      _
    $region49: #{_seq2seq_jit.1} parent=1 // pred_fallthru
      _
    %2675 = vsyncpa [#allocation3], 1

</llo_original>
